<compile_context>
chip_gen: v7x
topology: tpu7x:2x2x1
jax: 0.10.0
libtpu: 0.0.40
codegen_flags: <defaults>
</compile_context>

<pallas_src>
import math
import functools

import jax
import jax.numpy as jnp
from jax.experimental import pallas as pl
from jax.experimental.pallas import tpu as pltpu

NUM_HEADS = 8


# ---------------------------------------------------------------------------
# Fused kernel: projections + multi-head attention + output projection
# ---------------------------------------------------------------------------
def _cross_attention_kernel(q_ref, kv_ref, wq_ref, wk_ref, wv_ref, wo_ref,
                            bo_ref, o_ref, *, compute_dtype):
    # Per grid step (one batch element):
    #   q_ref  : (1, Lq,  dim_q)
    #   kv_ref : (1, Lkv, dim_kv)
    #   wq_ref : (H, dim_q,  hd)   (softmax scale already folded in)
    #   wk_ref : (H, dim_kv, hd)
    #   wv_ref : (H, dim_kv, hd)
    #   wo_ref : (H, hd, dim_q)
    #   bo_ref : (1, dim_q)
    #   o_ref  : (1, Lq, dim_q)
    num_heads = wq_ref.shape[0]

    x_q = q_ref[0].astype(compute_dtype)     # (Lq, dim_q)
    x_kv = kv_ref[0].astype(compute_dtype)   # (Lkv, dim_kv)
    lq, dq = x_q.shape
    lk, dkv = x_kv.shape

    wq = wq_ref[...].astype(compute_dtype)
    wk = wk_ref[...].astype(compute_dtype)
    wv = wv_ref[...].astype(compute_dtype)
    wo = wo_ref[...].astype(compute_dtype)

    # Head-major batched projections: (H, L, hd).  The head split lives in the
    # pre-arranged weight layout, so no in-kernel reshape / transpose is
    # needed, and the total MAC count equals the unsplit matmuls.
    xq_b = jnp.broadcast_to(x_q, (num_heads, lq, dq))
    xkv_b = jnp.broadcast_to(x_kv, (num_heads, lk, dkv))
    qh = jnp.einsum("hld,hde->hle", xq_b, wq,
                    preferred_element_type=jnp.float32)       # (H, Lq, hd)
    kh = jnp.einsum("hld,hde->hle", xkv_b, wk,
                    preferred_element_type=jnp.float32)       # (H, Lk, hd)
    vh = jnp.einsum("hld,hde->hle", xkv_b, wv,
                    preferred_element_type=jnp.float32)       # (H, Lk, hd)

    # Scaled scores (scale folded into wq) + numerically stable softmax in f32.
    s = jnp.einsum("hqe,hke->hqk",
                   qh.astype(compute_dtype), kh.astype(compute_dtype),
                   preferred_element_type=jnp.float32)        # (H, Lq, Lk)
    m = jnp.max(s, axis=-1, keepdims=True)
    p = jnp.exp(s - m)
    p = p * pl.reciprocal(jnp.sum(p, axis=-1, keepdims=True), approx=True)

    ah = jnp.einsum("hqk,hke->hqe",
                    p.astype(compute_dtype), vh.astype(compute_dtype),
                    preferred_element_type=jnp.float32)       # (H, Lq, hd)

    # Output projection with the head merge folded in:
    #   out[l, j] = sum_h (ah[h] @ wo[h])[l, j] + bias[j]
    proj = jnp.einsum("hqe,hej->hqj", ah.astype(compute_dtype), wo,
                      preferred_element_type=jnp.float32)     # (H, Lq, dim_q)
    o_ref[0] = jnp.sum(proj, axis=0) + bo_ref[...]


# ---------------------------------------------------------------------------
# Wrapper
# ---------------------------------------------------------------------------
def cross_attention_forward(q, kv, kparams, *, compute_dtype=jnp.float32):
    """q: (B, Lq, dim_q), kv: (B, Lkv, dim_kv) -> (B, Lq, dim_q)."""
    B, Lq, dim_q = q.shape
    _, Lkv, dim_kv = kv.shape
    H, _, hd = kparams["wq_h"].shape

    kern = functools.partial(_cross_attention_kernel,
                             compute_dtype=compute_dtype)
    return pl.pallas_call(
        kern,
        out_shape=jax.ShapeDtypeStruct((B, Lq, dim_q), jnp.float32),
        grid=(B,),
        in_specs=[
            pl.BlockSpec((1, Lq, dim_q), lambda b: (b, 0, 0)),
            pl.BlockSpec((1, Lkv, dim_kv), lambda b: (b, 0, 0)),
            pl.BlockSpec((H, dim_q, hd), lambda b: (0, 0, 0)),
            pl.BlockSpec((H, dim_kv, hd), lambda b: (0, 0, 0)),
            pl.BlockSpec((H, dim_kv, hd), lambda b: (0, 0, 0)),
            pl.BlockSpec((H, hd, dim_q), lambda b: (0, 0, 0)),
            pl.BlockSpec((1, dim_q), lambda b: (0, 0)),
        ],
        out_specs=pl.BlockSpec((1, Lq, dim_q), lambda b: (b, 0, 0)),
        compiler_params=pltpu.CompilerParams(
            dimension_semantics=("parallel",)),
    )(q, kv, kparams["wq_h"], kparams["wk_h"], kparams["wv_h"],
      kparams["wo_h"], kparams["bo2d"])


# ---------------------------------------------------------------------------
# Parameters
# ---------------------------------------------------------------------------
def init_params(key, dim_q, dim_kv):
    """Deterministic init mimicking torch.nn.Linear default (kaiming uniform)."""
    ks = jax.random.split(key, 5)

    def lin_w(k, dout, din):
        bound = 1.0 / math.sqrt(din)
        return jax.random.uniform(k, (dout, din), jnp.float32, -bound, bound)

    return {
        "Wq": lin_w(ks[0], dim_q, dim_q),
        "Wk": lin_w(ks[1], dim_q, dim_kv),
        "Wv": lin_w(ks[2], dim_q, dim_kv),
        "Wo": lin_w(ks[3], dim_q, dim_q),
        "bo": jax.random.uniform(ks[4], (dim_q,), jnp.float32,
                                 -1.0 / math.sqrt(dim_q),
                                 1.0 / math.sqrt(dim_q)),
    }


def prepare_kernel_params(params, num_heads=NUM_HEADS):
    """One-time (outside the kernel) weight re-layout:
       transpose, fold softmax scale into Wq, and split output heads so the
       kernel never transposes or reshapes anything in-kernel."""
    dim_q = params["Wq"].shape[0]
    hd = dim_q // num_heads
    scale = float(hd) ** (-0.5)

    def head_major(w_t):  # (din, dout) -> (H, din, hd)
        din = w_t.shape[0]
        return w_t.reshape(din, num_heads, hd).transpose(1, 0, 2)

    return {
        "wq_h": head_major((params["Wq"] * scale).T),            # (H, dim_q,  hd)
        "wk_h": head_major(params["Wk"].T),                      # (H, dim_kv, hd)
        "wv_h": head_major(params["Wv"].T),                      # (H, dim_kv, hd)
        "wo_h": params["Wo"].T.reshape(num_heads, hd, dim_q),    # (H, hd, dim_q)
        "bo2d": params["bo"].reshape(1, dim_q),                  # (1, dim_q)
    }


# ---------------------------------------------------------------------------
# Pure-JAX reference (torch semantics) for correctness checking
# ---------------------------------------------------------------------------
def reference_forward(q, kv, params):
    B, Lq, dim_q = q.shape
    hd = dim_q // NUM_HEADS
    qp = q @ params["Wq"].T
    kp = kv @ params["Wk"].T
    vp = kv @ params["Wv"].T

    def split_heads(x):
        b, l, d = x.shape
        return (x.reshape(b, l, NUM_HEADS, d // NUM_HEADS)
                 .transpose(0, 2, 1, 3)
                 .reshape(b * NUM_HEADS, l, d // NUM_HEADS))

    qh, kh, vh = split_heads(qp), split_heads(kp), split_heads(vp)
    s = jnp.einsum("bqd,bkd->bqk", qh, kh) * (float(hd) ** (-0.5))
    p = jax.nn.softmax(s, axis=-1)
    ah = jnp.einsum("bqk,bkd->bqd", p, vh)
    out = (ah.reshape(B, NUM_HEADS, Lq, hd)
             .transpose(0, 2, 1, 3)
             .reshape(B, Lq, dim_q))
    return out @ params["Wo"].T + params["bo"]


if __name__ == "__main__":
    key = jax.random.PRNGKey(0)
    k_q, k_kv, k_p = jax.random.split(key, 3)

    B, Lq, Lkv = 2, 16, 8
    dim_q, dim_kv = 32, 16   # 8 heads -> head_dim = 4

    q = jax.random.normal(k_q, (B, Lq, dim_q), jnp.float32)
    kv = jax.random.normal(k_kv, (B, Lkv, dim_kv), jnp.float32)
    params = init_params(k_p, dim_q, dim_kv)
    kparams = prepare_kernel_params(params)

    # f32 compute for the strict check; pass compute_dtype=jnp.bfloat16 on
    # v6e/v7x at real sizes for native MXU throughput (f32 accumulation kept).
    out = cross_attention_forward(q, kv, kparams, compute_dtype=jnp.float32)
    out = jax.block_until_ready(out)

    ref = reference_forward(q, kv, params)
    assert out.shape == (B, Lq, dim_q)
    # Tolerance allows for the approximate (EUP) reciprocal in the softmax.
    assert jnp.allclose(out, ref, atol=2e-3, rtol=2e-3), "mismatch vs reference"

    print("KERNEL_OK")
</pallas_src>

<mosaic_0001>
module attributes {stable_mosaic.version = 11 : i64} {
  func.func @_cross_attention_kernel(%arg0: i32, %arg1: memref<1x16x32xf32, #tpu.memory_space<vmem>>, %arg2: memref<1x8x16xf32, #tpu.memory_space<vmem>>, %arg3: memref<8x32x4xf32, #tpu.memory_space<vmem>>, %arg4: memref<8x16x4xf32, #tpu.memory_space<vmem>>, %arg5: memref<8x16x4xf32, #tpu.memory_space<vmem>>, %arg6: memref<8x4x32xf32, #tpu.memory_space<vmem>>, %arg7: memref<1x32xf32, #tpu.memory_space<vmem>>, %arg8: memref<1x16x32xf32, #tpu.memory_space<vmem>>) attributes {dimension_semantics = [#tpu.dimension_semantics<parallel>], iteration_bounds = array<i64: 2>, scalar_prefetch = 0 : i64, scratch_operands = 0 : i64, tpu.core_type = #tpu.core_type<tc>, window_params = [{transform_indices = @transform_0, window_bounds = array<i64: 1, 16, 32>}, {transform_indices = @transform_1, window_bounds = array<i64: 1, 8, 16>}, {pipeline_mode = #tpu.pipeline_mode<synchronous>, transform_indices = @transform_2, window_bounds = array<i64: 8, 32, 4>}, {pipeline_mode = #tpu.pipeline_mode<synchronous>, transform_indices = @transform_3, window_bounds = array<i64: 8, 16, 4>}, {pipeline_mode = #tpu.pipeline_mode<synchronous>, transform_indices = @transform_4, window_bounds = array<i64: 8, 16, 4>}, {pipeline_mode = #tpu.pipeline_mode<synchronous>, transform_indices = @transform_5, window_bounds = array<i64: 8, 4, 32>}, {pipeline_mode = #tpu.pipeline_mode<synchronous>, transform_indices = @transform_6, window_bounds = array<i64: 1, 32>}, {transform_indices = @transform_7, window_bounds = array<i64: 1, 16, 32>}]} {
    %c0 = arith.constant 0 : index
    %c0_0 = arith.constant 0 : index
    %c0_1 = arith.constant 0 : index
    %0 = vector.load %arg1[%c0, %c0_0, %c0_1] : memref<1x16x32xf32, #tpu.memory_space<vmem>>, vector<1x16x32xf32>
    %1 = vector.shape_cast %0 : vector<1x16x32xf32> to vector<16x32xf32>
    %c0_2 = arith.constant 0 : index
    %c0_3 = arith.constant 0 : index
    %c0_4 = arith.constant 0 : index
    %2 = vector.load %arg2[%c0_2, %c0_3, %c0_4] : memref<1x8x16xf32, #tpu.memory_space<vmem>>, vector<1x8x16xf32>
    %3 = vector.shape_cast %2 : vector<1x8x16xf32> to vector<8x16xf32>
    %c0_5 = arith.constant 0 : index
    %c0_6 = arith.constant 0 : index
    %c0_7 = arith.constant 0 : index
    %4 = vector.load %arg3[%c0_5, %c0_6, %c0_7] : memref<8x32x4xf32, #tpu.memory_space<vmem>>, vector<8x32x4xf32>
    %c0_8 = arith.constant 0 : index
    %c0_9 = arith.constant 0 : index
    %c0_10 = arith.constant 0 : index
    %5 = vector.load %arg4[%c0_8, %c0_9, %c0_10] : memref<8x16x4xf32, #tpu.memory_space<vmem>>, vector<8x16x4xf32>
    %c0_11 = arith.constant 0 : index
    %c0_12 = arith.constant 0 : index
    %c0_13 = arith.constant 0 : index
    %6 = vector.load %arg5[%c0_11, %c0_12, %c0_13] : memref<8x16x4xf32, #tpu.memory_space<vmem>>, vector<8x16x4xf32>
    %c0_14 = arith.constant 0 : index
    %c0_15 = arith.constant 0 : index
    %c0_16 = arith.constant 0 : index
    %7 = vector.load %arg6[%c0_14, %c0_15, %c0_16] : memref<8x4x32xf32, #tpu.memory_space<vmem>>, vector<8x4x32xf32>
    %8 = vector.shape_cast %1 : vector<16x32xf32> to vector<1x16x32xf32>
    %9 = vector.broadcast %8 : vector<1x16x32xf32> to vector<8x16x32xf32>
    %10 = vector.shape_cast %3 : vector<8x16xf32> to vector<1x8x16xf32>
    %11 = vector.broadcast %10 : vector<1x8x16xf32> to vector<8x8x16xf32>
    "tpu.trace_start"() <{level = 10 : i32, message = "hld,hde->hle"}> : () -> ()
    %cst = arith.constant dense<0.000000e+00> : vector<8x16x4xf32>
    %12 = tpu.matmul %9, %4, %cst {dimension_numbers = #tpu.dot_dimension_numbers<[2], [1], [1], [2], [0, 0, 0, 1, 1, 2], [0], [0]>} : vector<8x16x32xf32>, vector<8x32x4xf32>, vector<8x16x4xf32> -> vector<8x16x4xf32>
    %cst_17 = arith.constant dense<0.000000e+00> : vector<8x8x4xf32>
    %13 = tpu.matmul %11, %5, %cst_17 {dimension_numbers = #tpu.dot_dimension_numbers<[2], [1], [1], [2], [0, 0, 0, 1, 1, 2], [0], [0]>} : vector<8x8x16xf32>, vector<8x16x4xf32>, vector<8x8x4xf32> -> vector<8x8x4xf32>
    %cst_18 = arith.constant dense<0.000000e+00> : vector<8x8x4xf32>
    %14 = tpu.matmul %11, %6, %cst_18 {dimension_numbers = #tpu.dot_dimension_numbers<[2], [1], [1], [2], [0, 0, 0, 1, 1, 2], [0], [0]>} : vector<8x8x16xf32>, vector<8x16x4xf32>, vector<8x8x4xf32> -> vector<8x8x4xf32>
    "tpu.trace_stop"() : () -> ()
    "tpu.trace_start"() <{level = 10 : i32, message = "hqe,hke->hqk"}> : () -> ()
    %cst_19 = arith.constant dense<0.000000e+00> : vector<8x16x8xf32>
    %15 = tpu.matmul %12, %13, %cst_19 {dimension_numbers = #tpu.dot_dimension_numbers<[2], [2], [1], [1], [0, 0, 0, 1, 1, 1], [0], [0]>} : vector<8x16x4xf32>, vector<8x8x4xf32>, vector<8x16x8xf32> -> vector<8x16x8xf32>
    "tpu.trace_stop"() : () -> ()
    %cst_20 = arith.constant dense<0xFF800000> : vector<8x16xf32>
    %16 = vector.multi_reduction <maximumf>, %15, %cst_20 [2] : vector<8x16x8xf32> to vector<8x16xf32>
    %17 = vector.shape_cast %16 : vector<8x16xf32> to vector<8x16x1xf32>
    %18 = vector.broadcast %17 : vector<8x16x1xf32> to vector<8x16x8xf32>
    %19 = arith.subf %15, %18 : vector<8x16x8xf32>
    %20 = math.exp %19 : vector<8x16x8xf32>
    %cst_21 = arith.constant dense<0.000000e+00> : vector<8x16xf32>
    %21 = vector.multi_reduction <add>, %20, %cst_21 [2] : vector<8x16x8xf32> to vector<8x16xf32>
    %22 = vector.shape_cast %21 : vector<8x16xf32> to vector<8x16x1xf32>
    %23 = tpu.reciprocal %22 {approx = true} : vector<8x16x1xf32> -> vector<8x16x1xf32>
    %24 = vector.broadcast %23 : vector<8x16x1xf32> to vector<8x16x8xf32>
    %25 = arith.mulf %20, %24 : vector<8x16x8xf32>
    "tpu.trace_start"() <{level = 10 : i32, message = "hqk,hke->hqe"}> : () -> ()
    %cst_22 = arith.constant dense<0.000000e+00> : vector<8x16x4xf32>
    %26 = tpu.matmul %25, %14, %cst_22 {dimension_numbers = #tpu.dot_dimension_numbers<[2], [1], [1], [2], [0, 0, 0, 1, 1, 2], [0], [0]>} : vector<8x16x8xf32>, vector<8x8x4xf32>, vector<8x16x4xf32> -> vector<8x16x4xf32>
    "tpu.trace_stop"() : () -> ()
    "tpu.trace_start"() <{level = 10 : i32, message = "hqe,hej->hqj"}> : () -> ()
    %cst_23 = arith.constant dense<0.000000e+00> : vector<8x16x32xf32>
    %27 = tpu.matmul %26, %7, %cst_23 {dimension_numbers = #tpu.dot_dimension_numbers<[2], [1], [1], [2], [0, 0, 0, 1, 1, 2], [0], [0]>} : vector<8x16x4xf32>, vector<8x4x32xf32>, vector<8x16x32xf32> -> vector<8x16x32xf32>
    "tpu.trace_stop"() : () -> ()
    %cst_24 = arith.constant dense<0.000000e+00> : vector<16x32xf32>
    %28 = vector.multi_reduction <add>, %27, %cst_24 [0] : vector<8x16x32xf32> to vector<16x32xf32>
    %c0_25 = arith.constant 0 : index
    %c0_26 = arith.constant 0 : index
    %29 = vector.load %arg7[%c0_25, %c0_26] : memref<1x32xf32, #tpu.memory_space<vmem>>, vector<1x32xf32>
    %30 = vector.broadcast %29 : vector<1x32xf32> to vector<16x32xf32>
    %31 = arith.addf %28, %30 : vector<16x32xf32>
    %c0_27 = arith.constant 0 : index
    %c0_28 = arith.constant 0 : index
    %c0_29 = arith.constant 0 : index
    %32 = vector.load %arg8[%c0_27, %c0_28, %c0_29] : memref<1x16x32xf32, #tpu.memory_space<vmem>>, vector<1x16x32xf32>
    %33 = vector.shape_cast %32 : vector<1x16x32xf32> to vector<16x32xf32>
    %34 = vector.shape_cast %31 : vector<16x32xf32> to vector<1x16x32xf32>
    tpu.vector_store %arg8[%c0_27, %c0_28, %c0_29], %34 {strides = array<i32>} : memref<1x16x32xf32, #tpu.memory_space<vmem>>, vector<1x16x32xf32>,
    return
  }
  func.func @transform_0(%arg0: i32) -> (i32, i32, i32) {
    %c0_i32 = arith.constant 0 : i32
    %c0_i32_0 = arith.constant 0 : i32
    %c0_i32_1 = arith.constant 0 : i32
    return %arg0, %c0_i32, %c0_i32_0 : i32, i32, i32
  }
  func.func @transform_1(%arg0: i32) -> (i32, i32, i32) {
    %c0_i32 = arith.constant 0 : i32
    %c0_i32_0 = arith.constant 0 : i32
    %c0_i32_1 = arith.constant 0 : i32
    return %arg0, %c0_i32, %c0_i32_0 : i32, i32, i32
  }
  func.func @transform_2(%arg0: i32) -> (i32, i32, i32) {
    %c0_i32 = arith.constant 0 : i32
    %c0_i32_0 = arith.constant 0 : i32
    %c0_i32_1 = arith.constant 0 : i32
    %c0_i32_2 = arith.constant 0 : i32
    return %c0_i32, %c0_i32_0, %c0_i32_1 : i32, i32, i32
  }
  func.func @transform_3(%arg0: i32) -> (i32, i32, i32) {
    %c0_i32 = arith.constant 0 : i32
    %c0_i32_0 = arith.constant 0 : i32
    %c0_i32_1 = arith.constant 0 : i32
    %c0_i32_2 = arith.constant 0 : i32
    return %c0_i32, %c0_i32_0, %c0_i32_1 : i32, i32, i32
  }
  func.func @transform_4(%arg0: i32) -> (i32, i32, i32) {
    %c0_i32 = arith.constant 0 : i32
    %c0_i32_0 = arith.constant 0 : i32
    %c0_i32_1 = arith.constant 0 : i32
    %c0_i32_2 = arith.constant 0 : i32
    return %c0_i32, %c0_i32_0, %c0_i32_1 : i32, i32, i32
  }
  func.func @transform_5(%arg0: i32) -> (i32, i32, i32) {
    %c0_i32 = arith.constant 0 : i32
    %c0_i32_0 = arith.constant 0 : i32
    %c0_i32_1 = arith.constant 0 : i32
    %c0_i32_2 = arith.constant 0 : i32
    return %c0_i32, %c0_i32_0, %c0_i32_1 : i32, i32, i32
  }
  func.func @transform_6(%arg0: i32) -> (i32, i32) {
    %c0_i32 = arith.constant 0 : i32
    %c0_i32_0 = arith.constant 0 : i32
    %c0_i32_1 = arith.constant 0 : i32
    return %c0_i32, %c0_i32_0 : i32, i32
  }
  func.func @transform_7(%arg0: i32) -> (i32, i32, i32) {
    %c0_i32 = arith.constant 0 : i32
    %c0_i32_0 = arith.constant 0 : i32
    %c0_i32_1 = arith.constant 0 : i32
    return %arg0, %c0_i32, %c0_i32_0 : i32, i32, i32
  }
}

</mosaic_0001>

<llo_original>
// kernel: tpu_custom_call.1
$region0: #{tpu_custom_call.1}
  #allocation0 [shape = 'u32[]', space=smem, size = 0x4, offset = 0x4, fixed_abs, tag = 'smem constant byte address 0x4 - core index']
  #allocation1 [shape = 'u32[144,128]{1,0:T(1,128)}', space=vmem, size = 0x12000, scoped, tag = 'internal scratch']
  %s0 = inlined_call_operand.vmem [shape: f32[2,16,32], index: 0, kind: input, shape index: {}]
  %s1 = inlined_call_operand.vmem [shape: f32[2,8,16], index: 1, kind: input, shape index: {}]
  %s2 = inlined_call_operand.vmem [shape: f32[8,32,4], index: 2, kind: input, shape index: {}]
  %s3 = inlined_call_operand.vmem [shape: f32[8,16,4], index: 3, kind: input, shape index: {}]
  %s4 = inlined_call_operand.vmem [shape: f32[8,16,4], index: 4, kind: input, shape index: {}]
  %s5 = inlined_call_operand.vmem [shape: f32[8,4,32], index: 5, kind: input, shape index: {}]
  %s6 = inlined_call_operand.vmem [shape: f32[1,32], index: 6, kind: input, shape index: {}]
  %s7 = inlined_call_operand.hbm [shape: f32[2,16,32], index: 7, kind: output, shape index: {}]
  %s8 = sld [smem:[#allocation0]]
  $region61: #{tpu_custom_call.1} parent=0
    _
  %s10 = ssub.s32 1, %s8
  %s11 = scalar_select 0, %s10, %s8
  $region1: #{tpu_custom_call.1} parent=0
    #allocation2 [shape = 'u8[16384]{0}', space=vmem, size = 0x4000, scoped, tag = 'output window, operand 0']
    #allocation3 [shape = 's32[2]{0}', space=sflag, size = 0x8, scoped, tag = 'scoped memory for tpu_custom_call.1']
    %12 = vsyncpa [#allocation3], 0
    %s13 = scalar_lea.sflag [#allocation3], 1
    %14 = vsyncpa %s13, 0
    loop: start=0, step=1, limit=4
    $region2: #{tpu_custom_call.1} parent=1 // loop_pre_header
      _
    $region3: #{tpu_custom_call.1} parent=1 // loop_header
      %s16 = sphi 0, %s20
      %p17 = scmp.ge.s32.totalorder %s16, 4
      %s26 = sphi 0, %s28
      %s29 = sphi 0, %s26
      %s30 = sphi 0, %s29
      %s46 = sphi 0, %s30
      %s52 = sphi 0, %s54
      %s55 = sphi 0, %s52
      %s56 = sphi 0, %s55
      %s72 = sphi 0, %s56
      %s76 = sphi 0, %s76
      %s78 = sphi 0, %s76
      %s79 = sphi 0, %s78
      %s93 = sphi 0, %s79
      %s97 = sphi 0, %s97
      %s99 = sphi 0, %s97
      %s100 = sphi 0, %s99
      %s114 = sphi 0, %s100
      %s118 = sphi 0, %s118
      %s120 = sphi 0, %s118
      %s121 = sphi 0, %s120
      %s135 = sphi 0, %s121
      %s139 = sphi 0, %s139
      %s141 = sphi 0, %s139
      %s142 = sphi 0, %s141
      %s156 = sphi 0, %s142
      %s160 = sphi 0, %s160
      %s162 = sphi 0, %s160
      %s163 = sphi 0, %s162
      %s177 = sphi 0, %s163
      %s183 = sphi 0, %s185
      %s186 = sphi 0, %s183
      %s187 = sphi 0, %s186
      %s203 = sphi 0, %s187
    $region4: #{tpu_custom_call.1} parent=1 // loop_header_branch
      %19 = sbr.rel (%p17) target = $region8
    $region5: #{tpu_custom_call.1} parent=1 // loop_body
      %s21 = ssub.s32 %s16, 1
      %s22 = ssub.s32 %s16, 2
      %s23 = sadd.s32 %s16, 1
      %s24 = ssub.s32 %s16, %s23
      %p25 = scmp.eq.s32.totalorder %s24, 0
      %s27 = sadd.s32 %s26, 1
      %s28 = scalar_select %p25, %s26, %s27
      %p31 = pneg %p25
      %p32 = scmp.eq.s32.totalorder %s16, 1
      %p33 = por %p31, %p32
      %p34 = scmp.ne.s32.totalorder %s26, %s29
      %p35 = scmp.eq.s32.totalorder %s16, 0
      %p36 = por %p34, %p35
      %p37 = scmp.ne.s32.totalorder %s26, %s29
      %p38 = scmp.eq.s32.totalorder %s21, 1
      %p39 = por %p37, %p38
      %p40 = scmp.ne.s32.totalorder %s29, %s30
      %p41 = scmp.eq.s32.totalorder %s21, 0
      %p42 = por %p40, %p41
      %p43 = scmp.ne.s32.totalorder %s29, %s30
      %p44 = scmp.eq.s32.totalorder %s22, 1
      %p45 = por %p43, %p44
      %p47 = scmp.ne.s32.totalorder %s30, %s46
      %p48 = scmp.eq.s32.totalorder %s22, 0
      %p49 = por %p47, %p48
      %s50 = ssub.s32 %s16, %s23
      %p51 = scmp.eq.s32.totalorder %s50, 0
      %s53 = sadd.s32 %s52, 1
      %s54 = scalar_select %p51, %s52, %s53
      %p57 = pneg %p51
      %p58 = scmp.eq.s32.totalorder %s16, 1
      %p59 = por %p57, %p58
      %p60 = scmp.ne.s32.totalorder %s52, %s55
      %p61 = scmp.eq.s32.totalorder %s16, 0
      %p62 = por %p60, %p61
      %p63 = scmp.ne.s32.totalorder %s52, %s55
      %p64 = scmp.eq.s32.totalorder %s21, 1
      %p65 = por %p63, %p64
      %p66 = scmp.ne.s32.totalorder %s55, %s56
      %p67 = scmp.eq.s32.totalorder %s21, 0
      %p68 = por %p66, %p67
      %p69 = scmp.ne.s32.totalorder %s55, %s56
      %p70 = scmp.eq.s32.totalorder %s22, 1
      %p71 = por %p69, %p70
      %p73 = scmp.ne.s32.totalorder %s56, %s72
      %p74 = scmp.eq.s32.totalorder %s22, 0
      %p75 = por %p73, %p74
      %s77 = sadd.s32 %s76, 1
      %p80 = scmp.eq.s32.totalorder %s16, 1
      %p81 = scmp.ne.s32.totalorder %s76, %s78
      %p82 = scmp.eq.s32.totalorder %s16, 0
      %p83 = por %p81, %p82
      %p84 = scmp.ne.s32.totalorder %s76, %s78
      %p85 = scmp.eq.s32.totalorder %s21, 1
      %p86 = por %p84, %p85
      %p87 = scmp.ne.s32.totalorder %s78, %s79
      %p88 = scmp.eq.s32.totalorder %s21, 0
      %p89 = por %p87, %p88
      %p90 = scmp.ne.s32.totalorder %s78, %s79
      %p91 = scmp.eq.s32.totalorder %s22, 1
      %p92 = por %p90, %p91
      %p94 = scmp.ne.s32.totalorder %s79, %s93
      %p95 = scmp.eq.s32.totalorder %s22, 0
      %p96 = por %p94, %p95
      %s98 = sadd.s32 %s97, 1
      %p101 = scmp.eq.s32.totalorder %s16, 1
      %p102 = scmp.ne.s32.totalorder %s97, %s99
      %p103 = scmp.eq.s32.totalorder %s16, 0
      %p104 = por %p102, %p103
      %p105 = scmp.ne.s32.totalorder %s97, %s99
      %p106 = scmp.eq.s32.totalorder %s21, 1
      %p107 = por %p105, %p106
      %p108 = scmp.ne.s32.totalorder %s99, %s100
      %p109 = scmp.eq.s32.totalorder %s21, 0
      %p110 = por %p108, %p109
      %p111 = scmp.ne.s32.totalorder %s99, %s100
      %p112 = scmp.eq.s32.totalorder %s22, 1
      %p113 = por %p111, %p112
      %p115 = scmp.ne.s32.totalorder %s100, %s114
      %p116 = scmp.eq.s32.totalorder %s22, 0
      %p117 = por %p115, %p116
      %s119 = sadd.s32 %s118, 1
      %p122 = scmp.eq.s32.totalorder %s16, 1
      %p123 = scmp.ne.s32.totalorder %s118, %s120
      %p124 = scmp.eq.s32.totalorder %s16, 0
      %p125 = por %p123, %p124
      %p126 = scmp.ne.s32.totalorder %s118, %s120
      %p127 = scmp.eq.s32.totalorder %s21, 1
      %p128 = por %p126, %p127
      %p129 = scmp.ne.s32.totalorder %s120, %s121
      %p130 = scmp.eq.s32.totalorder %s21, 0
      %p131 = por %p129, %p130
      %p132 = scmp.ne.s32.totalorder %s120, %s121
      %p133 = scmp.eq.s32.totalorder %s22, 1
      %p134 = por %p132, %p133
      %p136 = scmp.ne.s32.totalorder %s121, %s135
      %p137 = scmp.eq.s32.totalorder %s22, 0
      %p138 = por %p136, %p137
      %s140 = sadd.s32 %s139, 1
      %p143 = scmp.eq.s32.totalorder %s16, 1
      %p144 = scmp.ne.s32.totalorder %s139, %s141
      %p145 = scmp.eq.s32.totalorder %s16, 0
      %p146 = por %p144, %p145
      %p147 = scmp.ne.s32.totalorder %s139, %s141
      %p148 = scmp.eq.s32.totalorder %s21, 1
      %p149 = por %p147, %p148
      %p150 = scmp.ne.s32.totalorder %s141, %s142
      %p151 = scmp.eq.s32.totalorder %s21, 0
      %p152 = por %p150, %p151
      %p153 = scmp.ne.s32.totalorder %s141, %s142
      %p154 = scmp.eq.s32.totalorder %s22, 1
      %p155 = por %p153, %p154
      %p157 = scmp.ne.s32.totalorder %s142, %s156
      %p158 = scmp.eq.s32.totalorder %s22, 0
      %p159 = por %p157, %p158
      %s161 = sadd.s32 %s160, 1
      %p164 = scmp.eq.s32.totalorder %s16, 1
      %p165 = scmp.ne.s32.totalorder %s160, %s162
      %p166 = scmp.eq.s32.totalorder %s16, 0
      %p167 = por %p165, %p166
      %p168 = scmp.ne.s32.totalorder %s160, %s162
      %p169 = scmp.eq.s32.totalorder %s21, 1
      %p170 = por %p168, %p169
      %p171 = scmp.ne.s32.totalorder %s162, %s163
      %p172 = scmp.eq.s32.totalorder %s21, 0
      %p173 = por %p171, %p172
      %p174 = scmp.ne.s32.totalorder %s162, %s163
      %p175 = scmp.eq.s32.totalorder %s22, 1
      %p176 = por %p174, %p175
      %p178 = scmp.ne.s32.totalorder %s163, %s177
      %p179 = scmp.eq.s32.totalorder %s22, 0
      %p180 = por %p178, %p179
      %s181 = ssub.s32 %s16, %s23
      %p182 = scmp.eq.s32.totalorder %s181, 0
      %s184 = sadd.s32 %s183, 1
      %s185 = scalar_select %p182, %s183, %s184
      %p188 = pneg %p182
      %p189 = scmp.eq.s32.totalorder %s16, 1
      %p190 = por %p188, %p189
      %p191 = scmp.ne.s32.totalorder %s183, %s186
      %p192 = scmp.eq.s32.totalorder %s16, 0
      %p193 = por %p191, %p192
      %p194 = scmp.ne.s32.totalorder %s183, %s186
      %p195 = scmp.eq.s32.totalorder %s21, 1
      %p196 = por %p194, %p195
      %p197 = scmp.ne.s32.totalorder %s186, %s187
      %p198 = scmp.eq.s32.totalorder %s21, 0
      %p199 = por %p197, %p198
      %p200 = scmp.ne.s32.totalorder %s186, %s187
      %p201 = scmp.eq.s32.totalorder %s22, 1
      %p202 = por %p200, %p201
      %p204 = scmp.ne.s32.totalorder %s187, %s203
      %p205 = scmp.eq.s32.totalorder %s22, 0
      %p206 = por %p204, %p205
      %p207 = scmp.le.s32.totalorder 1, %s16
      %p208 = scmp.lt.s32.totalorder %s16, 3
      %p209 = pnand %p207, %p208
      %p210 = pneg %p209
      // Predicated region
      $region9: #{tpu_custom_call.1} parent=5 // pred_check
        _
      $region10: #{tpu_custom_call.1} parent=5 // pred_check_branch
        %212 = sbr.rel (%p209) target = $region12
      $region11: #{tpu_custom_call.1} parent=5 // pred_region
        %s213 = ssub.s32 %s16, 1
        // Predicated region
        $region13: #{tpu_custom_call.1} parent=11 // pred_check
          %p214 = pneg %p89
        $region14: #{tpu_custom_call.1} parent=11 // pred_check_branch
          %216 = sbr.rel (%p214) target = $region16
        $region15: #{tpu_custom_call.1} parent=11 // pred_region
          _
        $region16: #{tpu_custom_call.1} parent=11 // pred_fallthru
          _
        // Predicated region
        $region17: #{tpu_custom_call.1} parent=11 // pred_check
          %p217 = pneg %p110
        $region18: #{tpu_custom_call.1} parent=11 // pred_check_branch
          %219 = sbr.rel (%p217) target = $region20
        $region19: #{tpu_custom_call.1} parent=11 // pred_region
          _
        $region20: #{tpu_custom_call.1} parent=11 // pred_fallthru
          _
        // Predicated region
        $region21: #{tpu_custom_call.1} parent=11 // pred_check
          %p220 = pneg %p131
        $region22: #{tpu_custom_call.1} parent=11 // pred_check_branch
          %222 = sbr.rel (%p220) target = $region24
        $region23: #{tpu_custom_call.1} parent=11 // pred_region
          _
        $region24: #{tpu_custom_call.1} parent=11 // pred_fallthru
          _
        // Predicated region
        $region25: #{tpu_custom_call.1} parent=11 // pred_check
          %p223 = pneg %p152
        $region26: #{tpu_custom_call.1} parent=11 // pred_check_branch
          %225 = sbr.rel (%p223) target = $region28
        $region27: #{tpu_custom_call.1} parent=11 // pred_region
          _
        $region28: #{tpu_custom_call.1} parent=11 // pred_fallthru
          _
        // Predicated region
        $region29: #{tpu_custom_call.1} parent=11 // pred_check
          %p226 = pneg %p173
        $region30: #{tpu_custom_call.1} parent=11 // pred_check_branch
          %228 = sbr.rel (%p226) target = $region32
        $region31: #{tpu_custom_call.1} parent=11 // pred_region
          _
        $region32: #{tpu_custom_call.1} parent=11 // pred_fallthru
          _
      $region12: #{tpu_custom_call.1} parent=5 // pred_fallthru
        _
      %p229 = scmp.lt.s32.totalorder %s16, 2
      // Predicated region
      $region33: #{tpu_custom_call.1} parent=5 // pred_check
        %p230 = pneg %p229
      $region34: #{tpu_custom_call.1} parent=5 // pred_check_branch
        %232 = sbr.rel (%p230) target = $region36
      $region35: #{tpu_custom_call.1} parent=5 // pred_region
        // Predicated region
        $region37: #{tpu_custom_call.1} parent=35 // pred_check
          %p233 = pneg %p36
        $region38: #{tpu_custom_call.1} parent=35 // pred_check_branch
          %235 = sbr.rel (%p233) target = $region40
        $region39: #{tpu_custom_call.1} parent=35 // pred_region
          %p236 = scmp.lt.s32.totalorder %s16, 1
          %s237 = scalar_select %p236, %s16, 1
          %s238 = smul.addr %s237, 2
          %s239 = smul.addr %s238, 8
          %s240 = scalar_lea.vmem %s0, %s239
        $region40: #{tpu_custom_call.1} parent=35 // pred_fallthru
          _
        // Predicated region
        $region41: #{tpu_custom_call.1} parent=35 // pred_check
          %p241 = pneg %p62
        $region42: #{tpu_custom_call.1} parent=35 // pred_check_branch
          %243 = sbr.rel (%p241) target = $region44
        $region43: #{tpu_custom_call.1} parent=35 // pred_region
          %p244 = scmp.lt.s32.totalorder %s16, 1
          %s245 = scalar_select %p244, %s16, 1
          %s246 = smul.addr %s245, 8
          %s247 = scalar_lea.vmem %s1, %s246
        $region44: #{tpu_custom_call.1} parent=35 // pred_fallthru
          _
      $region36: #{tpu_custom_call.1} parent=5 // pred_fallthru
        _
      %p248 = scmp.le.s32.totalorder 1, %s16
      %p249 = scmp.lt.s32.totalorder %s16, 3
      %p250 = pnand %p248, %p249
      %p251 = pneg %p250
      // Predicated region
      $region45: #{tpu_custom_call.1} parent=5 // pred_check
        _
      $region46: #{tpu_custom_call.1} parent=5 // pred_check_branch
        %253 = sbr.rel (%p250) target = $region48
      $region47: #{tpu_custom_call.1} parent=5 // pred_region
        %s254 = ssub.s32 %s16, 1
        %p255 = scmp.lt.s32.totalorder %s21, 1
        %s256 = scalar_select %p255, %s21, 1
        %s257 = smul.addr %s256, 2
        %s258 = smul.addr %s257, 8
        %s259 = scalar_lea.vmem %s0, %s258
        %p260 = pneg %p42
        %p261 = pneg %p39
        %p262 = scmp.lt.s32.totalorder %s21, 1
        %s263 = scalar_select %p262, %s21, 1
        %s264 = smul.addr %s263, 8
        %s265 = scalar_lea.vmem %s1, %s264
        %p266 = pneg %p68
        %p267 = pneg %p65
        %p268 = pneg %p89
        %p269 = pneg %p86
        %p270 = pneg %p110
        %p271 = pneg %p107
        %p272 = pneg %p131
        %p273 = pneg %p128
        %p274 = pneg %p152
        %p275 = pneg %p149
        %p276 = pneg %p173
        %p277 = pneg %p170
        %p278 = pneg %p199
        %p279 = pneg %p196
        %s280 = sand.u32 %s186, 1
        %s281 = scalar_lea.sflag [#allocation3], %s280
        %s282 = sand.u32 %s186, 1
        %s283 = smul.addr %s282, 16
        %s284 = scalar_lea.vmem [#allocation2], %s283
        %p285 = scmp.lt.s32.totalorder %s21, 1
        %s286 = scalar_select %p285, %s21, 1
        %s287 = smul.addr %s286, 2
        %s288 = smul.addr %s287, 8
        %s289 = scalar_lea.vmem %s0, %s288
        %p290 = scmp.lt.s32.totalorder %s21, 1
        %s291 = scalar_select %p290, %s21, 1
        %s292 = smul.addr %s291, 8
        %s293 = scalar_lea.vmem %s1, %s292
        %v294 = vld [vmem:[%s289] sm:$0xff]
        %v295 = vld [vmem:[%s289 + $0x8] sm:$0xff]
        %v296 = vld [vmem:[%s293] sm:$0xff]
        %v297 = vld [vmem:[%s2] sm:$0xff]
        %v298 = vld [vmem:[%s2 + $0x8] sm:$0xff]
        %v299 = vld [vmem:[%s2 + $0x10] sm:$0xff]
        %v300 = vld [vmem:[%s2 + $0x18] sm:$0xff]
        %v301 = vld [vmem:[%s2 + $0x20] sm:$0xff]
        %v302 = vld [vmem:[%s2 + $0x28] sm:$0xff]
        %v303 = vld [vmem:[%s2 + $0x30] sm:$0xff]
        %v304 = vld [vmem:[%s2 + $0x38] sm:$0xff]
        %v305 = vld [vmem:[%s2 + $0x40] sm:$0xff]
        %v306 = vld [vmem:[%s2 + $0x48] sm:$0xff]
        %v307 = vld [vmem:[%s2 + $0x50] sm:$0xff]
        %v308 = vld [vmem:[%s2 + $0x58] sm:$0xff]
        %v309 = vld [vmem:[%s2 + $0x60] sm:$0xff]
        %v310 = vld [vmem:[%s2 + $0x68] sm:$0xff]
        %v311 = vld [vmem:[%s2 + $0x70] sm:$0xff]
        %v312 = vld [vmem:[%s2 + $0x78] sm:$0xff]
        %v313 = vld [vmem:[%s2 + $0x80] sm:$0xff]
        %v314 = vld [vmem:[%s2 + $0x88] sm:$0xff]
        %v315 = vld [vmem:[%s2 + $0x90] sm:$0xff]
        %v316 = vld [vmem:[%s2 + $0x98] sm:$0xff]
        %v317 = vld [vmem:[%s2 + $0xa0] sm:$0xff]
        %v318 = vld [vmem:[%s2 + $0xa8] sm:$0xff]
        %v319 = vld [vmem:[%s2 + $0xb0] sm:$0xff]
        %v320 = vld [vmem:[%s2 + $0xb8] sm:$0xff]
        %v321 = vld [vmem:[%s2 + $0xc0] sm:$0xff]
        %v322 = vld [vmem:[%s2 + $0xc8] sm:$0xff]
        %v323 = vld [vmem:[%s2 + $0xd0] sm:$0xff]
        %v324 = vld [vmem:[%s2 + $0xd8] sm:$0xff]
        %v325 = vld [vmem:[%s2 + $0xe0] sm:$0xff]
        %v326 = vld [vmem:[%s2 + $0xe8] sm:$0xff]
        %v327 = vld [vmem:[%s2 + $0xf0] sm:$0xff]
        %v328 = vld [vmem:[%s2 + $0xf8] sm:$0xff]
        %v329 = vld [vmem:[%s3] sm:$0xff]
        %v330 = vld [vmem:[%s3 + $0x8] sm:$0xff]
        %v331 = vld [vmem:[%s3 + $0x10] sm:$0xff]
        %v332 = vld [vmem:[%s3 + $0x18] sm:$0xff]
        %v333 = vld [vmem:[%s3 + $0x20] sm:$0xff]
        %v334 = vld [vmem:[%s3 + $0x28] sm:$0xff]
        %v335 = vld [vmem:[%s3 + $0x30] sm:$0xff]
        %v336 = vld [vmem:[%s3 + $0x38] sm:$0xff]
        %v337 = vld [vmem:[%s3 + $0x40] sm:$0xff]
        %v338 = vld [vmem:[%s3 + $0x48] sm:$0xff]
        %v339 = vld [vmem:[%s3 + $0x50] sm:$0xff]
        %v340 = vld [vmem:[%s3 + $0x58] sm:$0xff]
        %v341 = vld [vmem:[%s3 + $0x60] sm:$0xff]
        %v342 = vld [vmem:[%s3 + $0x68] sm:$0xff]
        %v343 = vld [vmem:[%s3 + $0x70] sm:$0xff]
        %v344 = vld [vmem:[%s3 + $0x78] sm:$0xff]
        %v345 = vld [vmem:[%s4] sm:$0xff]
        %v346 = vld [vmem:[%s4 + $0x8] sm:$0xff]
        %v347 = vld [vmem:[%s4 + $0x10] sm:$0xff]
        %v348 = vld [vmem:[%s4 + $0x18] sm:$0xff]
        %v349 = vld [vmem:[%s4 + $0x20] sm:$0xff]
        %v350 = vld [vmem:[%s4 + $0x28] sm:$0xff]
        %v351 = vld [vmem:[%s4 + $0x30] sm:$0xff]
        %v352 = vld [vmem:[%s4 + $0x38] sm:$0xff]
        %v353 = vld [vmem:[%s4 + $0x40] sm:$0xff]
        %v354 = vld [vmem:[%s4 + $0x48] sm:$0xff]
        %v355 = vld [vmem:[%s4 + $0x50] sm:$0xff]
        %v356 = vld [vmem:[%s4 + $0x58] sm:$0xff]
        %v357 = vld [vmem:[%s4 + $0x60] sm:$0xff]
        %v358 = vld [vmem:[%s4 + $0x68] sm:$0xff]
        %v359 = vld [vmem:[%s4 + $0x70] sm:$0xff]
        %v360 = vld [vmem:[%s4 + $0x78] sm:$0xff]
        %v361 = vld [vmem:[%s5] sm:$0xf]
        %v362 = vld [vmem:[%s5 + $0x4] sm:$0xf]
        %v363 = vld [vmem:[%s5 + $0x8] sm:$0xf]
        %v364 = vld [vmem:[%s5 + $0xc] sm:$0xf]
        %v365 = vld [vmem:[%s5 + $0x10] sm:$0xf]
        %v366 = vld [vmem:[%s5 + $0x14] sm:$0xf]
        %v367 = vld [vmem:[%s5 + $0x18] sm:$0xf]
        %v368 = vld [vmem:[%s5 + $0x1c] sm:$0xf]
        %vm369 = vcmask 261120
        %v371 = vsel %vm369, %v294, 0
        %v374 = vsel %vm369, %v295, 0
        %376 = vmatprep.subr.mxu0 0.0
        %377 = vmatpush1.msra.mxu0 %v297
        %378 = vmatprep.subr.mxu0 0.0
        %379 = vmatpush1.msra.mxu0 %v298
        %380 = vmatprep.subr.mxu0 0.0
        %381 = vmatpush1.msra.mxu0 %v299
        %382 = vmatprep.subr.mxu0 0.0
        %383 = vmatpush1.msra.mxu0 %v300
        %384 = vmatprep.subr.mxu0 0.0
        %385 = vmatpush1.msra.mxu0 0.0
        %386 = vmatprep.subr.mxu0 0.0
        %387 = vmatpush1.msra.mxu0 0.0
        %388 = vmatprep.subr.mxu0 0.0
        %389 = vmatpush1.msra.mxu0 0.0
        %390 = vmatprep.subr.mxu0 0.0
        %391 = vmatpush1.msra.mxu0 0.0
        %392 = vmatprep.subr.mxu0 0.0
        %393 = vmatpush1.msra.mxu0 0.0
        %394 = vmatprep.subr.mxu0 0.0
        %395 = vmatpush1.msra.mxu0 0.0
        %396 = vmatprep.subr.mxu0 0.0
        %397 = vmatpush1.msra.mxu0 0.0
        %398 = vmatprep.subr.mxu0 0.0
        %399 = vmatpush1.msra.mxu0 0.0
        %400 = vmatprep.subr.mxu0 0.0
        %401 = vmatpush1.msra.mxu0 0.0
        %402 = vmatprep.subr.mxu0 0.0
        %403 = vmatpush1.msra.mxu0 0.0
        %404 = vmatprep.subr.mxu0 0.0
        %405 = vmatpush1.msra.mxu0 0.0
        %406 = vmatprep.subr.mxu0 0.0
        %407 = vmatpush1.msra.mxu0 0.0
        %408 = vmatprep.subr.mxu0 0.0
        %409 = vmatpush1.msra.mxu0 0.0
        %410 = vmatprep.subr.mxu0 0.0
        %411 = vmatpush1.msra.mxu0 0.0
        %412 = vmatprep.subr.mxu0 0.0
        %413 = vmatpush1.msra.mxu0 0.0
        %414 = vmatprep.subr.mxu0 0.0
        %415 = vmatpush1.msra.mxu0 0.0
        %416 = vmatprep.subr.mxu0 0.0
        %417 = vmatpush1.msra.mxu0 0.0
        %418 = vmatprep.subr.mxu0 0.0
        %419 = vmatpush1.msra.mxu0 0.0
        %420 = vmatprep.subr.mxu0 0.0
        %421 = vmatpush1.msra.mxu0 0.0
        %422 = vmatprep.subr.mxu0 0.0
        %423 = vmatpush1.msra.mxu0 0.0
        %424 = vmatprep.subr.mxu0 0.0
        %425 = vmatpush1.msra.mxu0 0.0
        %426 = vmatprep.subr.mxu0 0.0
        %427 = vmatpush1.msra.mxu0 0.0
        %428 = vmatprep.subr.mxu0 0.0
        %429 = vmatpush1.msra.mxu0 0.0
        %430 = vmatprep.subr.mxu0 0.0
        %431 = vmatpush1.msra.mxu0 0.0
        %432 = vmatprep.subr.mxu0 0.0
        %433 = vmatpush1.msra.mxu0 0.0
        %434 = vmatprep.subr.mxu0 0.0
        %435 = vmatpush1.msra.mxu0 0.0
        %436 = vmatprep.subr.mxu0 0.0
        %437 = vmatpush1.msra.mxu0 0.0
        %438 = vmatprep.subr.mxu0 0.0
        %439 = vmatpush1.msra.mxu0 0.0
        %440 = vmatprep.mubr.f32.mxu0 0.0
        %441 = vmatmul.mubr.f32.gmra.mrb[0].mxu0 %v371
        %v442 = vpop.f32.mrb[0].mxu0
        %v443 = vadd.f32 0.0, %v442
        %v444 = vpop.f32.mrb[0].mxu0
        %445 = vmatprep.mubr.f32.mxu0 0.0
        %446 = vmatmul.mubr.f32.gmra.mrb[0].mxu0 %v374
        %v447 = vpop.f32.mrb[0].mxu0
        %v448 = vadd.f32 0.0, %v447
        %v449 = vpop.f32.mrb[0].mxu0
        %450 = vdwg.mxu0
        %451 = vmatprep.subr.mxu0 0.0
        %452 = vmatpush1.msra.mxu0 %v301
        %453 = vmatprep.subr.mxu0 0.0
        %454 = vmatpush1.msra.mxu0 %v302
        %455 = vmatprep.subr.mxu0 0.0
        %456 = vmatpush1.msra.mxu0 %v303
        %457 = vmatprep.subr.mxu0 0.0
        %458 = vmatpush1.msra.mxu0 %v304
        %459 = vmatprep.subr.mxu0 0.0
        %460 = vmatpush1.msra.mxu0 0.0
        %461 = vmatprep.subr.mxu0 0.0
        %462 = vmatpush1.msra.mxu0 0.0
        %463 = vmatprep.subr.mxu0 0.0
        %464 = vmatpush1.msra.mxu0 0.0
        %465 = vmatprep.subr.mxu0 0.0
        %466 = vmatpush1.msra.mxu0 0.0
        %467 = vmatprep.subr.mxu0 0.0
        %468 = vmatpush1.msra.mxu0 0.0
        %469 = vmatprep.subr.mxu0 0.0
        %470 = vmatpush1.msra.mxu0 0.0
        %471 = vmatprep.subr.mxu0 0.0
        %472 = vmatpush1.msra.mxu0 0.0
        %473 = vmatprep.subr.mxu0 0.0
        %474 = vmatpush1.msra.mxu0 0.0
        %475 = vmatprep.subr.mxu0 0.0
        %476 = vmatpush1.msra.mxu0 0.0
        %477 = vmatprep.subr.mxu0 0.0
        %478 = vmatpush1.msra.mxu0 0.0
        %479 = vmatprep.subr.mxu0 0.0
        %480 = vmatpush1.msra.mxu0 0.0
        %481 = vmatprep.subr.mxu0 0.0
        %482 = vmatpush1.msra.mxu0 0.0
        %483 = vmatprep.subr.mxu0 0.0
        %484 = vmatpush1.msra.mxu0 0.0
        %485 = vmatprep.subr.mxu0 0.0
        %486 = vmatpush1.msra.mxu0 0.0
        %487 = vmatprep.subr.mxu0 0.0
        %488 = vmatpush1.msra.mxu0 0.0
        %489 = vmatprep.subr.mxu0 0.0
        %490 = vmatpush1.msra.mxu0 0.0
        %491 = vmatprep.subr.mxu0 0.0
        %492 = vmatpush1.msra.mxu0 0.0
        %493 = vmatprep.subr.mxu0 0.0
        %494 = vmatpush1.msra.mxu0 0.0
        %495 = vmatprep.subr.mxu0 0.0
        %496 = vmatpush1.msra.mxu0 0.0
        %497 = vmatprep.subr.mxu0 0.0
        %498 = vmatpush1.msra.mxu0 0.0
        %499 = vmatprep.subr.mxu0 0.0
        %500 = vmatpush1.msra.mxu0 0.0
        %501 = vmatprep.subr.mxu0 0.0
        %502 = vmatpush1.msra.mxu0 0.0
        %503 = vmatprep.subr.mxu0 0.0
        %504 = vmatpush1.msra.mxu0 0.0
        %505 = vmatprep.subr.mxu0 0.0
        %506 = vmatpush1.msra.mxu0 0.0
        %507 = vmatprep.subr.mxu0 0.0
        %508 = vmatpush1.msra.mxu0 0.0
        %509 = vmatprep.subr.mxu0 0.0
        %510 = vmatpush1.msra.mxu0 0.0
        %511 = vmatprep.subr.mxu0 0.0
        %512 = vmatpush1.msra.mxu0 0.0
        %513 = vmatprep.subr.mxu0 0.0
        %514 = vmatpush1.msra.mxu0 0.0
        %515 = vmatprep.mubr.f32.mxu0 0.0
        %516 = vmatmul.mubr.f32.gmra.mrb[0].mxu0 %v371
        %v517 = vpop.f32.mrb[0].mxu0
        %v518 = vadd.f32 0.0, %v517
        %v519 = vpop.f32.mrb[0].mxu0
        %520 = vmatprep.mubr.f32.mxu0 0.0
        %521 = vmatmul.mubr.f32.gmra.mrb[0].mxu0 %v374
        %v522 = vpop.f32.mrb[0].mxu0
        %v523 = vadd.f32 0.0, %v522
        %v524 = vpop.f32.mrb[0].mxu0
        %525 = vdwg.mxu0
        %526 = vmatprep.subr.mxu0 0.0
        %527 = vmatpush1.msra.mxu0 %v305
        %528 = vmatprep.subr.mxu0 0.0
        %529 = vmatpush1.msra.mxu0 %v306
        %530 = vmatprep.subr.mxu0 0.0
        %531 = vmatpush1.msra.mxu0 %v307
        %532 = vmatprep.subr.mxu0 0.0
        %533 = vmatpush1.msra.mxu0 %v308
        %534 = vmatprep.subr.mxu0 0.0
        %535 = vmatpush1.msra.mxu0 0.0
        %536 = vmatprep.subr.mxu0 0.0
        %537 = vmatpush1.msra.mxu0 0.0
        %538 = vmatprep.subr.mxu0 0.0
        %539 = vmatpush1.msra.mxu0 0.0
        %540 = vmatprep.subr.mxu0 0.0
        %541 = vmatpush1.msra.mxu0 0.0
        %542 = vmatprep.subr.mxu0 0.0
        %543 = vmatpush1.msra.mxu0 0.0
        %544 = vmatprep.subr.mxu0 0.0
        %545 = vmatpush1.msra.mxu0 0.0
        %546 = vmatprep.subr.mxu0 0.0
        %547 = vmatpush1.msra.mxu0 0.0
        %548 = vmatprep.subr.mxu0 0.0
        %549 = vmatpush1.msra.mxu0 0.0
        %550 = vmatprep.subr.mxu0 0.0
        %551 = vmatpush1.msra.mxu0 0.0
        %552 = vmatprep.subr.mxu0 0.0
        %553 = vmatpush1.msra.mxu0 0.0
        %554 = vmatprep.subr.mxu0 0.0
        %555 = vmatpush1.msra.mxu0 0.0
        %556 = vmatprep.subr.mxu0 0.0
        %557 = vmatpush1.msra.mxu0 0.0
        %558 = vmatprep.subr.mxu0 0.0
        %559 = vmatpush1.msra.mxu0 0.0
        %560 = vmatprep.subr.mxu0 0.0
        %561 = vmatpush1.msra.mxu0 0.0
        %562 = vmatprep.subr.mxu0 0.0
        %563 = vmatpush1.msra.mxu0 0.0
        %564 = vmatprep.subr.mxu0 0.0
        %565 = vmatpush1.msra.mxu0 0.0
        %566 = vmatprep.subr.mxu0 0.0
        %567 = vmatpush1.msra.mxu0 0.0
        %568 = vmatprep.subr.mxu0 0.0
        %569 = vmatpush1.msra.mxu0 0.0
        %570 = vmatprep.subr.mxu0 0.0
        %571 = vmatpush1.msra.mxu0 0.0
        %572 = vmatprep.subr.mxu0 0.0
        %573 = vmatpush1.msra.mxu0 0.0
        %574 = vmatprep.subr.mxu0 0.0
        %575 = vmatpush1.msra.mxu0 0.0
        %576 = vmatprep.subr.mxu0 0.0
        %577 = vmatpush1.msra.mxu0 0.0
        %578 = vmatprep.subr.mxu0 0.0
        %579 = vmatpush1.msra.mxu0 0.0
        %580 = vmatprep.subr.mxu0 0.0
        %581 = vmatpush1.msra.mxu0 0.0
        %582 = vmatprep.subr.mxu0 0.0
        %583 = vmatpush1.msra.mxu0 0.0
        %584 = vmatprep.subr.mxu0 0.0
        %585 = vmatpush1.msra.mxu0 0.0
        %586 = vmatprep.subr.mxu0 0.0
        %587 = vmatpush1.msra.mxu0 0.0
        %588 = vmatprep.subr.mxu0 0.0
        %589 = vmatpush1.msra.mxu0 0.0
        %590 = vmatprep.mubr.f32.mxu0 0.0
        %591 = vmatmul.mubr.f32.gmra.mrb[0].mxu0 %v371
        %v592 = vpop.f32.mrb[0].mxu0
        %v593 = vadd.f32 0.0, %v592
        %v594 = vpop.f32.mrb[0].mxu0
        %595 = vmatprep.mubr.f32.mxu0 0.0
        %596 = vmatmul.mubr.f32.gmra.mrb[0].mxu0 %v374
        %v597 = vpop.f32.mrb[0].mxu0
        %v598 = vadd.f32 0.0, %v597
        %v599 = vpop.f32.mrb[0].mxu0
        %600 = vdwg.mxu0
        %601 = vmatprep.subr.mxu0 0.0
        %602 = vmatpush1.msra.mxu0 %v309
        %603 = vmatprep.subr.mxu0 0.0
        %604 = vmatpush1.msra.mxu0 %v310
        %605 = vmatprep.subr.mxu0 0.0
        %606 = vmatpush1.msra.mxu0 %v311
        %607 = vmatprep.subr.mxu0 0.0
        %608 = vmatpush1.msra.mxu0 %v312
        %609 = vmatprep.subr.mxu0 0.0
        %610 = vmatpush1.msra.mxu0 0.0
        %611 = vmatprep.subr.mxu0 0.0
        %612 = vmatpush1.msra.mxu0 0.0
        %613 = vmatprep.subr.mxu0 0.0
        %614 = vmatpush1.msra.mxu0 0.0
        %615 = vmatprep.subr.mxu0 0.0
        %616 = vmatpush1.msra.mxu0 0.0
        %617 = vmatprep.subr.mxu0 0.0
        %618 = vmatpush1.msra.mxu0 0.0
        %619 = vmatprep.subr.mxu0 0.0
        %620 = vmatpush1.msra.mxu0 0.0
        %621 = vmatprep.subr.mxu0 0.0
        %622 = vmatpush1.msra.mxu0 0.0
        %623 = vmatprep.subr.mxu0 0.0
        %624 = vmatpush1.msra.mxu0 0.0
        %625 = vmatprep.subr.mxu0 0.0
        %626 = vmatpush1.msra.mxu0 0.0
        %627 = vmatprep.subr.mxu0 0.0
        %628 = vmatpush1.msra.mxu0 0.0
        %629 = vmatprep.subr.mxu0 0.0
        %630 = vmatpush1.msra.mxu0 0.0
        %631 = vmatprep.subr.mxu0 0.0
        %632 = vmatpush1.msra.mxu0 0.0
        %633 = vmatprep.subr.mxu0 0.0
        %634 = vmatpush1.msra.mxu0 0.0
        %635 = vmatprep.subr.mxu0 0.0
        %636 = vmatpush1.msra.mxu0 0.0
        %637 = vmatprep.subr.mxu0 0.0
        %638 = vmatpush1.msra.mxu0 0.0
        %639 = vmatprep.subr.mxu0 0.0
        %640 = vmatpush1.msra.mxu0 0.0
        %641 = vmatprep.subr.mxu0 0.0
        %642 = vmatpush1.msra.mxu0 0.0
        %643 = vmatprep.subr.mxu0 0.0
        %644 = vmatpush1.msra.mxu0 0.0
        %645 = vmatprep.subr.mxu0 0.0
        %646 = vmatpush1.msra.mxu0 0.0
        %647 = vmatprep.subr.mxu0 0.0
        %648 = vmatpush1.msra.mxu0 0.0
        %649 = vmatprep.subr.mxu0 0.0
        %650 = vmatpush1.msra.mxu0 0.0
        %651 = vmatprep.subr.mxu0 0.0
        %652 = vmatpush1.msra.mxu0 0.0
        %653 = vmatprep.subr.mxu0 0.0
        %654 = vmatpush1.msra.mxu0 0.0
        %655 = vmatprep.subr.mxu0 0.0
        %656 = vmatpush1.msra.mxu0 0.0
        %657 = vmatprep.subr.mxu0 0.0
        %658 = vmatpush1.msra.mxu0 0.0
        %659 = vmatprep.subr.mxu0 0.0
        %660 = vmatpush1.msra.mxu0 0.0
        %661 = vmatprep.subr.mxu0 0.0
        %662 = vmatpush1.msra.mxu0 0.0
        %663 = vmatprep.subr.mxu0 0.0
        %664 = vmatpush1.msra.mxu0 0.0
        %665 = vmatprep.mubr.f32.mxu0 0.0
        %666 = vmatmul.mubr.f32.gmra.mrb[0].mxu0 %v371
        %v667 = vpop.f32.mrb[0].mxu0
        %v668 = vadd.f32 0.0, %v667
        %v669 = vpop.f32.mrb[0].mxu0
        %670 = vmatprep.mubr.f32.mxu0 0.0
        %671 = vmatmul.mubr.f32.gmra.mrb[0].mxu0 %v374
        %v672 = vpop.f32.mrb[0].mxu0
        %v673 = vadd.f32 0.0, %v672
        %v674 = vpop.f32.mrb[0].mxu0
        %675 = vdwg.mxu0
        %676 = vmatprep.subr.mxu0 0.0
        %677 = vmatpush1.msra.mxu0 %v313
        %678 = vmatprep.subr.mxu0 0.0
        %679 = vmatpush1.msra.mxu0 %v314
        %680 = vmatprep.subr.mxu0 0.0
        %681 = vmatpush1.msra.mxu0 %v315
        %682 = vmatprep.subr.mxu0 0.0
        %683 = vmatpush1.msra.mxu0 %v316
        %684 = vmatprep.subr.mxu0 0.0
        %685 = vmatpush1.msra.mxu0 0.0
        %686 = vmatprep.subr.mxu0 0.0
        %687 = vmatpush1.msra.mxu0 0.0
        %688 = vmatprep.subr.mxu0 0.0
        %689 = vmatpush1.msra.mxu0 0.0
        %690 = vmatprep.subr.mxu0 0.0
        %691 = vmatpush1.msra.mxu0 0.0
        %692 = vmatprep.subr.mxu0 0.0
        %693 = vmatpush1.msra.mxu0 0.0
        %694 = vmatprep.subr.mxu0 0.0
        %695 = vmatpush1.msra.mxu0 0.0
        %696 = vmatprep.subr.mxu0 0.0
        %697 = vmatpush1.msra.mxu0 0.0
        %698 = vmatprep.subr.mxu0 0.0
        %699 = vmatpush1.msra.mxu0 0.0
        %700 = vmatprep.subr.mxu0 0.0
        %701 = vmatpush1.msra.mxu0 0.0
        %702 = vmatprep.subr.mxu0 0.0
        %703 = vmatpush1.msra.mxu0 0.0
        %704 = vmatprep.subr.mxu0 0.0
        %705 = vmatpush1.msra.mxu0 0.0
        %706 = vmatprep.subr.mxu0 0.0
        %707 = vmatpush1.msra.mxu0 0.0
        %708 = vmatprep.subr.mxu0 0.0
        %709 = vmatpush1.msra.mxu0 0.0
        %710 = vmatprep.subr.mxu0 0.0
        %711 = vmatpush1.msra.mxu0 0.0
        %712 = vmatprep.subr.mxu0 0.0
        %713 = vmatpush1.msra.mxu0 0.0
        %714 = vmatprep.subr.mxu0 0.0
        %715 = vmatpush1.msra.mxu0 0.0
        %716 = vmatprep.subr.mxu0 0.0
        %717 = vmatpush1.msra.mxu0 0.0
        %718 = vmatprep.subr.mxu0 0.0
        %719 = vmatpush1.msra.mxu0 0.0
        %720 = vmatprep.subr.mxu0 0.0
        %721 = vmatpush1.msra.mxu0 0.0
        %722 = vmatprep.subr.mxu0 0.0
        %723 = vmatpush1.msra.mxu0 0.0
        %724 = vmatprep.subr.mxu0 0.0
        %725 = vmatpush1.msra.mxu0 0.0
        %726 = vmatprep.subr.mxu0 0.0
        %727 = vmatpush1.msra.mxu0 0.0
        %728 = vmatprep.subr.mxu0 0.0
        %729 = vmatpush1.msra.mxu0 0.0
        %730 = vmatprep.subr.mxu0 0.0
        %731 = vmatpush1.msra.mxu0 0.0
        %732 = vmatprep.subr.mxu0 0.0
        %733 = vmatpush1.msra.mxu0 0.0
        %734 = vmatprep.subr.mxu0 0.0
        %735 = vmatpush1.msra.mxu0 0.0
        %736 = vmatprep.subr.mxu0 0.0
        %737 = vmatpush1.msra.mxu0 0.0
        %738 = vmatprep.subr.mxu0 0.0
        %739 = vmatpush1.msra.mxu0 0.0
        %740 = vmatprep.mubr.f32.mxu0 0.0
        %741 = vmatmul.mubr.f32.gmra.mrb[0].mxu0 %v371
        %v742 = vpop.f32.mrb[0].mxu0
        %v743 = vadd.f32 0.0, %v742
        %v744 = vpop.f32.mrb[0].mxu0
        %745 = vmatprep.mubr.f32.mxu0 0.0
        %746 = vmatmul.mubr.f32.gmra.mrb[0].mxu0 %v374
        %v747 = vpop.f32.mrb[0].mxu0
        %v748 = vadd.f32 0.0, %v747
        %v749 = vpop.f32.mrb[0].mxu0
        %750 = vdwg.mxu0
        %751 = vmatprep.subr.mxu0 0.0
        %752 = vmatpush1.msra.mxu0 %v317
        %753 = vmatprep.subr.mxu0 0.0
        %754 = vmatpush1.msra.mxu0 %v318
        %755 = vmatprep.subr.mxu0 0.0
        %756 = vmatpush1.msra.mxu0 %v319
        %757 = vmatprep.subr.mxu0 0.0
        %758 = vmatpush1.msra.mxu0 %v320
        %759 = vmatprep.subr.mxu0 0.0
        %760 = vmatpush1.msra.mxu0 0.0
        %761 = vmatprep.subr.mxu0 0.0
        %762 = vmatpush1.msra.mxu0 0.0
        %763 = vmatprep.subr.mxu0 0.0
        %764 = vmatpush1.msra.mxu0 0.0
        %765 = vmatprep.subr.mxu0 0.0
        %766 = vmatpush1.msra.mxu0 0.0
        %767 = vmatprep.subr.mxu0 0.0
        %768 = vmatpush1.msra.mxu0 0.0
        %769 = vmatprep.subr.mxu0 0.0
        %770 = vmatpush1.msra.mxu0 0.0
        %771 = vmatprep.subr.mxu0 0.0
        %772 = vmatpush1.msra.mxu0 0.0
        %773 = vmatprep.subr.mxu0 0.0
        %774 = vmatpush1.msra.mxu0 0.0
        %775 = vmatprep.subr.mxu0 0.0
        %776 = vmatpush1.msra.mxu0 0.0
        %777 = vmatprep.subr.mxu0 0.0
        %778 = vmatpush1.msra.mxu0 0.0
        %779 = vmatprep.subr.mxu0 0.0
        %780 = vmatpush1.msra.mxu0 0.0
        %781 = vmatprep.subr.mxu0 0.0
        %782 = vmatpush1.msra.mxu0 0.0
        %783 = vmatprep.subr.mxu0 0.0
        %784 = vmatpush1.msra.mxu0 0.0
        %785 = vmatprep.subr.mxu0 0.0
        %786 = vmatpush1.msra.mxu0 0.0
        %787 = vmatprep.subr.mxu0 0.0
        %788 = vmatpush1.msra.mxu0 0.0
        %789 = vmatprep.subr.mxu0 0.0
        %790 = vmatpush1.msra.mxu0 0.0
        %791 = vmatprep.subr.mxu0 0.0
        %792 = vmatpush1.msra.mxu0 0.0
        %793 = vmatprep.subr.mxu0 0.0
        %794 = vmatpush1.msra.mxu0 0.0
        %795 = vmatprep.subr.mxu0 0.0
        %796 = vmatpush1.msra.mxu0 0.0
        %797 = vmatprep.subr.mxu0 0.0
        %798 = vmatpush1.msra.mxu0 0.0
        %799 = vmatprep.subr.mxu0 0.0
        %800 = vmatpush1.msra.mxu0 0.0
        %801 = vmatprep.subr.mxu0 0.0
        %802 = vmatpush1.msra.mxu0 0.0
        %803 = vmatprep.subr.mxu0 0.0
        %804 = vmatpush1.msra.mxu0 0.0
        %805 = vmatprep.subr.mxu0 0.0
        %806 = vmatpush1.msra.mxu0 0.0
        %807 = vmatprep.subr.mxu0 0.0
        %808 = vmatpush1.msra.mxu0 0.0
        %809 = vmatprep.subr.mxu0 0.0
        %810 = vmatpush1.msra.mxu0 0.0
        %811 = vmatprep.subr.mxu0 0.0
        %812 = vmatpush1.msra.mxu0 0.0
        %813 = vmatprep.subr.mxu0 0.0
        %814 = vmatpush1.msra.mxu0 0.0
        %815 = vmatprep.mubr.f32.mxu0 0.0
        %816 = vmatmul.mubr.f32.gmra.mrb[0].mxu0 %v371
        %v817 = vpop.f32.mrb[0].mxu0
        %v818 = vadd.f32 0.0, %v817
        %v819 = vpop.f32.mrb[0].mxu0
        %820 = vmatprep.mubr.f32.mxu0 0.0
        %821 = vmatmul.mubr.f32.gmra.mrb[0].mxu0 %v374
        %v822 = vpop.f32.mrb[0].mxu0
        %v823 = vadd.f32 0.0, %v822
        %v824 = vpop.f32.mrb[0].mxu0
        %825 = vdwg.mxu0
        %826 = vmatprep.subr.mxu0 0.0
        %827 = vmatpush1.msra.mxu0 %v321
        %828 = vmatprep.subr.mxu0 0.0
        %829 = vmatpush1.msra.mxu0 %v322
        %830 = vmatprep.subr.mxu0 0.0
        %831 = vmatpush1.msra.mxu0 %v323
        %832 = vmatprep.subr.mxu0 0.0
        %833 = vmatpush1.msra.mxu0 %v324
        %834 = vmatprep.subr.mxu0 0.0
        %835 = vmatpush1.msra.mxu0 0.0
        %836 = vmatprep.subr.mxu0 0.0
        %837 = vmatpush1.msra.mxu0 0.0
        %838 = vmatprep.subr.mxu0 0.0
        %839 = vmatpush1.msra.mxu0 0.0
        %840 = vmatprep.subr.mxu0 0.0
        %841 = vmatpush1.msra.mxu0 0.0
        %842 = vmatprep.subr.mxu0 0.0
        %843 = vmatpush1.msra.mxu0 0.0
        %844 = vmatprep.subr.mxu0 0.0
        %845 = vmatpush1.msra.mxu0 0.0
        %846 = vmatprep.subr.mxu0 0.0
        %847 = vmatpush1.msra.mxu0 0.0
        %848 = vmatprep.subr.mxu0 0.0
        %849 = vmatpush1.msra.mxu0 0.0
        %850 = vmatprep.subr.mxu0 0.0
        %851 = vmatpush1.msra.mxu0 0.0
        %852 = vmatprep.subr.mxu0 0.0
        %853 = vmatpush1.msra.mxu0 0.0
        %854 = vmatprep.subr.mxu0 0.0
        %855 = vmatpush1.msra.mxu0 0.0
        %856 = vmatprep.subr.mxu0 0.0
        %857 = vmatpush1.msra.mxu0 0.0
        %858 = vmatprep.subr.mxu0 0.0
        %859 = vmatpush1.msra.mxu0 0.0
        %860 = vmatprep.subr.mxu0 0.0
        %861 = vmatpush1.msra.mxu0 0.0
        %862 = vmatprep.subr.mxu0 0.0
        %863 = vmatpush1.msra.mxu0 0.0
        %864 = vmatprep.subr.mxu0 0.0
        %865 = vmatpush1.msra.mxu0 0.0
        %866 = vmatprep.subr.mxu0 0.0
        %867 = vmatpush1.msra.mxu0 0.0
        %868 = vmatprep.subr.mxu0 0.0
        %869 = vmatpush1.msra.mxu0 0.0
        %870 = vmatprep.subr.mxu0 0.0
        %871 = vmatpush1.msra.mxu0 0.0
        %872 = vmatprep.subr.mxu0 0.0
        %873 = vmatpush1.msra.mxu0 0.0
        %874 = vmatprep.subr.mxu0 0.0
        %875 = vmatpush1.msra.mxu0 0.0
        %876 = vmatprep.subr.mxu0 0.0
        %877 = vmatpush1.msra.mxu0 0.0
        %878 = vmatprep.subr.mxu0 0.0
        %879 = vmatpush1.msra.mxu0 0.0
        %880 = vmatprep.subr.mxu0 0.0
        %881 = vmatpush1.msra.mxu0 0.0
        %882 = vmatprep.subr.mxu0 0.0
        %883 = vmatpush1.msra.mxu0 0.0
        %884 = vmatprep.subr.mxu0 0.0
        %885 = vmatpush1.msra.mxu0 0.0
        %886 = vmatprep.subr.mxu0 0.0
        %887 = vmatpush1.msra.mxu0 0.0
        %888 = vmatprep.subr.mxu0 0.0
        %889 = vmatpush1.msra.mxu0 0.0
        %890 = vmatprep.mubr.f32.mxu0 0.0
        %891 = vmatmul.mubr.f32.gmra.mrb[0].mxu0 %v371
        %v892 = vpop.f32.mrb[0].mxu0
        %v893 = vadd.f32 0.0, %v892
        %v894 = vpop.f32.mrb[0].mxu0
        %895 = vmatprep.mubr.f32.mxu0 0.0
        %896 = vmatmul.mubr.f32.gmra.mrb[0].mxu0 %v374
        %v897 = vpop.f32.mrb[0].mxu0
        %v898 = vadd.f32 0.0, %v897
        %v899 = vpop.f32.mrb[0].mxu0
        %900 = vdwg.mxu0
        %901 = vmatprep.subr.mxu0 0.0
        %902 = vmatpush1.msra.mxu0 %v325
        %903 = vmatprep.subr.mxu0 0.0
        %904 = vmatpush1.msra.mxu0 %v326
        %905 = vmatprep.subr.mxu0 0.0
        %906 = vmatpush1.msra.mxu0 %v327
        %907 = vmatprep.subr.mxu0 0.0
        %908 = vmatpush1.msra.mxu0 %v328
        %909 = vmatprep.subr.mxu0 0.0
        %910 = vmatpush1.msra.mxu0 0.0
        %911 = vmatprep.subr.mxu0 0.0
        %912 = vmatpush1.msra.mxu0 0.0
        %913 = vmatprep.subr.mxu0 0.0
        %914 = vmatpush1.msra.mxu0 0.0
        %915 = vmatprep.subr.mxu0 0.0
        %916 = vmatpush1.msra.mxu0 0.0
        %917 = vmatprep.subr.mxu0 0.0
        %918 = vmatpush1.msra.mxu0 0.0
        %919 = vmatprep.subr.mxu0 0.0
        %920 = vmatpush1.msra.mxu0 0.0
        %921 = vmatprep.subr.mxu0 0.0
        %922 = vmatpush1.msra.mxu0 0.0
        %923 = vmatprep.subr.mxu0 0.0
        %924 = vmatpush1.msra.mxu0 0.0
        %925 = vmatprep.subr.mxu0 0.0
        %926 = vmatpush1.msra.mxu0 0.0
        %927 = vmatprep.subr.mxu0 0.0
        %928 = vmatpush1.msra.mxu0 0.0
        %929 = vmatprep.subr.mxu0 0.0
        %930 = vmatpush1.msra.mxu0 0.0
        %931 = vmatprep.subr.mxu0 0.0
        %932 = vmatpush1.msra.mxu0 0.0
        %933 = vmatprep.subr.mxu0 0.0
        %934 = vmatpush1.msra.mxu0 0.0
        %935 = vmatprep.subr.mxu0 0.0
        %936 = vmatpush1.msra.mxu0 0.0
        %937 = vmatprep.subr.mxu0 0.0
        %938 = vmatpush1.msra.mxu0 0.0
        %939 = vmatprep.subr.mxu0 0.0
        %940 = vmatpush1.msra.mxu0 0.0
        %941 = vmatprep.subr.mxu0 0.0
        %942 = vmatpush1.msra.mxu0 0.0
        %943 = vmatprep.subr.mxu0 0.0
        %944 = vmatpush1.msra.mxu0 0.0
        %945 = vmatprep.subr.mxu0 0.0
        %946 = vmatpush1.msra.mxu0 0.0
        %947 = vmatprep.subr.mxu0 0.0
        %948 = vmatpush1.msra.mxu0 0.0
        %949 = vmatprep.subr.mxu0 0.0
        %950 = vmatpush1.msra.mxu0 0.0
        %951 = vmatprep.subr.mxu0 0.0
        %952 = vmatpush1.msra.mxu0 0.0
        %953 = vmatprep.subr.mxu0 0.0
        %954 = vmatpush1.msra.mxu0 0.0
        %955 = vmatprep.subr.mxu0 0.0
        %956 = vmatpush1.msra.mxu0 0.0
        %957 = vmatprep.subr.mxu0 0.0
        %958 = vmatpush1.msra.mxu0 0.0
        %959 = vmatprep.subr.mxu0 0.0
        %960 = vmatpush1.msra.mxu0 0.0
        %961 = vmatprep.subr.mxu0 0.0
        %962 = vmatpush1.msra.mxu0 0.0
        %963 = vmatprep.subr.mxu0 0.0
        %964 = vmatpush1.msra.mxu0 0.0
        %965 = vmatprep.mubr.f32.mxu0 0.0
        %966 = vmatmul.mubr.f32.gmra.mrb[0].mxu0 %v371
        %v967 = vpop.f32.mrb[0].mxu0
        %v968 = vadd.f32 0.0, %v967
        %v969 = vpop.f32.mrb[0].mxu0
        %970 = vmatprep.mubr.f32.mxu0 0.0
        %971 = vmatmul.mubr.f32.gmra.mrb[0].mxu0 %v374
        %v972 = vpop.f32.mrb[0].mxu0
        %v973 = vadd.f32 0.0, %v972
        %v974 = vpop.f32.mrb[0].mxu0
        %975 = vdwg.mxu0
        %vm976 = vcmask 130048
        %v978 = vsel %vm976, %v296, 0
        %980 = vmatprep.subr.mxu0 0.0
        %981 = vmatpush1.msra.mxu0 %v329
        %982 = vmatprep.subr.mxu0 0.0
        %983 = vmatpush1.msra.mxu0 %v330
        %984 = vmatprep.subr.mxu0 0.0
        %985 = vmatpush1.msra.mxu0 0.0
        %986 = vmatprep.subr.mxu0 0.0
        %987 = vmatpush1.msra.mxu0 0.0
        %988 = vmatprep.subr.mxu0 0.0
        %989 = vmatpush1.msra.mxu0 0.0
        %990 = vmatprep.subr.mxu0 0.0
        %991 = vmatpush1.msra.mxu0 0.0
        %992 = vmatprep.subr.mxu0 0.0
        %993 = vmatpush1.msra.mxu0 0.0
        %994 = vmatprep.subr.mxu0 0.0
        %995 = vmatpush1.msra.mxu0 0.0
        %996 = vmatprep.subr.mxu0 0.0
        %997 = vmatpush1.msra.mxu0 0.0
        %998 = vmatprep.subr.mxu0 0.0
        %999 = vmatpush1.msra.mxu0 0.0
        %1000 = vmatprep.subr.mxu0 0.0
        %1001 = vmatpush1.msra.mxu0 0.0
        %1002 = vmatprep.subr.mxu0 0.0
        %1003 = vmatpush1.msra.mxu0 0.0
        %1004 = vmatprep.subr.mxu0 0.0
        %1005 = vmatpush1.msra.mxu0 0.0
        %1006 = vmatprep.subr.mxu0 0.0
        %1007 = vmatpush1.msra.mxu0 0.0
        %1008 = vmatprep.subr.mxu0 0.0
        %1009 = vmatpush1.msra.mxu0 0.0
        %1010 = vmatprep.subr.mxu0 0.0
        %1011 = vmatpush1.msra.mxu0 0.0
        %1012 = vmatprep.subr.mxu0 0.0
        %1013 = vmatpush1.msra.mxu0 0.0
        %1014 = vmatprep.subr.mxu0 0.0
        %1015 = vmatpush1.msra.mxu0 0.0
        %1016 = vmatprep.subr.mxu0 0.0
        %1017 = vmatpush1.msra.mxu0 0.0
        %1018 = vmatprep.subr.mxu0 0.0
        %1019 = vmatpush1.msra.mxu0 0.0
        %1020 = vmatprep.subr.mxu0 0.0
        %1021 = vmatpush1.msra.mxu0 0.0
        %1022 = vmatprep.subr.mxu0 0.0
        %1023 = vmatpush1.msra.mxu0 0.0
        %1024 = vmatprep.subr.mxu0 0.0
        %1025 = vmatpush1.msra.mxu0 0.0
        %1026 = vmatprep.subr.mxu0 0.0
        %1027 = vmatpush1.msra.mxu0 0.0
        %1028 = vmatprep.subr.mxu0 0.0
        %1029 = vmatpush1.msra.mxu0 0.0
        %1030 = vmatprep.subr.mxu0 0.0
        %1031 = vmatpush1.msra.mxu0 0.0
        %1032 = vmatprep.subr.mxu0 0.0
        %1033 = vmatpush1.msra.mxu0 0.0
        %1034 = vmatprep.subr.mxu0 0.0
        %1035 = vmatpush1.msra.mxu0 0.0
        %1036 = vmatprep.subr.mxu0 0.0
        %1037 = vmatpush1.msra.mxu0 0.0
        %1038 = vmatprep.subr.mxu0 0.0
        %1039 = vmatpush1.msra.mxu0 0.0
        %1040 = vmatprep.subr.mxu0 0.0
        %1041 = vmatpush1.msra.mxu0 0.0
        %1042 = vmatprep.subr.mxu0 0.0
        %1043 = vmatpush1.msra.mxu0 0.0
        %1044 = vmatprep.mubr.f32.mxu0 0.0
        %1045 = vmatmul.mubr.f32.gmra.mrb[0].mxu0 %v978
        %v1046 = vpop.f32.mrb[0].mxu0
        %v1047 = vadd.f32 0.0, %v1046
        %v1048 = vpop.f32.mrb[0].mxu0
        %1049 = vdwg.mxu0
        %1050 = vmatprep.subr.mxu0 0.0
        %1051 = vmatpush1.msra.mxu0 %v331
        %1052 = vmatprep.subr.mxu0 0.0
        %1053 = vmatpush1.msra.mxu0 %v332
        %1054 = vmatprep.subr.mxu0 0.0
        %1055 = vmatpush1.msra.mxu0 0.0
        %1056 = vmatprep.subr.mxu0 0.0
        %1057 = vmatpush1.msra.mxu0 0.0
        %1058 = vmatprep.subr.mxu0 0.0
        %1059 = vmatpush1.msra.mxu0 0.0
        %1060 = vmatprep.subr.mxu0 0.0
        %1061 = vmatpush1.msra.mxu0 0.0
        %1062 = vmatprep.subr.mxu0 0.0
        %1063 = vmatpush1.msra.mxu0 0.0
        %1064 = vmatprep.subr.mxu0 0.0
        %1065 = vmatpush1.msra.mxu0 0.0
        %1066 = vmatprep.subr.mxu0 0.0
        %1067 = vmatpush1.msra.mxu0 0.0
        %1068 = vmatprep.subr.mxu0 0.0
        %1069 = vmatpush1.msra.mxu0 0.0
        %1070 = vmatprep.subr.mxu0 0.0
        %1071 = vmatpush1.msra.mxu0 0.0
        %1072 = vmatprep.subr.mxu0 0.0
        %1073 = vmatpush1.msra.mxu0 0.0
        %1074 = vmatprep.subr.mxu0 0.0
        %1075 = vmatpush1.msra.mxu0 0.0
        %1076 = vmatprep.subr.mxu0 0.0
        %1077 = vmatpush1.msra.mxu0 0.0
        %1078 = vmatprep.subr.mxu0 0.0
        %1079 = vmatpush1.msra.mxu0 0.0
        %1080 = vmatprep.subr.mxu0 0.0
        %1081 = vmatpush1.msra.mxu0 0.0
        %1082 = vmatprep.subr.mxu0 0.0
        %1083 = vmatpush1.msra.mxu0 0.0
        %1084 = vmatprep.subr.mxu0 0.0
        %1085 = vmatpush1.msra.mxu0 0.0
        %1086 = vmatprep.subr.mxu0 0.0
        %1087 = vmatpush1.msra.mxu0 0.0
        %1088 = vmatprep.subr.mxu0 0.0
        %1089 = vmatpush1.msra.mxu0 0.0
        %1090 = vmatprep.subr.mxu0 0.0
        %1091 = vmatpush1.msra.mxu0 0.0
        %1092 = vmatprep.subr.mxu0 0.0
        %1093 = vmatpush1.msra.mxu0 0.0
        %1094 = vmatprep.subr.mxu0 0.0
        %1095 = vmatpush1.msra.mxu0 0.0
        %1096 = vmatprep.subr.mxu0 0.0
        %1097 = vmatpush1.msra.mxu0 0.0
        %1098 = vmatprep.subr.mxu0 0.0
        %1099 = vmatpush1.msra.mxu0 0.0
        %1100 = vmatprep.subr.mxu0 0.0
        %1101 = vmatpush1.msra.mxu0 0.0
        %1102 = vmatprep.subr.mxu0 0.0
        %1103 = vmatpush1.msra.mxu0 0.0
        %1104 = vmatprep.subr.mxu0 0.0
        %1105 = vmatpush1.msra.mxu0 0.0
        %1106 = vmatprep.subr.mxu0 0.0
        %1107 = vmatpush1.msra.mxu0 0.0
        %1108 = vmatprep.subr.mxu0 0.0
        %1109 = vmatpush1.msra.mxu0 0.0
        %1110 = vmatprep.subr.mxu0 0.0
        %1111 = vmatpush1.msra.mxu0 0.0
        %1112 = vmatprep.subr.mxu0 0.0
        %1113 = vmatpush1.msra.mxu0 0.0
        %1114 = vmatprep.mubr.f32.mxu0 0.0
        %1115 = vmatmul.mubr.f32.gmra.mrb[0].mxu0 %v978
        %v1116 = vpop.f32.mrb[0].mxu0
        %v1117 = vadd.f32 0.0, %v1116
        %v1118 = vpop.f32.mrb[0].mxu0
        %1119 = vdwg.mxu0
        %1120 = vmatprep.subr.mxu0 0.0
        %1121 = vmatpush1.msra.mxu0 %v333
        %1122 = vmatprep.subr.mxu0 0.0
        %1123 = vmatpush1.msra.mxu0 %v334
        %1124 = vmatprep.subr.mxu0 0.0
        %1125 = vmatpush1.msra.mxu0 0.0
        %1126 = vmatprep.subr.mxu0 0.0
        %1127 = vmatpush1.msra.mxu0 0.0
        %1128 = vmatprep.subr.mxu0 0.0
        %1129 = vmatpush1.msra.mxu0 0.0
        %1130 = vmatprep.subr.mxu0 0.0
        %1131 = vmatpush1.msra.mxu0 0.0
        %1132 = vmatprep.subr.mxu0 0.0
        %1133 = vmatpush1.msra.mxu0 0.0
        %1134 = vmatprep.subr.mxu0 0.0
        %1135 = vmatpush1.msra.mxu0 0.0
        %1136 = vmatprep.subr.mxu0 0.0
        %1137 = vmatpush1.msra.mxu0 0.0
        %1138 = vmatprep.subr.mxu0 0.0
        %1139 = vmatpush1.msra.mxu0 0.0
        %1140 = vmatprep.subr.mxu0 0.0
        %1141 = vmatpush1.msra.mxu0 0.0
        %1142 = vmatprep.subr.mxu0 0.0
        %1143 = vmatpush1.msra.mxu0 0.0
        %1144 = vmatprep.subr.mxu0 0.0
        %1145 = vmatpush1.msra.mxu0 0.0
        %1146 = vmatprep.subr.mxu0 0.0
        %1147 = vmatpush1.msra.mxu0 0.0
        %1148 = vmatprep.subr.mxu0 0.0
        %1149 = vmatpush1.msra.mxu0 0.0
        %1150 = vmatprep.subr.mxu0 0.0
        %1151 = vmatpush1.msra.mxu0 0.0
        %1152 = vmatprep.subr.mxu0 0.0
        %1153 = vmatpush1.msra.mxu0 0.0
        %1154 = vmatprep.subr.mxu0 0.0
        %1155 = vmatpush1.msra.mxu0 0.0
        %1156 = vmatprep.subr.mxu0 0.0
        %1157 = vmatpush1.msra.mxu0 0.0
        %1158 = vmatprep.subr.mxu0 0.0
        %1159 = vmatpush1.msra.mxu0 0.0
        %1160 = vmatprep.subr.mxu0 0.0
        %1161 = vmatpush1.msra.mxu0 0.0
        %1162 = vmatprep.subr.mxu0 0.0
        %1163 = vmatpush1.msra.mxu0 0.0
        %1164 = vmatprep.subr.mxu0 0.0
        %1165 = vmatpush1.msra.mxu0 0.0
        %1166 = vmatprep.subr.mxu0 0.0
        %1167 = vmatpush1.msra.mxu0 0.0
        %1168 = vmatprep.subr.mxu0 0.0
        %1169 = vmatpush1.msra.mxu0 0.0
        %1170 = vmatprep.subr.mxu0 0.0
        %1171 = vmatpush1.msra.mxu0 0.0
        %1172 = vmatprep.subr.mxu0 0.0
        %1173 = vmatpush1.msra.mxu0 0.0
        %1174 = vmatprep.subr.mxu0 0.0
        %1175 = vmatpush1.msra.mxu0 0.0
        %1176 = vmatprep.subr.mxu0 0.0
        %1177 = vmatpush1.msra.mxu0 0.0
        %1178 = vmatprep.subr.mxu0 0.0
        %1179 = vmatpush1.msra.mxu0 0.0
        %1180 = vmatprep.subr.mxu0 0.0
        %1181 = vmatpush1.msra.mxu0 0.0
        %1182 = vmatprep.subr.mxu0 0.0
        %1183 = vmatpush1.msra.mxu0 0.0
        %1184 = vmatprep.mubr.f32.mxu0 0.0
        %1185 = vmatmul.mubr.f32.gmra.mrb[0].mxu0 %v978
        %v1186 = vpop.f32.mrb[0].mxu0
        %v1187 = vadd.f32 0.0, %v1186
        %v1188 = vpop.f32.mrb[0].mxu0
        %1189 = vdwg.mxu0
        %1190 = vmatprep.subr.mxu0 0.0
        %1191 = vmatpush1.msra.mxu0 %v335
        %1192 = vmatprep.subr.mxu0 0.0
        %1193 = vmatpush1.msra.mxu0 %v336
        %1194 = vmatprep.subr.mxu0 0.0
        %1195 = vmatpush1.msra.mxu0 0.0
        %1196 = vmatprep.subr.mxu0 0.0
        %1197 = vmatpush1.msra.mxu0 0.0
        %1198 = vmatprep.subr.mxu0 0.0
        %1199 = vmatpush1.msra.mxu0 0.0
        %1200 = vmatprep.subr.mxu0 0.0
        %1201 = vmatpush1.msra.mxu0 0.0
        %1202 = vmatprep.subr.mxu0 0.0
        %1203 = vmatpush1.msra.mxu0 0.0
        %1204 = vmatprep.subr.mxu0 0.0
        %1205 = vmatpush1.msra.mxu0 0.0
        %1206 = vmatprep.subr.mxu0 0.0
        %1207 = vmatpush1.msra.mxu0 0.0
        %1208 = vmatprep.subr.mxu0 0.0
        %1209 = vmatpush1.msra.mxu0 0.0
        %1210 = vmatprep.subr.mxu0 0.0
        %1211 = vmatpush1.msra.mxu0 0.0
        %1212 = vmatprep.subr.mxu0 0.0
        %1213 = vmatpush1.msra.mxu0 0.0
        %1214 = vmatprep.subr.mxu0 0.0
        %1215 = vmatpush1.msra.mxu0 0.0
        %1216 = vmatprep.subr.mxu0 0.0
        %1217 = vmatpush1.msra.mxu0 0.0
        %1218 = vmatprep.subr.mxu0 0.0
        %1219 = vmatpush1.msra.mxu0 0.0
        %1220 = vmatprep.subr.mxu0 0.0
        %1221 = vmatpush1.msra.mxu0 0.0
        %1222 = vmatprep.subr.mxu0 0.0
        %1223 = vmatpush1.msra.mxu0 0.0
        %1224 = vmatprep.subr.mxu0 0.0
        %1225 = vmatpush1.msra.mxu0 0.0
        %1226 = vmatprep.subr.mxu0 0.0
        %1227 = vmatpush1.msra.mxu0 0.0
        %1228 = vmatprep.subr.mxu0 0.0
        %1229 = vmatpush1.msra.mxu0 0.0
        %1230 = vmatprep.subr.mxu0 0.0
        %1231 = vmatpush1.msra.mxu0 0.0
        %1232 = vmatprep.subr.mxu0 0.0
        %1233 = vmatpush1.msra.mxu0 0.0
        %1234 = vmatprep.subr.mxu0 0.0
        %1235 = vmatpush1.msra.mxu0 0.0
        %1236 = vmatprep.subr.mxu0 0.0
        %1237 = vmatpush1.msra.mxu0 0.0
        %1238 = vmatprep.subr.mxu0 0.0
        %1239 = vmatpush1.msra.mxu0 0.0
        %1240 = vmatprep.subr.mxu0 0.0
        %1241 = vmatpush1.msra.mxu0 0.0
        %1242 = vmatprep.subr.mxu0 0.0
        %1243 = vmatpush1.msra.mxu0 0.0
        %1244 = vmatprep.subr.mxu0 0.0
        %1245 = vmatpush1.msra.mxu0 0.0
        %1246 = vmatprep.subr.mxu0 0.0
        %1247 = vmatpush1.msra.mxu0 0.0
        %1248 = vmatprep.subr.mxu0 0.0
        %1249 = vmatpush1.msra.mxu0 0.0
        %1250 = vmatprep.subr.mxu0 0.0
        %1251 = vmatpush1.msra.mxu0 0.0
        %1252 = vmatprep.subr.mxu0 0.0
        %1253 = vmatpush1.msra.mxu0 0.0
        %1254 = vmatprep.mubr.f32.mxu0 0.0
        %1255 = vmatmul.mubr.f32.gmra.mrb[0].mxu0 %v978
        %v1256 = vpop.f32.mrb[0].mxu0
        %v1257 = vadd.f32 0.0, %v1256
        %v1258 = vpop.f32.mrb[0].mxu0
        %1259 = vdwg.mxu0
        %1260 = vmatprep.subr.mxu0 0.0
        %1261 = vmatpush1.msra.mxu0 %v337
        %1262 = vmatprep.subr.mxu0 0.0
        %1263 = vmatpush1.msra.mxu0 %v338
        %1264 = vmatprep.subr.mxu0 0.0
        %1265 = vmatpush1.msra.mxu0 0.0
        %1266 = vmatprep.subr.mxu0 0.0
        %1267 = vmatpush1.msra.mxu0 0.0
        %1268 = vmatprep.subr.mxu0 0.0
        %1269 = vmatpush1.msra.mxu0 0.0
        %1270 = vmatprep.subr.mxu0 0.0
        %1271 = vmatpush1.msra.mxu0 0.0
        %1272 = vmatprep.subr.mxu0 0.0
        %1273 = vmatpush1.msra.mxu0 0.0
        %1274 = vmatprep.subr.mxu0 0.0
        %1275 = vmatpush1.msra.mxu0 0.0
        %1276 = vmatprep.subr.mxu0 0.0
        %1277 = vmatpush1.msra.mxu0 0.0
        %1278 = vmatprep.subr.mxu0 0.0
        %1279 = vmatpush1.msra.mxu0 0.0
        %1280 = vmatprep.subr.mxu0 0.0
        %1281 = vmatpush1.msra.mxu0 0.0
        %1282 = vmatprep.subr.mxu0 0.0
        %1283 = vmatpush1.msra.mxu0 0.0
        %1284 = vmatprep.subr.mxu0 0.0
        %1285 = vmatpush1.msra.mxu0 0.0
        %1286 = vmatprep.subr.mxu0 0.0
        %1287 = vmatpush1.msra.mxu0 0.0
        %1288 = vmatprep.subr.mxu0 0.0
        %1289 = vmatpush1.msra.mxu0 0.0
        %1290 = vmatprep.subr.mxu0 0.0
        %1291 = vmatpush1.msra.mxu0 0.0
        %1292 = vmatprep.subr.mxu0 0.0
        %1293 = vmatpush1.msra.mxu0 0.0
        %1294 = vmatprep.subr.mxu0 0.0
        %1295 = vmatpush1.msra.mxu0 0.0
        %1296 = vmatprep.subr.mxu0 0.0
        %1297 = vmatpush1.msra.mxu0 0.0
        %1298 = vmatprep.subr.mxu0 0.0
        %1299 = vmatpush1.msra.mxu0 0.0
        %1300 = vmatprep.subr.mxu0 0.0
        %1301 = vmatpush1.msra.mxu0 0.0
        %1302 = vmatprep.subr.mxu0 0.0
        %1303 = vmatpush1.msra.mxu0 0.0
        %1304 = vmatprep.subr.mxu0 0.0
        %1305 = vmatpush1.msra.mxu0 0.0
        %1306 = vmatprep.subr.mxu0 0.0
        %1307 = vmatpush1.msra.mxu0 0.0
        %1308 = vmatprep.subr.mxu0 0.0
        %1309 = vmatpush1.msra.mxu0 0.0
        %1310 = vmatprep.subr.mxu0 0.0
        %1311 = vmatpush1.msra.mxu0 0.0
        %1312 = vmatprep.subr.mxu0 0.0
        %1313 = vmatpush1.msra.mxu0 0.0
        %1314 = vmatprep.subr.mxu0 0.0
        %1315 = vmatpush1.msra.mxu0 0.0
        %1316 = vmatprep.subr.mxu0 0.0
        %1317 = vmatpush1.msra.mxu0 0.0
        %1318 = vmatprep.subr.mxu0 0.0
        %1319 = vmatpush1.msra.mxu0 0.0
        %1320 = vmatprep.subr.mxu0 0.0
        %1321 = vmatpush1.msra.mxu0 0.0
        %1322 = vmatprep.subr.mxu0 0.0
        %1323 = vmatpush1.msra.mxu0 0.0
        %1324 = vmatprep.mubr.f32.mxu0 0.0
        %1325 = vmatmul.mubr.f32.gmra.mrb[0].mxu0 %v978
        %v1326 = vpop.f32.mrb[0].mxu0
        %v1327 = vadd.f32 0.0, %v1326
        %v1328 = vpop.f32.mrb[0].mxu0
        %1329 = vdwg.mxu0
        %1330 = vmatprep.subr.mxu0 0.0
        %1331 = vmatpush1.msra.mxu0 %v339
        %1332 = vmatprep.subr.mxu0 0.0
        %1333 = vmatpush1.msra.mxu0 %v340
        %1334 = vmatprep.subr.mxu0 0.0
        %1335 = vmatpush1.msra.mxu0 0.0
        %1336 = vmatprep.subr.mxu0 0.0
        %1337 = vmatpush1.msra.mxu0 0.0
        %1338 = vmatprep.subr.mxu0 0.0
        %1339 = vmatpush1.msra.mxu0 0.0
        %1340 = vmatprep.subr.mxu0 0.0
        %1341 = vmatpush1.msra.mxu0 0.0
        %1342 = vmatprep.subr.mxu0 0.0
        %1343 = vmatpush1.msra.mxu0 0.0
        %1344 = vmatprep.subr.mxu0 0.0
        %1345 = vmatpush1.msra.mxu0 0.0
        %1346 = vmatprep.subr.mxu0 0.0
        %1347 = vmatpush1.msra.mxu0 0.0
        %1348 = vmatprep.subr.mxu0 0.0
        %1349 = vmatpush1.msra.mxu0 0.0
        %1350 = vmatprep.subr.mxu0 0.0
        %1351 = vmatpush1.msra.mxu0 0.0
        %1352 = vmatprep.subr.mxu0 0.0
        %1353 = vmatpush1.msra.mxu0 0.0
        %1354 = vmatprep.subr.mxu0 0.0
        %1355 = vmatpush1.msra.mxu0 0.0
        %1356 = vmatprep.subr.mxu0 0.0
        %1357 = vmatpush1.msra.mxu0 0.0
        %1358 = vmatprep.subr.mxu0 0.0
        %1359 = vmatpush1.msra.mxu0 0.0
        %1360 = vmatprep.subr.mxu0 0.0
        %1361 = vmatpush1.msra.mxu0 0.0
        %1362 = vmatprep.subr.mxu0 0.0
        %1363 = vmatpush1.msra.mxu0 0.0
        %1364 = vmatprep.subr.mxu0 0.0
        %1365 = vmatpush1.msra.mxu0 0.0
        %1366 = vmatprep.subr.mxu0 0.0
        %1367 = vmatpush1.msra.mxu0 0.0
        %1368 = vmatprep.subr.mxu0 0.0
        %1369 = vmatpush1.msra.mxu0 0.0
        %1370 = vmatprep.subr.mxu0 0.0
        %1371 = vmatpush1.msra.mxu0 0.0
        %1372 = vmatprep.subr.mxu0 0.0
        %1373 = vmatpush1.msra.mxu0 0.0
        %1374 = vmatprep.subr.mxu0 0.0
        %1375 = vmatpush1.msra.mxu0 0.0
        %1376 = vmatprep.subr.mxu0 0.0
        %1377 = vmatpush1.msra.mxu0 0.0
        %1378 = vmatprep.subr.mxu0 0.0
        %1379 = vmatpush1.msra.mxu0 0.0
        %1380 = vmatprep.subr.mxu0 0.0
        %1381 = vmatpush1.msra.mxu0 0.0
        %1382 = vmatprep.subr.mxu0 0.0
        %1383 = vmatpush1.msra.mxu0 0.0
        %1384 = vmatprep.subr.mxu0 0.0
        %1385 = vmatpush1.msra.mxu0 0.0
        %1386 = vmatprep.subr.mxu0 0.0
        %1387 = vmatpush1.msra.mxu0 0.0
        %1388 = vmatprep.subr.mxu0 0.0
        %1389 = vmatpush1.msra.mxu0 0.0
        %1390 = vmatprep.subr.mxu0 0.0
        %1391 = vmatpush1.msra.mxu0 0.0
        %1392 = vmatprep.subr.mxu0 0.0
        %1393 = vmatpush1.msra.mxu0 0.0
        %1394 = vmatprep.mubr.f32.mxu0 0.0
        %1395 = vmatmul.mubr.f32.gmra.mrb[0].mxu0 %v978
        %v1396 = vpop.f32.mrb[0].mxu0
        %v1397 = vadd.f32 0.0, %v1396
        %v1398 = vpop.f32.mrb[0].mxu0
        %1399 = vdwg.mxu0
        %1400 = vmatprep.subr.mxu0 0.0
        %1401 = vmatpush1.msra.mxu0 %v341
        %1402 = vmatprep.subr.mxu0 0.0
        %1403 = vmatpush1.msra.mxu0 %v342
        %1404 = vmatprep.subr.mxu0 0.0
        %1405 = vmatpush1.msra.mxu0 0.0
        %1406 = vmatprep.subr.mxu0 0.0
        %1407 = vmatpush1.msra.mxu0 0.0
        %1408 = vmatprep.subr.mxu0 0.0
        %1409 = vmatpush1.msra.mxu0 0.0
        %1410 = vmatprep.subr.mxu0 0.0
        %1411 = vmatpush1.msra.mxu0 0.0
        %1412 = vmatprep.subr.mxu0 0.0
        %1413 = vmatpush1.msra.mxu0 0.0
        %1414 = vmatprep.subr.mxu0 0.0
        %1415 = vmatpush1.msra.mxu0 0.0
        %1416 = vmatprep.subr.mxu0 0.0
        %1417 = vmatpush1.msra.mxu0 0.0
        %1418 = vmatprep.subr.mxu0 0.0
        %1419 = vmatpush1.msra.mxu0 0.0
        %1420 = vmatprep.subr.mxu0 0.0
        %1421 = vmatpush1.msra.mxu0 0.0
        %1422 = vmatprep.subr.mxu0 0.0
        %1423 = vmatpush1.msra.mxu0 0.0
        %1424 = vmatprep.subr.mxu0 0.0
        %1425 = vmatpush1.msra.mxu0 0.0
        %1426 = vmatprep.subr.mxu0 0.0
        %1427 = vmatpush1.msra.mxu0 0.0
        %1428 = vmatprep.subr.mxu0 0.0
        %1429 = vmatpush1.msra.mxu0 0.0
        %1430 = vmatprep.subr.mxu0 0.0
        %1431 = vmatpush1.msra.mxu0 0.0
        %1432 = vmatprep.subr.mxu0 0.0
        %1433 = vmatpush1.msra.mxu0 0.0
        %1434 = vmatprep.subr.mxu0 0.0
        %1435 = vmatpush1.msra.mxu0 0.0
        %1436 = vmatprep.subr.mxu0 0.0
        %1437 = vmatpush1.msra.mxu0 0.0
        %1438 = vmatprep.subr.mxu0 0.0
        %1439 = vmatpush1.msra.mxu0 0.0
        %1440 = vmatprep.subr.mxu0 0.0
        %1441 = vmatpush1.msra.mxu0 0.0
        %1442 = vmatprep.subr.mxu0 0.0
        %1443 = vmatpush1.msra.mxu0 0.0
        %1444 = vmatprep.subr.mxu0 0.0
        %1445 = vmatpush1.msra.mxu0 0.0
        %1446 = vmatprep.subr.mxu0 0.0
        %1447 = vmatpush1.msra.mxu0 0.0
        %1448 = vmatprep.subr.mxu0 0.0
        %1449 = vmatpush1.msra.mxu0 0.0
        %1450 = vmatprep.subr.mxu0 0.0
        %1451 = vmatpush1.msra.mxu0 0.0
        %1452 = vmatprep.subr.mxu0 0.0
        %1453 = vmatpush1.msra.mxu0 0.0
        %1454 = vmatprep.subr.mxu0 0.0
        %1455 = vmatpush1.msra.mxu0 0.0
        %1456 = vmatprep.subr.mxu0 0.0
        %1457 = vmatpush1.msra.mxu0 0.0
        %1458 = vmatprep.subr.mxu0 0.0
        %1459 = vmatpush1.msra.mxu0 0.0
        %1460 = vmatprep.subr.mxu0 0.0
        %1461 = vmatpush1.msra.mxu0 0.0
        %1462 = vmatprep.subr.mxu0 0.0
        %1463 = vmatpush1.msra.mxu0 0.0
        %1464 = vmatprep.mubr.f32.mxu0 0.0
        %1465 = vmatmul.mubr.f32.gmra.mrb[0].mxu0 %v978
        %v1466 = vpop.f32.mrb[0].mxu0
        %v1467 = vadd.f32 0.0, %v1466
        %v1468 = vpop.f32.mrb[0].mxu0
        %1469 = vdwg.mxu0
        %1470 = vmatprep.subr.mxu0 0.0
        %1471 = vmatpush1.msra.mxu0 %v343
        %1472 = vmatprep.subr.mxu0 0.0
        %1473 = vmatpush1.msra.mxu0 %v344
        %1474 = vmatprep.subr.mxu0 0.0
        %1475 = vmatpush1.msra.mxu0 0.0
        %1476 = vmatprep.subr.mxu0 0.0
        %1477 = vmatpush1.msra.mxu0 0.0
        %1478 = vmatprep.subr.mxu0 0.0
        %1479 = vmatpush1.msra.mxu0 0.0
        %1480 = vmatprep.subr.mxu0 0.0
        %1481 = vmatpush1.msra.mxu0 0.0
        %1482 = vmatprep.subr.mxu0 0.0
        %1483 = vmatpush1.msra.mxu0 0.0
        %1484 = vmatprep.subr.mxu0 0.0
        %1485 = vmatpush1.msra.mxu0 0.0
        %1486 = vmatprep.subr.mxu0 0.0
        %1487 = vmatpush1.msra.mxu0 0.0
        %1488 = vmatprep.subr.mxu0 0.0
        %1489 = vmatpush1.msra.mxu0 0.0
        %1490 = vmatprep.subr.mxu0 0.0
        %1491 = vmatpush1.msra.mxu0 0.0
        %1492 = vmatprep.subr.mxu0 0.0
        %1493 = vmatpush1.msra.mxu0 0.0
        %1494 = vmatprep.subr.mxu0 0.0
        %1495 = vmatpush1.msra.mxu0 0.0
        %1496 = vmatprep.subr.mxu0 0.0
        %1497 = vmatpush1.msra.mxu0 0.0
        %1498 = vmatprep.subr.mxu0 0.0
        %1499 = vmatpush1.msra.mxu0 0.0
        %1500 = vmatprep.subr.mxu0 0.0
        %1501 = vmatpush1.msra.mxu0 0.0
        %1502 = vmatprep.subr.mxu0 0.0
        %1503 = vmatpush1.msra.mxu0 0.0
        %1504 = vmatprep.subr.mxu0 0.0
        %1505 = vmatpush1.msra.mxu0 0.0
        %1506 = vmatprep.subr.mxu0 0.0
        %1507 = vmatpush1.msra.mxu0 0.0
        %1508 = vmatprep.subr.mxu0 0.0
        %1509 = vmatpush1.msra.mxu0 0.0
        %1510 = vmatprep.subr.mxu0 0.0
        %1511 = vmatpush1.msra.mxu0 0.0
        %1512 = vmatprep.subr.mxu0 0.0
        %1513 = vmatpush1.msra.mxu0 0.0
        %1514 = vmatprep.subr.mxu0 0.0
        %1515 = vmatpush1.msra.mxu0 0.0
        %1516 = vmatprep.subr.mxu0 0.0
        %1517 = vmatpush1.msra.mxu0 0.0
        %1518 = vmatprep.subr.mxu0 0.0
        %1519 = vmatpush1.msra.mxu0 0.0
        %1520 = vmatprep.subr.mxu0 0.0
        %1521 = vmatpush1.msra.mxu0 0.0
        %1522 = vmatprep.subr.mxu0 0.0
        %1523 = vmatpush1.msra.mxu0 0.0
        %1524 = vmatprep.subr.mxu0 0.0
        %1525 = vmatpush1.msra.mxu0 0.0
        %1526 = vmatprep.subr.mxu0 0.0
        %1527 = vmatpush1.msra.mxu0 0.0
        %1528 = vmatprep.subr.mxu0 0.0
        %1529 = vmatpush1.msra.mxu0 0.0
        %1530 = vmatprep.subr.mxu0 0.0
        %1531 = vmatpush1.msra.mxu0 0.0
        %1532 = vmatprep.subr.mxu0 0.0
        %1533 = vmatpush1.msra.mxu0 0.0
        %1534 = vmatprep.mubr.f32.mxu0 0.0
        %1535 = vmatmul.mubr.f32.gmra.mrb[0].mxu0 %v978
        %v1536 = vpop.f32.mrb[0].mxu0
        %v1537 = vadd.f32 0.0, %v1536
        %v1538 = vpop.f32.mrb[0].mxu0
        %1539 = vdwg.mxu0
        %1540 = vmatprep.subr.mxu0 0.0
        %1541 = vmatpush1.msra.mxu0 %v345
        %1542 = vmatprep.subr.mxu0 0.0
        %1543 = vmatpush1.msra.mxu0 %v346
        %1544 = vmatprep.subr.mxu0 0.0
        %1545 = vmatpush1.msra.mxu0 0.0
        %1546 = vmatprep.subr.mxu0 0.0
        %1547 = vmatpush1.msra.mxu0 0.0
        %1548 = vmatprep.subr.mxu0 0.0
        %1549 = vmatpush1.msra.mxu0 0.0
        %1550 = vmatprep.subr.mxu0 0.0
        %1551 = vmatpush1.msra.mxu0 0.0
        %1552 = vmatprep.subr.mxu0 0.0
        %1553 = vmatpush1.msra.mxu0 0.0
        %1554 = vmatprep.subr.mxu0 0.0
        %1555 = vmatpush1.msra.mxu0 0.0
        %1556 = vmatprep.subr.mxu0 0.0
        %1557 = vmatpush1.msra.mxu0 0.0
        %1558 = vmatprep.subr.mxu0 0.0
        %1559 = vmatpush1.msra.mxu0 0.0
        %1560 = vmatprep.subr.mxu0 0.0
        %1561 = vmatpush1.msra.mxu0 0.0
        %1562 = vmatprep.subr.mxu0 0.0
        %1563 = vmatpush1.msra.mxu0 0.0
        %1564 = vmatprep.subr.mxu0 0.0
        %1565 = vmatpush1.msra.mxu0 0.0
        %1566 = vmatprep.subr.mxu0 0.0
        %1567 = vmatpush1.msra.mxu0 0.0
        %1568 = vmatprep.subr.mxu0 0.0
        %1569 = vmatpush1.msra.mxu0 0.0
        %1570 = vmatprep.subr.mxu0 0.0
        %1571 = vmatpush1.msra.mxu0 0.0
        %1572 = vmatprep.subr.mxu0 0.0
        %1573 = vmatpush1.msra.mxu0 0.0
        %1574 = vmatprep.subr.mxu0 0.0
        %1575 = vmatpush1.msra.mxu0 0.0
        %1576 = vmatprep.subr.mxu0 0.0
        %1577 = vmatpush1.msra.mxu0 0.0
        %1578 = vmatprep.subr.mxu0 0.0
        %1579 = vmatpush1.msra.mxu0 0.0
        %1580 = vmatprep.subr.mxu0 0.0
        %1581 = vmatpush1.msra.mxu0 0.0
        %1582 = vmatprep.subr.mxu0 0.0
        %1583 = vmatpush1.msra.mxu0 0.0
        %1584 = vmatprep.subr.mxu0 0.0
        %1585 = vmatpush1.msra.mxu0 0.0
        %1586 = vmatprep.subr.mxu0 0.0
        %1587 = vmatpush1.msra.mxu0 0.0
        %1588 = vmatprep.subr.mxu0 0.0
        %1589 = vmatpush1.msra.mxu0 0.0
        %1590 = vmatprep.subr.mxu0 0.0
        %1591 = vmatpush1.msra.mxu0 0.0
        %1592 = vmatprep.subr.mxu0 0.0
        %1593 = vmatpush1.msra.mxu0 0.0
        %1594 = vmatprep.subr.mxu0 0.0
        %1595 = vmatpush1.msra.mxu0 0.0
        %1596 = vmatprep.subr.mxu0 0.0
        %1597 = vmatpush1.msra.mxu0 0.0
        %1598 = vmatprep.subr.mxu0 0.0
        %1599 = vmatpush1.msra.mxu0 0.0
        %1600 = vmatprep.subr.mxu0 0.0
        %1601 = vmatpush1.msra.mxu0 0.0
        %1602 = vmatprep.subr.mxu0 0.0
        %1603 = vmatpush1.msra.mxu0 0.0
        %1604 = vmatprep.mubr.f32.mxu0 0.0
        %1605 = vmatmul.mubr.f32.gmra.mrb[0].mxu0 %v978
        %v1606 = vpop.f32.mrb[0].mxu0
        %v1607 = vadd.f32 0.0, %v1606
        %v1608 = vpop.f32.mrb[0].mxu0
        %1609 = vdwg.mxu0
        %1610 = vmatprep.subr.mxu0 0.0
        %1611 = vmatpush1.msra.mxu0 %v347
        %1612 = vmatprep.subr.mxu0 0.0
        %1613 = vmatpush1.msra.mxu0 %v348
        %1614 = vmatprep.subr.mxu0 0.0
        %1615 = vmatpush1.msra.mxu0 0.0
        %1616 = vmatprep.subr.mxu0 0.0
        %1617 = vmatpush1.msra.mxu0 0.0
        %1618 = vmatprep.subr.mxu0 0.0
        %1619 = vmatpush1.msra.mxu0 0.0
        %1620 = vmatprep.subr.mxu0 0.0
        %1621 = vmatpush1.msra.mxu0 0.0
        %1622 = vmatprep.subr.mxu0 0.0
        %1623 = vmatpush1.msra.mxu0 0.0
        %1624 = vmatprep.subr.mxu0 0.0
        %1625 = vmatpush1.msra.mxu0 0.0
        %1626 = vmatprep.subr.mxu0 0.0
        %1627 = vmatpush1.msra.mxu0 0.0
        %1628 = vmatprep.subr.mxu0 0.0
        %1629 = vmatpush1.msra.mxu0 0.0
        %1630 = vmatprep.subr.mxu0 0.0
        %1631 = vmatpush1.msra.mxu0 0.0
        %1632 = vmatprep.subr.mxu0 0.0
        %1633 = vmatpush1.msra.mxu0 0.0
        %1634 = vmatprep.subr.mxu0 0.0
        %1635 = vmatpush1.msra.mxu0 0.0
        %1636 = vmatprep.subr.mxu0 0.0
        %1637 = vmatpush1.msra.mxu0 0.0
        %1638 = vmatprep.subr.mxu0 0.0
        %1639 = vmatpush1.msra.mxu0 0.0
        %1640 = vmatprep.subr.mxu0 0.0
        %1641 = vmatpush1.msra.mxu0 0.0
        %1642 = vmatprep.subr.mxu0 0.0
        %1643 = vmatpush1.msra.mxu0 0.0
        %1644 = vmatprep.subr.mxu0 0.0
        %1645 = vmatpush1.msra.mxu0 0.0
        %1646 = vmatprep.subr.mxu0 0.0
        %1647 = vmatpush1.msra.mxu0 0.0
        %1648 = vmatprep.subr.mxu0 0.0
        %1649 = vmatpush1.msra.mxu0 0.0
        %1650 = vmatprep.subr.mxu0 0.0
        %1651 = vmatpush1.msra.mxu0 0.0
        %1652 = vmatprep.subr.mxu0 0.0
        %1653 = vmatpush1.msra.mxu0 0.0
        %1654 = vmatprep.subr.mxu0 0.0
        %1655 = vmatpush1.msra.mxu0 0.0
        %1656 = vmatprep.subr.mxu0 0.0
        %1657 = vmatpush1.msra.mxu0 0.0
        %1658 = vmatprep.subr.mxu0 0.0
        %1659 = vmatpush1.msra.mxu0 0.0
        %1660 = vmatprep.subr.mxu0 0.0
        %1661 = vmatpush1.msra.mxu0 0.0
        %1662 = vmatprep.subr.mxu0 0.0
        %1663 = vmatpush1.msra.mxu0 0.0
        %1664 = vmatprep.subr.mxu0 0.0
        %1665 = vmatpush1.msra.mxu0 0.0
        %1666 = vmatprep.subr.mxu0 0.0
        %1667 = vmatpush1.msra.mxu0 0.0
        %1668 = vmatprep.subr.mxu0 0.0
        %1669 = vmatpush1.msra.mxu0 0.0
        %1670 = vmatprep.subr.mxu0 0.0
        %1671 = vmatpush1.msra.mxu0 0.0
        %1672 = vmatprep.subr.mxu0 0.0
        %1673 = vmatpush1.msra.mxu0 0.0
        %1674 = vmatprep.mubr.f32.mxu0 0.0
        %1675 = vmatmul.mubr.f32.gmra.mrb[0].mxu0 %v978
        %v1676 = vpop.f32.mrb[0].mxu0
        %v1677 = vadd.f32 0.0, %v1676
        %v1678 = vpop.f32.mrb[0].mxu0
        %1679 = vdwg.mxu0
        %1680 = vmatprep.subr.mxu0 0.0
        %1681 = vmatpush1.msra.mxu0 %v349
        %1682 = vmatprep.subr.mxu0 0.0
        %1683 = vmatpush1.msra.mxu0 %v350
        %1684 = vmatprep.subr.mxu0 0.0
        %1685 = vmatpush1.msra.mxu0 0.0
        %1686 = vmatprep.subr.mxu0 0.0
        %1687 = vmatpush1.msra.mxu0 0.0
        %1688 = vmatprep.subr.mxu0 0.0
        %1689 = vmatpush1.msra.mxu0 0.0
        %1690 = vmatprep.subr.mxu0 0.0
        %1691 = vmatpush1.msra.mxu0 0.0
        %1692 = vmatprep.subr.mxu0 0.0
        %1693 = vmatpush1.msra.mxu0 0.0
        %1694 = vmatprep.subr.mxu0 0.0
        %1695 = vmatpush1.msra.mxu0 0.0
        %1696 = vmatprep.subr.mxu0 0.0
        %1697 = vmatpush1.msra.mxu0 0.0
        %1698 = vmatprep.subr.mxu0 0.0
        %1699 = vmatpush1.msra.mxu0 0.0
        %1700 = vmatprep.subr.mxu0 0.0
        %1701 = vmatpush1.msra.mxu0 0.0
        %1702 = vmatprep.subr.mxu0 0.0
        %1703 = vmatpush1.msra.mxu0 0.0
        %1704 = vmatprep.subr.mxu0 0.0
        %1705 = vmatpush1.msra.mxu0 0.0
        %1706 = vmatprep.subr.mxu0 0.0
        %1707 = vmatpush1.msra.mxu0 0.0
        %1708 = vmatprep.subr.mxu0 0.0
        %1709 = vmatpush1.msra.mxu0 0.0
        %1710 = vmatprep.subr.mxu0 0.0
        %1711 = vmatpush1.msra.mxu0 0.0
        %1712 = vmatprep.subr.mxu0 0.0
        %1713 = vmatpush1.msra.mxu0 0.0
        %1714 = vmatprep.subr.mxu0 0.0
        %1715 = vmatpush1.msra.mxu0 0.0
        %1716 = vmatprep.subr.mxu0 0.0
        %1717 = vmatpush1.msra.mxu0 0.0
        %1718 = vmatprep.subr.mxu0 0.0
        %1719 = vmatpush1.msra.mxu0 0.0
        %1720 = vmatprep.subr.mxu0 0.0
        %1721 = vmatpush1.msra.mxu0 0.0
        %1722 = vmatprep.subr.mxu0 0.0
        %1723 = vmatpush1.msra.mxu0 0.0
        %1724 = vmatprep.subr.mxu0 0.0
        %1725 = vmatpush1.msra.mxu0 0.0
        %1726 = vmatprep.subr.mxu0 0.0
        %1727 = vmatpush1.msra.mxu0 0.0
        %1728 = vmatprep.subr.mxu0 0.0
        %1729 = vmatpush1.msra.mxu0 0.0
        %1730 = vmatprep.subr.mxu0 0.0
        %1731 = vmatpush1.msra.mxu0 0.0
        %1732 = vmatprep.subr.mxu0 0.0
        %1733 = vmatpush1.msra.mxu0 0.0
        %1734 = vmatprep.subr.mxu0 0.0
        %1735 = vmatpush1.msra.mxu0 0.0
        %1736 = vmatprep.subr.mxu0 0.0
        %1737 = vmatpush1.msra.mxu0 0.0
        %1738 = vmatprep.subr.mxu0 0.0
        %1739 = vmatpush1.msra.mxu0 0.0
        %1740 = vmatprep.subr.mxu0 0.0
        %1741 = vmatpush1.msra.mxu0 0.0
        %1742 = vmatprep.subr.mxu0 0.0
        %1743 = vmatpush1.msra.mxu0 0.0
        %1744 = vmatprep.mubr.f32.mxu0 0.0
        %1745 = vmatmul.mubr.f32.gmra.mrb[0].mxu0 %v978
        %v1746 = vpop.f32.mrb[0].mxu0
        %v1747 = vadd.f32 0.0, %v1746
        %v1748 = vpop.f32.mrb[0].mxu0
        %1749 = vdwg.mxu0
        %1750 = vmatprep.subr.mxu0 0.0
        %1751 = vmatpush1.msra.mxu0 %v351
        %1752 = vmatprep.subr.mxu0 0.0
        %1753 = vmatpush1.msra.mxu0 %v352
        %1754 = vmatprep.subr.mxu0 0.0
        %1755 = vmatpush1.msra.mxu0 0.0
        %1756 = vmatprep.subr.mxu0 0.0
        %1757 = vmatpush1.msra.mxu0 0.0
        %1758 = vmatprep.subr.mxu0 0.0
        %1759 = vmatpush1.msra.mxu0 0.0
        %1760 = vmatprep.subr.mxu0 0.0
        %1761 = vmatpush1.msra.mxu0 0.0
        %1762 = vmatprep.subr.mxu0 0.0
        %1763 = vmatpush1.msra.mxu0 0.0
        %1764 = vmatprep.subr.mxu0 0.0
        %1765 = vmatpush1.msra.mxu0 0.0
        %1766 = vmatprep.subr.mxu0 0.0
        %1767 = vmatpush1.msra.mxu0 0.0
        %1768 = vmatprep.subr.mxu0 0.0
        %1769 = vmatpush1.msra.mxu0 0.0
        %1770 = vmatprep.subr.mxu0 0.0
        %1771 = vmatpush1.msra.mxu0 0.0
        %1772 = vmatprep.subr.mxu0 0.0
        %1773 = vmatpush1.msra.mxu0 0.0
        %1774 = vmatprep.subr.mxu0 0.0
        %1775 = vmatpush1.msra.mxu0 0.0
        %1776 = vmatprep.subr.mxu0 0.0
        %1777 = vmatpush1.msra.mxu0 0.0
        %1778 = vmatprep.subr.mxu0 0.0
        %1779 = vmatpush1.msra.mxu0 0.0
        %1780 = vmatprep.subr.mxu0 0.0
        %1781 = vmatpush1.msra.mxu0 0.0
        %1782 = vmatprep.subr.mxu0 0.0
        %1783 = vmatpush1.msra.mxu0 0.0
        %1784 = vmatprep.subr.mxu0 0.0
        %1785 = vmatpush1.msra.mxu0 0.0
        %1786 = vmatprep.subr.mxu0 0.0
        %1787 = vmatpush1.msra.mxu0 0.0
        %1788 = vmatprep.subr.mxu0 0.0
        %1789 = vmatpush1.msra.mxu0 0.0
        %1790 = vmatprep.subr.mxu0 0.0
        %1791 = vmatpush1.msra.mxu0 0.0
        %1792 = vmatprep.subr.mxu0 0.0
        %1793 = vmatpush1.msra.mxu0 0.0
        %1794 = vmatprep.subr.mxu0 0.0
        %1795 = vmatpush1.msra.mxu0 0.0
        %1796 = vmatprep.subr.mxu0 0.0
        %1797 = vmatpush1.msra.mxu0 0.0
        %1798 = vmatprep.subr.mxu0 0.0
        %1799 = vmatpush1.msra.mxu0 0.0
        %1800 = vmatprep.subr.mxu0 0.0
        %1801 = vmatpush1.msra.mxu0 0.0
        %1802 = vmatprep.subr.mxu0 0.0
        %1803 = vmatpush1.msra.mxu0 0.0
        %1804 = vmatprep.subr.mxu0 0.0
        %1805 = vmatpush1.msra.mxu0 0.0
        %1806 = vmatprep.subr.mxu0 0.0
        %1807 = vmatpush1.msra.mxu0 0.0
        %1808 = vmatprep.subr.mxu0 0.0
        %1809 = vmatpush1.msra.mxu0 0.0
        %1810 = vmatprep.subr.mxu0 0.0
        %1811 = vmatpush1.msra.mxu0 0.0
        %1812 = vmatprep.subr.mxu0 0.0
        %1813 = vmatpush1.msra.mxu0 0.0
        %1814 = vmatprep.mubr.f32.mxu0 0.0
        %1815 = vmatmul.mubr.f32.gmra.mrb[0].mxu0 %v978
        %v1816 = vpop.f32.mrb[0].mxu0
        %v1817 = vadd.f32 0.0, %v1816
        %v1818 = vpop.f32.mrb[0].mxu0
        %1819 = vdwg.mxu0
        %1820 = vmatprep.subr.mxu0 0.0
        %1821 = vmatpush1.msra.mxu0 %v353
        %1822 = vmatprep.subr.mxu0 0.0
        %1823 = vmatpush1.msra.mxu0 %v354
        %1824 = vmatprep.subr.mxu0 0.0
        %1825 = vmatpush1.msra.mxu0 0.0
        %1826 = vmatprep.subr.mxu0 0.0
        %1827 = vmatpush1.msra.mxu0 0.0
        %1828 = vmatprep.subr.mxu0 0.0
        %1829 = vmatpush1.msra.mxu0 0.0
        %1830 = vmatprep.subr.mxu0 0.0
        %1831 = vmatpush1.msra.mxu0 0.0
        %1832 = vmatprep.subr.mxu0 0.0
        %1833 = vmatpush1.msra.mxu0 0.0
        %1834 = vmatprep.subr.mxu0 0.0
        %1835 = vmatpush1.msra.mxu0 0.0
        %1836 = vmatprep.subr.mxu0 0.0
        %1837 = vmatpush1.msra.mxu0 0.0
        %1838 = vmatprep.subr.mxu0 0.0
        %1839 = vmatpush1.msra.mxu0 0.0
        %1840 = vmatprep.subr.mxu0 0.0
        %1841 = vmatpush1.msra.mxu0 0.0
        %1842 = vmatprep.subr.mxu0 0.0
        %1843 = vmatpush1.msra.mxu0 0.0
        %1844 = vmatprep.subr.mxu0 0.0
        %1845 = vmatpush1.msra.mxu0 0.0
        %1846 = vmatprep.subr.mxu0 0.0
        %1847 = vmatpush1.msra.mxu0 0.0
        %1848 = vmatprep.subr.mxu0 0.0
        %1849 = vmatpush1.msra.mxu0 0.0
        %1850 = vmatprep.subr.mxu0 0.0
        %1851 = vmatpush1.msra.mxu0 0.0
        %1852 = vmatprep.subr.mxu0 0.0
        %1853 = vmatpush1.msra.mxu0 0.0
        %1854 = vmatprep.subr.mxu0 0.0
        %1855 = vmatpush1.msra.mxu0 0.0
        %1856 = vmatprep.subr.mxu0 0.0
        %1857 = vmatpush1.msra.mxu0 0.0
        %1858 = vmatprep.subr.mxu0 0.0
        %1859 = vmatpush1.msra.mxu0 0.0
        %1860 = vmatprep.subr.mxu0 0.0
        %1861 = vmatpush1.msra.mxu0 0.0
        %1862 = vmatprep.subr.mxu0 0.0
        %1863 = vmatpush1.msra.mxu0 0.0
        %1864 = vmatprep.subr.mxu0 0.0
        %1865 = vmatpush1.msra.mxu0 0.0
        %1866 = vmatprep.subr.mxu0 0.0
        %1867 = vmatpush1.msra.mxu0 0.0
        %1868 = vmatprep.subr.mxu0 0.0
        %1869 = vmatpush1.msra.mxu0 0.0
        %1870 = vmatprep.subr.mxu0 0.0
        %1871 = vmatpush1.msra.mxu0 0.0
        %1872 = vmatprep.subr.mxu0 0.0
        %1873 = vmatpush1.msra.mxu0 0.0
        %1874 = vmatprep.subr.mxu0 0.0
        %1875 = vmatpush1.msra.mxu0 0.0
        %1876 = vmatprep.subr.mxu0 0.0
        %1877 = vmatpush1.msra.mxu0 0.0
        %1878 = vmatprep.subr.mxu0 0.0
        %1879 = vmatpush1.msra.mxu0 0.0
        %1880 = vmatprep.subr.mxu0 0.0
        %1881 = vmatpush1.msra.mxu0 0.0
        %1882 = vmatprep.subr.mxu0 0.0
        %1883 = vmatpush1.msra.mxu0 0.0
        %1884 = vmatprep.mubr.f32.mxu0 0.0
        %1885 = vmatmul.mubr.f32.gmra.mrb[0].mxu0 %v978
        %v1886 = vpop.f32.mrb[0].mxu0
        %v1887 = vadd.f32 0.0, %v1886
        %v1888 = vpop.f32.mrb[0].mxu0
        %1889 = vdwg.mxu0
        %1890 = vmatprep.subr.mxu0 0.0
        %1891 = vmatpush1.msra.mxu0 %v355
        %1892 = vmatprep.subr.mxu0 0.0
        %1893 = vmatpush1.msra.mxu0 %v356
        %1894 = vmatprep.subr.mxu0 0.0
        %1895 = vmatpush1.msra.mxu0 0.0
        %1896 = vmatprep.subr.mxu0 0.0
        %1897 = vmatpush1.msra.mxu0 0.0
        %1898 = vmatprep.subr.mxu0 0.0
        %1899 = vmatpush1.msra.mxu0 0.0
        %1900 = vmatprep.subr.mxu0 0.0
        %1901 = vmatpush1.msra.mxu0 0.0
        %1902 = vmatprep.subr.mxu0 0.0
        %1903 = vmatpush1.msra.mxu0 0.0
        %1904 = vmatprep.subr.mxu0 0.0
        %1905 = vmatpush1.msra.mxu0 0.0
        %1906 = vmatprep.subr.mxu0 0.0
        %1907 = vmatpush1.msra.mxu0 0.0
        %1908 = vmatprep.subr.mxu0 0.0
        %1909 = vmatpush1.msra.mxu0 0.0
        %1910 = vmatprep.subr.mxu0 0.0
        %1911 = vmatpush1.msra.mxu0 0.0
        %1912 = vmatprep.subr.mxu0 0.0
        %1913 = vmatpush1.msra.mxu0 0.0
        %1914 = vmatprep.subr.mxu0 0.0
        %1915 = vmatpush1.msra.mxu0 0.0
        %1916 = vmatprep.subr.mxu0 0.0
        %1917 = vmatpush1.msra.mxu0 0.0
        %1918 = vmatprep.subr.mxu0 0.0
        %1919 = vmatpush1.msra.mxu0 0.0
        %1920 = vmatprep.subr.mxu0 0.0
        %1921 = vmatpush1.msra.mxu0 0.0
        %1922 = vmatprep.subr.mxu0 0.0
        %1923 = vmatpush1.msra.mxu0 0.0
        %1924 = vmatprep.subr.mxu0 0.0
        %1925 = vmatpush1.msra.mxu0 0.0
        %1926 = vmatprep.subr.mxu0 0.0
        %1927 = vmatpush1.msra.mxu0 0.0
        %1928 = vmatprep.subr.mxu0 0.0
        %1929 = vmatpush1.msra.mxu0 0.0
        %1930 = vmatprep.subr.mxu0 0.0
        %1931 = vmatpush1.msra.mxu0 0.0
        %1932 = vmatprep.subr.mxu0 0.0
        %1933 = vmatpush1.msra.mxu0 0.0
        %1934 = vmatprep.subr.mxu0 0.0
        %1935 = vmatpush1.msra.mxu0 0.0
        %1936 = vmatprep.subr.mxu0 0.0
        %1937 = vmatpush1.msra.mxu0 0.0
        %1938 = vmatprep.subr.mxu0 0.0
        %1939 = vmatpush1.msra.mxu0 0.0
        %1940 = vmatprep.subr.mxu0 0.0
        %1941 = vmatpush1.msra.mxu0 0.0
        %1942 = vmatprep.subr.mxu0 0.0
        %1943 = vmatpush1.msra.mxu0 0.0
        %1944 = vmatprep.subr.mxu0 0.0
        %1945 = vmatpush1.msra.mxu0 0.0
        %1946 = vmatprep.subr.mxu0 0.0
        %1947 = vmatpush1.msra.mxu0 0.0
        %1948 = vmatprep.subr.mxu0 0.0
        %1949 = vmatpush1.msra.mxu0 0.0
        %1950 = vmatprep.subr.mxu0 0.0
        %1951 = vmatpush1.msra.mxu0 0.0
        %1952 = vmatprep.subr.mxu0 0.0
        %1953 = vmatpush1.msra.mxu0 0.0
        %1954 = vmatprep.mubr.f32.mxu0 0.0
        %1955 = vmatmul.mubr.f32.gmra.mrb[0].mxu0 %v978
        %v1956 = vpop.f32.mrb[0].mxu0
        %v1957 = vadd.f32 0.0, %v1956
        %v1958 = vpop.f32.mrb[0].mxu0
        %1959 = vdwg.mxu0
        %1960 = vmatprep.subr.mxu0 0.0
        %1961 = vmatpush1.msra.mxu0 %v357
        %1962 = vmatprep.subr.mxu0 0.0
        %1963 = vmatpush1.msra.mxu0 %v358
        %1964 = vmatprep.subr.mxu0 0.0
        %1965 = vmatpush1.msra.mxu0 0.0
        %1966 = vmatprep.subr.mxu0 0.0
        %1967 = vmatpush1.msra.mxu0 0.0
        %1968 = vmatprep.subr.mxu0 0.0
        %1969 = vmatpush1.msra.mxu0 0.0
        %1970 = vmatprep.subr.mxu0 0.0
        %1971 = vmatpush1.msra.mxu0 0.0
        %1972 = vmatprep.subr.mxu0 0.0
        %1973 = vmatpush1.msra.mxu0 0.0
        %1974 = vmatprep.subr.mxu0 0.0
        %1975 = vmatpush1.msra.mxu0 0.0
        %1976 = vmatprep.subr.mxu0 0.0
        %1977 = vmatpush1.msra.mxu0 0.0
        %1978 = vmatprep.subr.mxu0 0.0
        %1979 = vmatpush1.msra.mxu0 0.0
        %1980 = vmatprep.subr.mxu0 0.0
        %1981 = vmatpush1.msra.mxu0 0.0
        %1982 = vmatprep.subr.mxu0 0.0
        %1983 = vmatpush1.msra.mxu0 0.0
        %1984 = vmatprep.subr.mxu0 0.0
        %1985 = vmatpush1.msra.mxu0 0.0
        %1986 = vmatprep.subr.mxu0 0.0
        %1987 = vmatpush1.msra.mxu0 0.0
        %1988 = vmatprep.subr.mxu0 0.0
        %1989 = vmatpush1.msra.mxu0 0.0
        %1990 = vmatprep.subr.mxu0 0.0
        %1991 = vmatpush1.msra.mxu0 0.0
        %1992 = vmatprep.subr.mxu0 0.0
        %1993 = vmatpush1.msra.mxu0 0.0
        %1994 = vmatprep.subr.mxu0 0.0
        %1995 = vmatpush1.msra.mxu0 0.0
        %1996 = vmatprep.subr.mxu0 0.0
        %1997 = vmatpush1.msra.mxu0 0.0
        %1998 = vmatprep.subr.mxu0 0.0
        %1999 = vmatpush1.msra.mxu0 0.0
        %2000 = vmatprep.subr.mxu0 0.0
        %2001 = vmatpush1.msra.mxu0 0.0
        %2002 = vmatprep.subr.mxu0 0.0
        %2003 = vmatpush1.msra.mxu0 0.0
        %2004 = vmatprep.subr.mxu0 0.0
        %2005 = vmatpush1.msra.mxu0 0.0
        %2006 = vmatprep.subr.mxu0 0.0
        %2007 = vmatpush1.msra.mxu0 0.0
        %2008 = vmatprep.subr.mxu0 0.0
        %2009 = vmatpush1.msra.mxu0 0.0
        %2010 = vmatprep.subr.mxu0 0.0
        %2011 = vmatpush1.msra.mxu0 0.0
        %2012 = vmatprep.subr.mxu0 0.0
        %2013 = vmatpush1.msra.mxu0 0.0
        %2014 = vmatprep.subr.mxu0 0.0
        %2015 = vmatpush1.msra.mxu0 0.0
        %2016 = vmatprep.subr.mxu0 0.0
        %2017 = vmatpush1.msra.mxu0 0.0
        %2018 = vmatprep.subr.mxu0 0.0
        %2019 = vmatpush1.msra.mxu0 0.0
        %2020 = vmatprep.subr.mxu0 0.0
        %2021 = vmatpush1.msra.mxu0 0.0
        %2022 = vmatprep.subr.mxu0 0.0
        %2023 = vmatpush1.msra.mxu0 0.0
        %2024 = vmatprep.mubr.f32.mxu0 0.0
        %2025 = vmatmul.mubr.f32.gmra.mrb[0].mxu0 %v978
        %v2026 = vpop.f32.mrb[0].mxu0
        %v2027 = vadd.f32 0.0, %v2026
        %v2028 = vpop.f32.mrb[0].mxu0
        %2029 = vdwg.mxu0
        %2030 = vmatprep.subr.mxu0 0.0
        %2031 = vmatpush1.msra.mxu0 %v359
        %2032 = vmatprep.subr.mxu0 0.0
        %2033 = vmatpush1.msra.mxu0 %v360
        %2034 = vmatprep.subr.mxu0 0.0
        %2035 = vmatpush1.msra.mxu0 0.0
        %2036 = vmatprep.subr.mxu0 0.0
        %2037 = vmatpush1.msra.mxu0 0.0
        %2038 = vmatprep.subr.mxu0 0.0
        %2039 = vmatpush1.msra.mxu0 0.0
        %2040 = vmatprep.subr.mxu0 0.0
        %2041 = vmatpush1.msra.mxu0 0.0
        %2042 = vmatprep.subr.mxu0 0.0
        %2043 = vmatpush1.msra.mxu0 0.0
        %2044 = vmatprep.subr.mxu0 0.0
        %2045 = vmatpush1.msra.mxu0 0.0
        %2046 = vmatprep.subr.mxu0 0.0
        %2047 = vmatpush1.msra.mxu0 0.0
        %2048 = vmatprep.subr.mxu0 0.0
        %2049 = vmatpush1.msra.mxu0 0.0
        %2050 = vmatprep.subr.mxu0 0.0
        %2051 = vmatpush1.msra.mxu0 0.0
        %2052 = vmatprep.subr.mxu0 0.0
        %2053 = vmatpush1.msra.mxu0 0.0
        %2054 = vmatprep.subr.mxu0 0.0
        %2055 = vmatpush1.msra.mxu0 0.0
        %2056 = vmatprep.subr.mxu0 0.0
        %2057 = vmatpush1.msra.mxu0 0.0
        %2058 = vmatprep.subr.mxu0 0.0
        %2059 = vmatpush1.msra.mxu0 0.0
        %2060 = vmatprep.subr.mxu0 0.0
        %2061 = vmatpush1.msra.mxu0 0.0
        %2062 = vmatprep.subr.mxu0 0.0
        %2063 = vmatpush1.msra.mxu0 0.0
        %2064 = vmatprep.subr.mxu0 0.0
        %2065 = vmatpush1.msra.mxu0 0.0
        %2066 = vmatprep.subr.mxu0 0.0
        %2067 = vmatpush1.msra.mxu0 0.0
        %2068 = vmatprep.subr.mxu0 0.0
        %2069 = vmatpush1.msra.mxu0 0.0
        %2070 = vmatprep.subr.mxu0 0.0
        %2071 = vmatpush1.msra.mxu0 0.0
        %2072 = vmatprep.subr.mxu0 0.0
        %2073 = vmatpush1.msra.mxu0 0.0
        %2074 = vmatprep.subr.mxu0 0.0
        %2075 = vmatpush1.msra.mxu0 0.0
        %2076 = vmatprep.subr.mxu0 0.0
        %2077 = vmatpush1.msra.mxu0 0.0
        %2078 = vmatprep.subr.mxu0 0.0
        %2079 = vmatpush1.msra.mxu0 0.0
        %2080 = vmatprep.subr.mxu0 0.0
        %2081 = vmatpush1.msra.mxu0 0.0
        %2082 = vmatprep.subr.mxu0 0.0
        %2083 = vmatpush1.msra.mxu0 0.0
        %2084 = vmatprep.subr.mxu0 0.0
        %2085 = vmatpush1.msra.mxu0 0.0
        %2086 = vmatprep.subr.mxu0 0.0
        %2087 = vmatpush1.msra.mxu0 0.0
        %2088 = vmatprep.subr.mxu0 0.0
        %2089 = vmatpush1.msra.mxu0 0.0
        %2090 = vmatprep.subr.mxu0 0.0
        %2091 = vmatpush1.msra.mxu0 0.0
        %2092 = vmatprep.subr.mxu0 0.0
        %2093 = vmatpush1.msra.mxu0 0.0
        %2094 = vmatprep.mubr.f32.mxu0 0.0
        %2095 = vmatmul.mubr.f32.gmra.mrb[0].mxu0 %v978
        %v2096 = vpop.f32.mrb[0].mxu0
        %v2097 = vadd.f32 0.0, %v2096
        %v2098 = vpop.f32.mrb[0].mxu0
        %2099 = vdwg.mxu0
        %vm2100 = vcmask 31744
        %v2102 = vsel %vm2100, %v443, 0
        %v2105 = vsel %vm2100, %v448, 0
        %v2108 = vsel %vm2100, %v1047, 0
        %2110 = vmatprep.subr.mxu0 0.0
        %2111 = vmatpush1.xpose.msra.mxu0 %v2108
        %2112 = vmatprep.subr.mxu0 0.0
        %2113 = vmatpush1.xpose.msra.mxu0 0.0
        %2114 = vmatprep.subr.mxu0 0.0
        %2115 = vmatpush1.xpose.msra.mxu0 0.0
        %2116 = vmatprep.subr.mxu0 0.0
        %2117 = vmatpush1.xpose.msra.mxu0 0.0
        %2118 = vmatprep.subr.mxu0 0.0
        %2119 = vmatpush1.xpose.msra.mxu0 0.0
        %2120 = vmatprep.subr.mxu0 0.0
        %2121 = vmatpush1.xpose.msra.mxu0 0.0
        %2122 = vmatprep.subr.mxu0 0.0
        %2123 = vmatpush1.xpose.msra.mxu0 0.0
        %2124 = vmatprep.subr.mxu0 0.0
        %2125 = vmatpush1.xpose.msra.mxu0 0.0
        %2126 = vmatprep.subr.mxu0 0.0
        %2127 = vmatpush1.xpose.msra.mxu0 0.0
        %2128 = vmatprep.subr.mxu0 0.0
        %2129 = vmatpush1.xpose.msra.mxu0 0.0
        %2130 = vmatprep.subr.mxu0 0.0
        %2131 = vmatpush1.xpose.msra.mxu0 0.0
        %2132 = vmatprep.subr.mxu0 0.0
        %2133 = vmatpush1.xpose.msra.mxu0 0.0
        %2134 = vmatprep.subr.mxu0 0.0
        %2135 = vmatpush1.xpose.msra.mxu0 0.0
        %2136 = vmatprep.subr.mxu0 0.0
        %2137 = vmatpush1.xpose.msra.mxu0 0.0
        %2138 = vmatprep.subr.mxu0 0.0
        %2139 = vmatpush1.xpose.msra.mxu0 0.0
        %2140 = vmatprep.subr.mxu0 0.0
        %2141 = vmatpush1.xpose.msra.mxu0 0.0
        %2142 = vmatprep.subr.mxu0 0.0
        %2143 = vmatpush1.xpose.msra.mxu0 0.0
        %2144 = vmatprep.subr.mxu0 0.0
        %2145 = vmatpush1.xpose.msra.mxu0 0.0
        %2146 = vmatprep.subr.mxu0 0.0
        %2147 = vmatpush1.xpose.msra.mxu0 0.0
        %2148 = vmatprep.subr.mxu0 0.0
        %2149 = vmatpush1.xpose.msra.mxu0 0.0
        %2150 = vmatprep.subr.mxu0 0.0
        %2151 = vmatpush1.xpose.msra.mxu0 0.0
        %2152 = vmatprep.subr.mxu0 0.0
        %2153 = vmatpush1.xpose.msra.mxu0 0.0
        %2154 = vmatprep.subr.mxu0 0.0
        %2155 = vmatpush1.xpose.msra.mxu0 0.0
        %2156 = vmatprep.subr.mxu0 0.0
        %2157 = vmatpush1.xpose.msra.mxu0 0.0
        %2158 = vmatprep.subr.mxu0 0.0
        %2159 = vmatpush1.xpose.msra.mxu0 0.0
        %2160 = vmatprep.subr.mxu0 0.0
        %2161 = vmatpush1.xpose.msra.mxu0 0.0
        %2162 = vmatprep.subr.mxu0 0.0
        %2163 = vmatpush1.xpose.msra.mxu0 0.0
        %2164 = vmatprep.subr.mxu0 0.0
        %2165 = vmatpush1.xpose.msra.mxu0 0.0
        %2166 = vmatprep.subr.mxu0 0.0
        %2167 = vmatpush1.xpose.msra.mxu0 0.0
        %2168 = vmatprep.subr.mxu0 0.0
        %2169 = vmatpush1.xpose.msra.mxu0 0.0
        %2170 = vmatprep.subr.mxu0 0.0
        %2171 = vmatpush1.xpose.msra.mxu0 0.0
        %2172 = vmatprep.subr.mxu0 0.0
        %2173 = vmatpush1.xpose.msra.mxu0 0.0
        %2174 = vmatprep.mubr.f32.mxu0 0.0
        %2175 = vmatmul.mubr.f32.gmra.mrb[0].mxu0 %v2102
        %v2176 = vpop.f32.mrb[0].mxu0
        %v2177 = vadd.f32 0.0, %v2176
        %v2178 = vpop.f32.mrb[0].mxu0
        %2179 = vmatprep.mubr.f32.mxu0 0.0
        %2180 = vmatmul.mubr.f32.gmra.mrb[0].mxu0 %v2105
        %v2181 = vpop.f32.mrb[0].mxu0
        %v2182 = vadd.f32 0.0, %v2181
        %v2183 = vpop.f32.mrb[0].mxu0
        %2184 = vdwg.mxu0
        %v2186 = vsel %vm2100, %v518, 0
        %v2189 = vsel %vm2100, %v523, 0
        %v2192 = vsel %vm2100, %v1117, 0
        %2194 = vmatprep.subr.mxu0 0.0
        %2195 = vmatpush1.xpose.msra.mxu0 %v2192
        %2196 = vmatprep.subr.mxu0 0.0
        %2197 = vmatpush1.xpose.msra.mxu0 0.0
        %2198 = vmatprep.subr.mxu0 0.0
        %2199 = vmatpush1.xpose.msra.mxu0 0.0
        %2200 = vmatprep.subr.mxu0 0.0
        %2201 = vmatpush1.xpose.msra.mxu0 0.0
        %2202 = vmatprep.subr.mxu0 0.0
        %2203 = vmatpush1.xpose.msra.mxu0 0.0
        %2204 = vmatprep.subr.mxu0 0.0
        %2205 = vmatpush1.xpose.msra.mxu0 0.0
        %2206 = vmatprep.subr.mxu0 0.0
        %2207 = vmatpush1.xpose.msra.mxu0 0.0
        %2208 = vmatprep.subr.mxu0 0.0
        %2209 = vmatpush1.xpose.msra.mxu0 0.0
        %2210 = vmatprep.subr.mxu0 0.0
        %2211 = vmatpush1.xpose.msra.mxu0 0.0
        %2212 = vmatprep.subr.mxu0 0.0
        %2213 = vmatpush1.xpose.msra.mxu0 0.0
        %2214 = vmatprep.subr.mxu0 0.0
        %2215 = vmatpush1.xpose.msra.mxu0 0.0
        %2216 = vmatprep.subr.mxu0 0.0
        %2217 = vmatpush1.xpose.msra.mxu0 0.0
        %2218 = vmatprep.subr.mxu0 0.0
        %2219 = vmatpush1.xpose.msra.mxu0 0.0
        %2220 = vmatprep.subr.mxu0 0.0
        %2221 = vmatpush1.xpose.msra.mxu0 0.0
        %2222 = vmatprep.subr.mxu0 0.0
        %2223 = vmatpush1.xpose.msra.mxu0 0.0
        %2224 = vmatprep.subr.mxu0 0.0
        %2225 = vmatpush1.xpose.msra.mxu0 0.0
        %2226 = vmatprep.subr.mxu0 0.0
        %2227 = vmatpush1.xpose.msra.mxu0 0.0
        %2228 = vmatprep.subr.mxu0 0.0
        %2229 = vmatpush1.xpose.msra.mxu0 0.0
        %2230 = vmatprep.subr.mxu0 0.0
        %2231 = vmatpush1.xpose.msra.mxu0 0.0
        %2232 = vmatprep.subr.mxu0 0.0
        %2233 = vmatpush1.xpose.msra.mxu0 0.0
        %2234 = vmatprep.subr.mxu0 0.0
        %2235 = vmatpush1.xpose.msra.mxu0 0.0
        %2236 = vmatprep.subr.mxu0 0.0
        %2237 = vmatpush1.xpose.msra.mxu0 0.0
        %2238 = vmatprep.subr.mxu0 0.0
        %2239 = vmatpush1.xpose.msra.mxu0 0.0
        %2240 = vmatprep.subr.mxu0 0.0
        %2241 = vmatpush1.xpose.msra.mxu0 0.0
        %2242 = vmatprep.subr.mxu0 0.0
        %2243 = vmatpush1.xpose.msra.mxu0 0.0
        %2244 = vmatprep.subr.mxu0 0.0
        %2245 = vmatpush1.xpose.msra.mxu0 0.0
        %2246 = vmatprep.subr.mxu0 0.0
        %2247 = vmatpush1.xpose.msra.mxu0 0.0
        %2248 = vmatprep.subr.mxu0 0.0
        %2249 = vmatpush1.xpose.msra.mxu0 0.0
        %2250 = vmatprep.subr.mxu0 0.0
        %2251 = vmatpush1.xpose.msra.mxu0 0.0
        %2252 = vmatprep.subr.mxu0 0.0
        %2253 = vmatpush1.xpose.msra.mxu0 0.0
        %2254 = vmatprep.subr.mxu0 0.0
        %2255 = vmatpush1.xpose.msra.mxu0 0.0
        %2256 = vmatprep.subr.mxu0 0.0
        %2257 = vmatpush1.xpose.msra.mxu0 0.0
        %2258 = vmatprep.mubr.f32.mxu0 0.0
        %2259 = vmatmul.mubr.f32.gmra.mrb[0].mxu0 %v2186
        %v2260 = vpop.f32.mrb[0].mxu0
        %v2261 = vadd.f32 0.0, %v2260
        %v2262 = vpop.f32.mrb[0].mxu0
        %2263 = vmatprep.mubr.f32.mxu0 0.0
        %2264 = vmatmul.mubr.f32.gmra.mrb[0].mxu0 %v2189
        %v2265 = vpop.f32.mrb[0].mxu0
        %v2266 = vadd.f32 0.0, %v2265
        %v2267 = vpop.f32.mrb[0].mxu0
        %2268 = vdwg.mxu0
        %v2270 = vsel %vm2100, %v593, 0
        %v2273 = vsel %vm2100, %v598, 0
        %v2276 = vsel %vm2100, %v1187, 0
        %2278 = vmatprep.subr.mxu0 0.0
        %2279 = vmatpush1.xpose.msra.mxu0 %v2276
        %2280 = vmatprep.subr.mxu0 0.0
        %2281 = vmatpush1.xpose.msra.mxu0 0.0
        %2282 = vmatprep.subr.mxu0 0.0
        %2283 = vmatpush1.xpose.msra.mxu0 0.0
        %2284 = vmatprep.subr.mxu0 0.0
        %2285 = vmatpush1.xpose.msra.mxu0 0.0
        %2286 = vmatprep.subr.mxu0 0.0
        %2287 = vmatpush1.xpose.msra.mxu0 0.0
        %2288 = vmatprep.subr.mxu0 0.0
        %2289 = vmatpush1.xpose.msra.mxu0 0.0
        %2290 = vmatprep.subr.mxu0 0.0
        %2291 = vmatpush1.xpose.msra.mxu0 0.0
        %2292 = vmatprep.subr.mxu0 0.0
        %2293 = vmatpush1.xpose.msra.mxu0 0.0
        %2294 = vmatprep.subr.mxu0 0.0
        %2295 = vmatpush1.xpose.msra.mxu0 0.0
        %2296 = vmatprep.subr.mxu0 0.0
        %2297 = vmatpush1.xpose.msra.mxu0 0.0
        %2298 = vmatprep.subr.mxu0 0.0
        %2299 = vmatpush1.xpose.msra.mxu0 0.0
        %2300 = vmatprep.subr.mxu0 0.0
        %2301 = vmatpush1.xpose.msra.mxu0 0.0
        %2302 = vmatprep.subr.mxu0 0.0
        %2303 = vmatpush1.xpose.msra.mxu0 0.0
        %2304 = vmatprep.subr.mxu0 0.0
        %2305 = vmatpush1.xpose.msra.mxu0 0.0
        %2306 = vmatprep.subr.mxu0 0.0
        %2307 = vmatpush1.xpose.msra.mxu0 0.0
        %2308 = vmatprep.subr.mxu0 0.0
        %2309 = vmatpush1.xpose.msra.mxu0 0.0
        %2310 = vmatprep.subr.mxu0 0.0
        %2311 = vmatpush1.xpose.msra.mxu0 0.0
        %2312 = vmatprep.subr.mxu0 0.0
        %2313 = vmatpush1.xpose.msra.mxu0 0.0
        %2314 = vmatprep.subr.mxu0 0.0
        %2315 = vmatpush1.xpose.msra.mxu0 0.0
        %2316 = vmatprep.subr.mxu0 0.0
        %2317 = vmatpush1.xpose.msra.mxu0 0.0
        %2318 = vmatprep.subr.mxu0 0.0
        %2319 = vmatpush1.xpose.msra.mxu0 0.0
        %2320 = vmatprep.subr.mxu0 0.0
        %2321 = vmatpush1.xpose.msra.mxu0 0.0
        %2322 = vmatprep.subr.mxu0 0.0
        %2323 = vmatpush1.xpose.msra.mxu0 0.0
        %2324 = vmatprep.subr.mxu0 0.0
        %2325 = vmatpush1.xpose.msra.mxu0 0.0
        %2326 = vmatprep.subr.mxu0 0.0
        %2327 = vmatpush1.xpose.msra.mxu0 0.0
        %2328 = vmatprep.subr.mxu0 0.0
        %2329 = vmatpush1.xpose.msra.mxu0 0.0
        %2330 = vmatprep.subr.mxu0 0.0
        %2331 = vmatpush1.xpose.msra.mxu0 0.0
        %2332 = vmatprep.subr.mxu0 0.0
        %2333 = vmatpush1.xpose.msra.mxu0 0.0
        %2334 = vmatprep.subr.mxu0 0.0
        %2335 = vmatpush1.xpose.msra.mxu0 0.0
        %2336 = vmatprep.subr.mxu0 0.0
        %2337 = vmatpush1.xpose.msra.mxu0 0.0
        %2338 = vmatprep.subr.mxu0 0.0
        %2339 = vmatpush1.xpose.msra.mxu0 0.0
        %2340 = vmatprep.subr.mxu0 0.0
        %2341 = vmatpush1.xpose.msra.mxu0 0.0
        %2342 = vmatprep.mubr.f32.mxu0 0.0
        %2343 = vmatmul.mubr.f32.gmra.mrb[0].mxu0 %v2270
        %v2344 = vpop.f32.mrb[0].mxu0
        %v2345 = vadd.f32 0.0, %v2344
        %v2346 = vpop.f32.mrb[0].mxu0
        %2347 = vmatprep.mubr.f32.mxu0 0.0
        %2348 = vmatmul.mubr.f32.gmra.mrb[0].mxu0 %v2273
        %v2349 = vpop.f32.mrb[0].mxu0
        %v2350 = vadd.f32 0.0, %v2349
        %v2351 = vpop.f32.mrb[0].mxu0
        %2352 = vdwg.mxu0
        %v2354 = vsel %vm2100, %v668, 0
        %v2357 = vsel %vm2100, %v673, 0
        %v2360 = vsel %vm2100, %v1257, 0
        %2362 = vmatprep.subr.mxu0 0.0
        %2363 = vmatpush1.xpose.msra.mxu0 %v2360
        %2364 = vmatprep.subr.mxu0 0.0
        %2365 = vmatpush1.xpose.msra.mxu0 0.0
        %2366 = vmatprep.subr.mxu0 0.0
        %2367 = vmatpush1.xpose.msra.mxu0 0.0
        %2368 = vmatprep.subr.mxu0 0.0
        %2369 = vmatpush1.xpose.msra.mxu0 0.0
        %2370 = vmatprep.subr.mxu0 0.0
        %2371 = vmatpush1.xpose.msra.mxu0 0.0
        %2372 = vmatprep.subr.mxu0 0.0
        %2373 = vmatpush1.xpose.msra.mxu0 0.0
        %2374 = vmatprep.subr.mxu0 0.0
        %2375 = vmatpush1.xpose.msra.mxu0 0.0
        %2376 = vmatprep.subr.mxu0 0.0
        %2377 = vmatpush1.xpose.msra.mxu0 0.0
        %2378 = vmatprep.subr.mxu0 0.0
        %2379 = vmatpush1.xpose.msra.mxu0 0.0
        %2380 = vmatprep.subr.mxu0 0.0
        %2381 = vmatpush1.xpose.msra.mxu0 0.0
        %2382 = vmatprep.subr.mxu0 0.0
        %2383 = vmatpush1.xpose.msra.mxu0 0.0
        %2384 = vmatprep.subr.mxu0 0.0
        %2385 = vmatpush1.xpose.msra.mxu0 0.0
        %2386 = vmatprep.subr.mxu0 0.0
        %2387 = vmatpush1.xpose.msra.mxu0 0.0
        %2388 = vmatprep.subr.mxu0 0.0
        %2389 = vmatpush1.xpose.msra.mxu0 0.0
        %2390 = vmatprep.subr.mxu0 0.0
        %2391 = vmatpush1.xpose.msra.mxu0 0.0
        %2392 = vmatprep.subr.mxu0 0.0
        %2393 = vmatpush1.xpose.msra.mxu0 0.0
        %2394 = vmatprep.subr.mxu0 0.0
        %2395 = vmatpush1.xpose.msra.mxu0 0.0
        %2396 = vmatprep.subr.mxu0 0.0
        %2397 = vmatpush1.xpose.msra.mxu0 0.0
        %2398 = vmatprep.subr.mxu0 0.0
        %2399 = vmatpush1.xpose.msra.mxu0 0.0
        %2400 = vmatprep.subr.mxu0 0.0
        %2401 = vmatpush1.xpose.msra.mxu0 0.0
        %2402 = vmatprep.subr.mxu0 0.0
        %2403 = vmatpush1.xpose.msra.mxu0 0.0
        %2404 = vmatprep.subr.mxu0 0.0
        %2405 = vmatpush1.xpose.msra.mxu0 0.0
        %2406 = vmatprep.subr.mxu0 0.0
        %2407 = vmatpush1.xpose.msra.mxu0 0.0
        %2408 = vmatprep.subr.mxu0 0.0
        %2409 = vmatpush1.xpose.msra.mxu0 0.0
        %2410 = vmatprep.subr.mxu0 0.0
        %2411 = vmatpush1.xpose.msra.mxu0 0.0
        %2412 = vmatprep.subr.mxu0 0.0
        %2413 = vmatpush1.xpose.msra.mxu0 0.0
        %2414 = vmatprep.subr.mxu0 0.0
        %2415 = vmatpush1.xpose.msra.mxu0 0.0
        %2416 = vmatprep.subr.mxu0 0.0
        %2417 = vmatpush1.xpose.msra.mxu0 0.0
        %2418 = vmatprep.subr.mxu0 0.0
        %2419 = vmatpush1.xpose.msra.mxu0 0.0
        %2420 = vmatprep.subr.mxu0 0.0
        %2421 = vmatpush1.xpose.msra.mxu0 0.0
        %2422 = vmatprep.subr.mxu0 0.0
        %2423 = vmatpush1.xpose.msra.mxu0 0.0
        %2424 = vmatprep.subr.mxu0 0.0
        %2425 = vmatpush1.xpose.msra.mxu0 0.0
        %2426 = vmatprep.mubr.f32.mxu0 0.0
        %2427 = vmatmul.mubr.f32.gmra.mrb[0].mxu0 %v2354
        %v2428 = vpop.f32.mrb[0].mxu0
        %v2429 = vadd.f32 0.0, %v2428
        %v2430 = vpop.f32.mrb[0].mxu0
        %2431 = vmatprep.mubr.f32.mxu0 0.0
        %2432 = vmatmul.mubr.f32.gmra.mrb[0].mxu0 %v2357
        %v2433 = vpop.f32.mrb[0].mxu0
        %v2434 = vadd.f32 0.0, %v2433
        %v2435 = vpop.f32.mrb[0].mxu0
        %2436 = vdwg.mxu0
        %v2438 = vsel %vm2100, %v743, 0
        %v2441 = vsel %vm2100, %v748, 0
        %v2444 = vsel %vm2100, %v1327, 0
        %2446 = vmatprep.subr.mxu0 0.0
        %2447 = vmatpush1.xpose.msra.mxu0 %v2444
        %2448 = vmatprep.subr.mxu0 0.0
        %2449 = vmatpush1.xpose.msra.mxu0 0.0
        %2450 = vmatprep.subr.mxu0 0.0
        %2451 = vmatpush1.xpose.msra.mxu0 0.0
        %2452 = vmatprep.subr.mxu0 0.0
        %2453 = vmatpush1.xpose.msra.mxu0 0.0
        %2454 = vmatprep.subr.mxu0 0.0
        %2455 = vmatpush1.xpose.msra.mxu0 0.0
        %2456 = vmatprep.subr.mxu0 0.0
        %2457 = vmatpush1.xpose.msra.mxu0 0.0
        %2458 = vmatprep.subr.mxu0 0.0
        %2459 = vmatpush1.xpose.msra.mxu0 0.0
        %2460 = vmatprep.subr.mxu0 0.0
        %2461 = vmatpush1.xpose.msra.mxu0 0.0
        %2462 = vmatprep.subr.mxu0 0.0
        %2463 = vmatpush1.xpose.msra.mxu0 0.0
        %2464 = vmatprep.subr.mxu0 0.0
        %2465 = vmatpush1.xpose.msra.mxu0 0.0
        %2466 = vmatprep.subr.mxu0 0.0
        %2467 = vmatpush1.xpose.msra.mxu0 0.0
        %2468 = vmatprep.subr.mxu0 0.0
        %2469 = vmatpush1.xpose.msra.mxu0 0.0
        %2470 = vmatprep.subr.mxu0 0.0
        %2471 = vmatpush1.xpose.msra.mxu0 0.0
        %2472 = vmatprep.subr.mxu0 0.0
        %2473 = vmatpush1.xpose.msra.mxu0 0.0
        %2474 = vmatprep.subr.mxu0 0.0
        %2475 = vmatpush1.xpose.msra.mxu0 0.0
        %2476 = vmatprep.subr.mxu0 0.0
        %2477 = vmatpush1.xpose.msra.mxu0 0.0
        %2478 = vmatprep.subr.mxu0 0.0
        %2479 = vmatpush1.xpose.msra.mxu0 0.0
        %2480 = vmatprep.subr.mxu0 0.0
        %2481 = vmatpush1.xpose.msra.mxu0 0.0
        %2482 = vmatprep.subr.mxu0 0.0
        %2483 = vmatpush1.xpose.msra.mxu0 0.0
        %2484 = vmatprep.subr.mxu0 0.0
        %2485 = vmatpush1.xpose.msra.mxu0 0.0
        %2486 = vmatprep.subr.mxu0 0.0
        %2487 = vmatpush1.xpose.msra.mxu0 0.0
        %2488 = vmatprep.subr.mxu0 0.0
        %2489 = vmatpush1.xpose.msra.mxu0 0.0
        %2490 = vmatprep.subr.mxu0 0.0
        %2491 = vmatpush1.xpose.msra.mxu0 0.0
        %2492 = vmatprep.subr.mxu0 0.0
        %2493 = vmatpush1.xpose.msra.mxu0 0.0
        %2494 = vmatprep.subr.mxu0 0.0
        %2495 = vmatpush1.xpose.msra.mxu0 0.0
        %2496 = vmatprep.subr.mxu0 0.0
        %2497 = vmatpush1.xpose.msra.mxu0 0.0
        %2498 = vmatprep.subr.mxu0 0.0
        %2499 = vmatpush1.xpose.msra.mxu0 0.0
        %2500 = vmatprep.subr.mxu0 0.0
        %2501 = vmatpush1.xpose.msra.mxu0 0.0
        %2502 = vmatprep.subr.mxu0 0.0
        %2503 = vmatpush1.xpose.msra.mxu0 0.0
        %2504 = vmatprep.subr.mxu0 0.0
        %2505 = vmatpush1.xpose.msra.mxu0 0.0
        %2506 = vmatprep.subr.mxu0 0.0
        %2507 = vmatpush1.xpose.msra.mxu0 0.0
        %2508 = vmatprep.subr.mxu0 0.0
        %2509 = vmatpush1.xpose.msra.mxu0 0.0
        %2510 = vmatprep.mubr.f32.mxu0 0.0
        %2511 = vmatmul.mubr.f32.gmra.mrb[0].mxu0 %v2438
        %v2512 = vpop.f32.mrb[0].mxu0
        %v2513 = vadd.f32 0.0, %v2512
        %v2514 = vpop.f32.mrb[0].mxu0
        %2515 = vmatprep.mubr.f32.mxu0 0.0
        %2516 = vmatmul.mubr.f32.gmra.mrb[0].mxu0 %v2441
        %v2517 = vpop.f32.mrb[0].mxu0
        %v2518 = vadd.f32 0.0, %v2517
        %v2519 = vpop.f32.mrb[0].mxu0
        %2520 = vdwg.mxu0
        %v2522 = vsel %vm2100, %v818, 0
        %v2525 = vsel %vm2100, %v823, 0
        %v2528 = vsel %vm2100, %v1397, 0
        %2530 = vmatprep.subr.mxu0 0.0
        %2531 = vmatpush1.xpose.msra.mxu0 %v2528
        %2532 = vmatprep.subr.mxu0 0.0
        %2533 = vmatpush1.xpose.msra.mxu0 0.0
        %2534 = vmatprep.subr.mxu0 0.0
        %2535 = vmatpush1.xpose.msra.mxu0 0.0
        %2536 = vmatprep.subr.mxu0 0.0
        %2537 = vmatpush1.xpose.msra.mxu0 0.0
        %2538 = vmatprep.subr.mxu0 0.0
        %2539 = vmatpush1.xpose.msra.mxu0 0.0
        %2540 = vmatprep.subr.mxu0 0.0
        %2541 = vmatpush1.xpose.msra.mxu0 0.0
        %2542 = vmatprep.subr.mxu0 0.0
        %2543 = vmatpush1.xpose.msra.mxu0 0.0
        %2544 = vmatprep.subr.mxu0 0.0
        %2545 = vmatpush1.xpose.msra.mxu0 0.0
        %2546 = vmatprep.subr.mxu0 0.0
        %2547 = vmatpush1.xpose.msra.mxu0 0.0
        %2548 = vmatprep.subr.mxu0 0.0
        %2549 = vmatpush1.xpose.msra.mxu0 0.0
        %2550 = vmatprep.subr.mxu0 0.0
        %2551 = vmatpush1.xpose.msra.mxu0 0.0
        %2552 = vmatprep.subr.mxu0 0.0
        %2553 = vmatpush1.xpose.msra.mxu0 0.0
        %2554 = vmatprep.subr.mxu0 0.0
        %2555 = vmatpush1.xpose.msra.mxu0 0.0
        %2556 = vmatprep.subr.mxu0 0.0
        %2557 = vmatpush1.xpose.msra.mxu0 0.0
        %2558 = vmatprep.subr.mxu0 0.0
        %2559 = vmatpush1.xpose.msra.mxu0 0.0
        %2560 = vmatprep.subr.mxu0 0.0
        %2561 = vmatpush1.xpose.msra.mxu0 0.0
        %2562 = vmatprep.subr.mxu0 0.0
        %2563 = vmatpush1.xpose.msra.mxu0 0.0
        %2564 = vmatprep.subr.mxu0 0.0
        %2565 = vmatpush1.xpose.msra.mxu0 0.0
        %2566 = vmatprep.subr.mxu0 0.0
        %2567 = vmatpush1.xpose.msra.mxu0 0.0
        %2568 = vmatprep.subr.mxu0 0.0
        %2569 = vmatpush1.xpose.msra.mxu0 0.0
        %2570 = vmatprep.subr.mxu0 0.0
        %2571 = vmatpush1.xpose.msra.mxu0 0.0
        %2572 = vmatprep.subr.mxu0 0.0
        %2573 = vmatpush1.xpose.msra.mxu0 0.0
        %2574 = vmatprep.subr.mxu0 0.0
        %2575 = vmatpush1.xpose.msra.mxu0 0.0
        %2576 = vmatprep.subr.mxu0 0.0
        %2577 = vmatpush1.xpose.msra.mxu0 0.0
        %2578 = vmatprep.subr.mxu0 0.0
        %2579 = vmatpush1.xpose.msra.mxu0 0.0
        %2580 = vmatprep.subr.mxu0 0.0
        %2581 = vmatpush1.xpose.msra.mxu0 0.0
        %2582 = vmatprep.subr.mxu0 0.0
        %2583 = vmatpush1.xpose.msra.mxu0 0.0
        %2584 = vmatprep.subr.mxu0 0.0
        %2585 = vmatpush1.xpose.msra.mxu0 0.0
        %2586 = vmatprep.subr.mxu0 0.0
        %2587 = vmatpush1.xpose.msra.mxu0 0.0
        %2588 = vmatprep.subr.mxu0 0.0
        %2589 = vmatpush1.xpose.msra.mxu0 0.0
        %2590 = vmatprep.subr.mxu0 0.0
        %2591 = vmatpush1.xpose.msra.mxu0 0.0
        %2592 = vmatprep.subr.mxu0 0.0
        %2593 = vmatpush1.xpose.msra.mxu0 0.0
        %2594 = vmatprep.mubr.f32.mxu0 0.0
        %2595 = vmatmul.mubr.f32.gmra.mrb[0].mxu0 %v2522
        %v2596 = vpop.f32.mrb[0].mxu0
        %v2597 = vadd.f32 0.0, %v2596
        %v2598 = vpop.f32.mrb[0].mxu0
        %2599 = vmatprep.mubr.f32.mxu0 0.0
        %2600 = vmatmul.mubr.f32.gmra.mrb[0].mxu0 %v2525
        %v2601 = vpop.f32.mrb[0].mxu0
        %v2602 = vadd.f32 0.0, %v2601
        %v2603 = vpop.f32.mrb[0].mxu0
        %2604 = vdwg.mxu0
        %v2606 = vsel %vm2100, %v893, 0
        %v2609 = vsel %vm2100, %v898, 0
        %v2612 = vsel %vm2100, %v1467, 0
        %2614 = vmatprep.subr.mxu0 0.0
        %2615 = vmatpush1.xpose.msra.mxu0 %v2612
        %2616 = vmatprep.subr.mxu0 0.0
        %2617 = vmatpush1.xpose.msra.mxu0 0.0
        %2618 = vmatprep.subr.mxu0 0.0
        %2619 = vmatpush1.xpose.msra.mxu0 0.0
        %2620 = vmatprep.subr.mxu0 0.0
        %2621 = vmatpush1.xpose.msra.mxu0 0.0
        %2622 = vmatprep.subr.mxu0 0.0
        %2623 = vmatpush1.xpose.msra.mxu0 0.0
        %2624 = vmatprep.subr.mxu0 0.0
        %2625 = vmatpush1.xpose.msra.mxu0 0.0
        %2626 = vmatprep.subr.mxu0 0.0
        %2627 = vmatpush1.xpose.msra.mxu0 0.0
        %2628 = vmatprep.subr.mxu0 0.0
        %2629 = vmatpush1.xpose.msra.mxu0 0.0
        %2630 = vmatprep.subr.mxu0 0.0
        %2631 = vmatpush1.xpose.msra.mxu0 0.0
        %2632 = vmatprep.subr.mxu0 0.0
        %2633 = vmatpush1.xpose.msra.mxu0 0.0
        %2634 = vmatprep.subr.mxu0 0.0
        %2635 = vmatpush1.xpose.msra.mxu0 0.0
        %2636 = vmatprep.subr.mxu0 0.0
        %2637 = vmatpush1.xpose.msra.mxu0 0.0
        %2638 = vmatprep.subr.mxu0 0.0
        %2639 = vmatpush1.xpose.msra.mxu0 0.0
        %2640 = vmatprep.subr.mxu0 0.0
        %2641 = vmatpush1.xpose.msra.mxu0 0.0
        %2642 = vmatprep.subr.mxu0 0.0
        %2643 = vmatpush1.xpose.msra.mxu0 0.0
        %2644 = vmatprep.subr.mxu0 0.0
        %2645 = vmatpush1.xpose.msra.mxu0 0.0
        %2646 = vmatprep.subr.mxu0 0.0
        %2647 = vmatpush1.xpose.msra.mxu0 0.0
        %2648 = vmatprep.subr.mxu0 0.0
        %2649 = vmatpush1.xpose.msra.mxu0 0.0
        %2650 = vmatprep.subr.mxu0 0.0
        %2651 = vmatpush1.xpose.msra.mxu0 0.0
        %2652 = vmatprep.subr.mxu0 0.0
        %2653 = vmatpush1.xpose.msra.mxu0 0.0
        %2654 = vmatprep.subr.mxu0 0.0
        %2655 = vmatpush1.xpose.msra.mxu0 0.0
        %2656 = vmatprep.subr.mxu0 0.0
        %2657 = vmatpush1.xpose.msra.mxu0 0.0
        %2658 = vmatprep.subr.mxu0 0.0
        %2659 = vmatpush1.xpose.msra.mxu0 0.0
        %2660 = vmatprep.subr.mxu0 0.0
        %2661 = vmatpush1.xpose.msra.mxu0 0.0
        %2662 = vmatprep.subr.mxu0 0.0
        %2663 = vmatpush1.xpose.msra.mxu0 0.0
        %2664 = vmatprep.subr.mxu0 0.0
        %2665 = vmatpush1.xpose.msra.mxu0 0.0
        %2666 = vmatprep.subr.mxu0 0.0
        %2667 = vmatpush1.xpose.msra.mxu0 0.0
        %2668 = vmatprep.subr.mxu0 0.0
        %2669 = vmatpush1.xpose.msra.mxu0 0.0
        %2670 = vmatprep.subr.mxu0 0.0
        %2671 = vmatpush1.xpose.msra.mxu0 0.0
        %2672 = vmatprep.subr.mxu0 0.0
        %2673 = vmatpush1.xpose.msra.mxu0 0.0
        %2674 = vmatprep.subr.mxu0 0.0
        %2675 = vmatpush1.xpose.msra.mxu0 0.0
        %2676 = vmatprep.subr.mxu0 0.0
        %2677 = vmatpush1.xpose.msra.mxu0 0.0
        %2678 = vmatprep.mubr.f32.mxu0 0.0
        %2679 = vmatmul.mubr.f32.gmra.mrb[0].mxu0 %v2606
        %v2680 = vpop.f32.mrb[0].mxu0
        %v2681 = vadd.f32 0.0, %v2680
        %v2682 = vpop.f32.mrb[0].mxu0
        %2683 = vmatprep.mubr.f32.mxu0 0.0
        %2684 = vmatmul.mubr.f32.gmra.mrb[0].mxu0 %v2609
        %v2685 = vpop.f32.mrb[0].mxu0
        %v2686 = vadd.f32 0.0, %v2685
        %v2687 = vpop.f32.mrb[0].mxu0
        %2688 = vdwg.mxu0
        %v2690 = vsel %vm2100, %v968, 0
        %v2693 = vsel %vm2100, %v973, 0
        %v2696 = vsel %vm2100, %v1537, 0
        %2698 = vmatprep.subr.mxu0 0.0
        %2699 = vmatpush1.xpose.msra.mxu0 %v2696
        %2700 = vmatprep.subr.mxu0 0.0
        %2701 = vmatpush1.xpose.msra.mxu0 0.0
        %2702 = vmatprep.subr.mxu0 0.0
        %2703 = vmatpush1.xpose.msra.mxu0 0.0
        %2704 = vmatprep.subr.mxu0 0.0
        %2705 = vmatpush1.xpose.msra.mxu0 0.0
        %2706 = vmatprep.subr.mxu0 0.0
        %2707 = vmatpush1.xpose.msra.mxu0 0.0
        %2708 = vmatprep.subr.mxu0 0.0
        %2709 = vmatpush1.xpose.msra.mxu0 0.0
        %2710 = vmatprep.subr.mxu0 0.0
        %2711 = vmatpush1.xpose.msra.mxu0 0.0
        %2712 = vmatprep.subr.mxu0 0.0
        %2713 = vmatpush1.xpose.msra.mxu0 0.0
        %2714 = vmatprep.subr.mxu0 0.0
        %2715 = vmatpush1.xpose.msra.mxu0 0.0
        %2716 = vmatprep.subr.mxu0 0.0
        %2717 = vmatpush1.xpose.msra.mxu0 0.0
        %2718 = vmatprep.subr.mxu0 0.0
        %2719 = vmatpush1.xpose.msra.mxu0 0.0
        %2720 = vmatprep.subr.mxu0 0.0
        %2721 = vmatpush1.xpose.msra.mxu0 0.0
        %2722 = vmatprep.subr.mxu0 0.0
        %2723 = vmatpush1.xpose.msra.mxu0 0.0
        %2724 = vmatprep.subr.mxu0 0.0
        %2725 = vmatpush1.xpose.msra.mxu0 0.0
        %2726 = vmatprep.subr.mxu0 0.0
        %2727 = vmatpush1.xpose.msra.mxu0 0.0
        %2728 = vmatprep.subr.mxu0 0.0
        %2729 = vmatpush1.xpose.msra.mxu0 0.0
        %2730 = vmatprep.subr.mxu0 0.0
        %2731 = vmatpush1.xpose.msra.mxu0 0.0
        %2732 = vmatprep.subr.mxu0 0.0
        %2733 = vmatpush1.xpose.msra.mxu0 0.0
        %2734 = vmatprep.subr.mxu0 0.0
        %2735 = vmatpush1.xpose.msra.mxu0 0.0
        %2736 = vmatprep.subr.mxu0 0.0
        %2737 = vmatpush1.xpose.msra.mxu0 0.0
        %2738 = vmatprep.subr.mxu0 0.0
        %2739 = vmatpush1.xpose.msra.mxu0 0.0
        %2740 = vmatprep.subr.mxu0 0.0
        %2741 = vmatpush1.xpose.msra.mxu0 0.0
        %2742 = vmatprep.subr.mxu0 0.0
        %2743 = vmatpush1.xpose.msra.mxu0 0.0
        %2744 = vmatprep.subr.mxu0 0.0
        %2745 = vmatpush1.xpose.msra.mxu0 0.0
        %2746 = vmatprep.subr.mxu0 0.0
        %2747 = vmatpush1.xpose.msra.mxu0 0.0
        %2748 = vmatprep.subr.mxu0 0.0
        %2749 = vmatpush1.xpose.msra.mxu0 0.0
        %2750 = vmatprep.subr.mxu0 0.0
        %2751 = vmatpush1.xpose.msra.mxu0 0.0
        %2752 = vmatprep.subr.mxu0 0.0
        %2753 = vmatpush1.xpose.msra.mxu0 0.0
        %2754 = vmatprep.subr.mxu0 0.0
        %2755 = vmatpush1.xpose.msra.mxu0 0.0
        %2756 = vmatprep.subr.mxu0 0.0
        %2757 = vmatpush1.xpose.msra.mxu0 0.0
        %2758 = vmatprep.subr.mxu0 0.0
        %2759 = vmatpush1.xpose.msra.mxu0 0.0
        %2760 = vmatprep.subr.mxu0 0.0
        %2761 = vmatpush1.xpose.msra.mxu0 0.0
        %2762 = vmatprep.mubr.f32.mxu0 0.0
        %2763 = vmatmul.mubr.f32.gmra.mrb[0].mxu0 %v2690
        %v2764 = vpop.f32.mrb[0].mxu0
        %v2765 = vadd.f32 0.0, %v2764
        %v2766 = vpop.f32.mrb[0].mxu0
        %2767 = vmatprep.mubr.f32.mxu0 0.0
        %2768 = vmatmul.mubr.f32.gmra.mrb[0].mxu0 %v2693
        %v2769 = vpop.f32.mrb[0].mxu0
        %v2770 = vadd.f32 0.0, %v2769
        %v2771 = vpop.f32.mrb[0].mxu0
        %2772 = vdwg.mxu0
        %vm2773 = vcmask 64512
        %v2774 = vsel %vm2773, %v2177, -inf
        %2775 = vmax.xlane.f32.xlu0 %v2774
        %v2776 = vpop.xlane.xlu0 %2775
        %v2777 = vsel %vm2773, %v2182, -inf
        %2778 = vmax.xlane.f32.xlu0 %v2777
        %v2779 = vpop.xlane.xlu0 %2778
        %v2780 = vsel %vm2773, %v2261, -inf
        %2781 = vmax.xlane.f32.xlu0 %v2780
        %v2782 = vpop.xlane.xlu0 %2781
        %v2783 = vsel %vm2773, %v2266, -inf
        %2784 = vmax.xlane.f32.xlu0 %v2783
        %v2785 = vpop.xlane.xlu0 %2784
        %v2786 = vsel %vm2773, %v2345, -inf
        %2787 = vmax.xlane.f32.xlu0 %v2786
        %v2788 = vpop.xlane.xlu0 %2787
        %v2789 = vsel %vm2773, %v2350, -inf
        %2790 = vmax.xlane.f32.xlu0 %v2789
        %v2791 = vpop.xlane.xlu0 %2790
        %v2792 = vsel %vm2773, %v2429, -inf
        %2793 = vmax.xlane.f32.xlu0 %v2792
        %v2794 = vpop.xlane.xlu0 %2793
        %v2795 = vsel %vm2773, %v2434, -inf
        %2796 = vmax.xlane.f32.xlu0 %v2795
        %v2797 = vpop.xlane.xlu0 %2796
        %v2798 = vsel %vm2773, %v2513, -inf
        %2799 = vmax.xlane.f32.xlu0 %v2798
        %v2800 = vpop.xlane.xlu0 %2799
        %v2801 = vsel %vm2773, %v2518, -inf
        %2802 = vmax.xlane.f32.xlu0 %v2801
        %v2803 = vpop.xlane.xlu0 %2802
        %v2804 = vsel %vm2773, %v2597, -inf
        %2805 = vmax.xlane.f32.xlu0 %v2804
        %v2806 = vpop.xlane.xlu0 %2805
        %v2807 = vsel %vm2773, %v2602, -inf
        %2808 = vmax.xlane.f32.xlu0 %v2807
        %v2809 = vpop.xlane.xlu0 %2808
        %v2810 = vsel %vm2773, %v2681, -inf
        %2811 = vmax.xlane.f32.xlu0 %v2810
        %v2812 = vpop.xlane.xlu0 %2811
        %v2813 = vsel %vm2773, %v2686, -inf
        %2814 = vmax.xlane.f32.xlu0 %v2813
        %v2815 = vpop.xlane.xlu0 %2814
        %v2816 = vsel %vm2773, %v2765, -inf
        %2817 = vmax.xlane.f32.xlu0 %v2816
        %v2818 = vpop.xlane.xlu0 %2817
        %v2819 = vsel %vm2773, %v2770, -inf
        %2820 = vmax.xlane.f32.xlu0 %v2819
        %v2821 = vpop.xlane.xlu0 %2820
        %v2822 = vsub.f32 %v2177, %v2776
        %v2823 = vsub.f32 %v2182, %v2779
        %v2824 = vsub.f32 %v2261, %v2782
        %v2825 = vsub.f32 %v2266, %v2785
        %v2826 = vsub.f32 %v2345, %v2788
        %v2827 = vsub.f32 %v2350, %v2791
        %v2828 = vsub.f32 %v2429, %v2794
        %v2829 = vsub.f32 %v2434, %v2797
        %v2830 = vsub.f32 %v2513, %v2800
        %v2831 = vsub.f32 %v2518, %v2803
        %v2832 = vsub.f32 %v2597, %v2806
        %v2833 = vsub.f32 %v2602, %v2809
        %v2834 = vsub.f32 %v2681, %v2812
        %v2835 = vsub.f32 %v2686, %v2815
        %v2836 = vsub.f32 %v2765, %v2818
        %v2837 = vsub.f32 %v2770, %v2821
        %v2838 = vmul.f32 %v2822, 1.442695
        %v2839 = vpow.pop %v2838
        %v2840 = vmul.f32 %v2823, 1.442695
        %v2841 = vpow.pop %v2840
        %v2842 = vmul.f32 %v2824, 1.442695
        %v2843 = vpow.pop %v2842
        %v2844 = vmul.f32 %v2825, 1.442695
        %v2845 = vpow.pop %v2844
        %v2846 = vmul.f32 %v2826, 1.442695
        %v2847 = vpow.pop %v2846
        %v2848 = vmul.f32 %v2827, 1.442695
        %v2849 = vpow.pop %v2848
        %v2850 = vmul.f32 %v2828, 1.442695
        %v2851 = vpow.pop %v2850
        %v2852 = vmul.f32 %v2829, 1.442695
        %v2853 = vpow.pop %v2852
        %v2854 = vmul.f32 %v2830, 1.442695
        %v2855 = vpow.pop %v2854
        %v2856 = vmul.f32 %v2831, 1.442695
        %v2857 = vpow.pop %v2856
        %v2858 = vmul.f32 %v2832, 1.442695
        %v2859 = vpow.pop %v2858
        %v2860 = vmul.f32 %v2833, 1.442695
        %v2861 = vpow.pop %v2860
        %v2862 = vmul.f32 %v2834, 1.442695
        %v2863 = vpow.pop %v2862
        %v2864 = vmul.f32 %v2835, 1.442695
        %v2865 = vpow.pop %v2864
        %v2866 = vmul.f32 %v2836, 1.442695
        %v2867 = vpow.pop %v2866
        %v2868 = vmul.f32 %v2837, 1.442695
        %v2869 = vpow.pop %v2868
        %v2870 = vsel %vm2773, %v2839, 0.0
        %2871 = vadd.xlane.f32.xlu0 %v2870
        %v2872 = vpop.xlane.xlu0 %2871
        %v2873 = vsel %vm2773, %v2841, 0.0
        %2874 = vadd.xlane.f32.xlu0 %v2873
        %v2875 = vpop.xlane.xlu0 %2874
        %v2876 = vsel %vm2773, %v2843, 0.0
        %2877 = vadd.xlane.f32.xlu0 %v2876
        %v2878 = vpop.xlane.xlu0 %2877
        %v2879 = vsel %vm2773, %v2845, 0.0
        %2880 = vadd.xlane.f32.xlu0 %v2879
        %v2881 = vpop.xlane.xlu0 %2880
        %v2882 = vsel %vm2773, %v2847, 0.0
        %2883 = vadd.xlane.f32.xlu0 %v2882
        %v2884 = vpop.xlane.xlu0 %2883
        %v2885 = vsel %vm2773, %v2849, 0.0
        %2886 = vadd.xlane.f32.xlu0 %v2885
        %v2887 = vpop.xlane.xlu0 %2886
        %v2888 = vsel %vm2773, %v2851, 0.0
        %2889 = vadd.xlane.f32.xlu0 %v2888
        %v2890 = vpop.xlane.xlu0 %2889
        %v2891 = vsel %vm2773, %v2853, 0.0
        %2892 = vadd.xlane.f32.xlu0 %v2891
        %v2893 = vpop.xlane.xlu0 %2892
        %v2894 = vsel %vm2773, %v2855, 0.0
        %2895 = vadd.xlane.f32.xlu0 %v2894
        %v2896 = vpop.xlane.xlu0 %2895
        %v2897 = vsel %vm2773, %v2857, 0.0
        %2898 = vadd.xlane.f32.xlu0 %v2897
        %v2899 = vpop.xlane.xlu0 %2898
        %v2900 = vsel %vm2773, %v2859, 0.0
        %2901 = vadd.xlane.f32.xlu0 %v2900
        %v2902 = vpop.xlane.xlu0 %2901
        %v2903 = vsel %vm2773, %v2861, 0.0
        %2904 = vadd.xlane.f32.xlu0 %v2903
        %v2905 = vpop.xlane.xlu0 %2904
        %v2906 = vsel %vm2773, %v2863, 0.0
        %2907 = vadd.xlane.f32.xlu0 %v2906
        %v2908 = vpop.xlane.xlu0 %2907
        %v2909 = vsel %vm2773, %v2865, 0.0
        %2910 = vadd.xlane.f32.xlu0 %v2909
        %v2911 = vpop.xlane.xlu0 %2910
        %v2912 = vsel %vm2773, %v2867, 0.0
        %2913 = vadd.xlane.f32.xlu0 %v2912
        %v2914 = vpop.xlane.xlu0 %2913
        %v2915 = vsel %vm2773, %v2869, 0.0
        %2916 = vadd.xlane.f32.xlu0 %v2915
        %v2917 = vpop.xlane.xlu0 %2916
        %v2918 = vrcp.pop %v2872
        %v2919 = vrcp.pop %v2875
        %v2920 = vrcp.pop %v2878
        %v2921 = vrcp.pop %v2881
        %v2922 = vrcp.pop %v2884
        %v2923 = vrcp.pop %v2887
        %v2924 = vrcp.pop %v2890
        %v2925 = vrcp.pop %v2893
        %v2926 = vrcp.pop %v2896
        %v2927 = vrcp.pop %v2899
        %v2928 = vrcp.pop %v2902
        %v2929 = vrcp.pop %v2905
        %v2930 = vrcp.pop %v2908
        %v2931 = vrcp.pop %v2911
        %v2932 = vrcp.pop %v2914
        %v2933 = vrcp.pop %v2917
        %v2934 = vmul.f32 %v2839, %v2918
        %v2935 = vmul.f32 %v2841, %v2919
        %v2936 = vmul.f32 %v2843, %v2920
        %v2937 = vmul.f32 %v2845, %v2921
        %v2938 = vmul.f32 %v2847, %v2922
        %v2939 = vmul.f32 %v2849, %v2923
        %v2940 = vmul.f32 %v2851, %v2924
        %v2941 = vmul.f32 %v2853, %v2925
        %v2942 = vmul.f32 %v2855, %v2926
        %v2943 = vmul.f32 %v2857, %v2927
        %v2944 = vmul.f32 %v2859, %v2928
        %v2945 = vmul.f32 %v2861, %v2929
        %v2946 = vmul.f32 %v2863, %v2930
        %v2947 = vmul.f32 %v2865, %v2931
        %v2948 = vmul.f32 %v2867, %v2932
        %v2949 = vmul.f32 %v2869, %v2933
        %v2951 = vsel %vm2773, %v2934, 0
        %v2954 = vsel %vm2773, %v2935, 0
        %2956 = vmatprep.subr.mxu0 0.0
        %2957 = vmatpush1.msra.mxu0 %v1607
        %2958 = vmatprep.subr.mxu0 0.0
        %2959 = vmatpush1.msra.mxu0 0.0
        %2960 = vmatprep.subr.mxu0 0.0
        %2961 = vmatpush1.msra.mxu0 0.0
        %2962 = vmatprep.subr.mxu0 0.0
        %2963 = vmatpush1.msra.mxu0 0.0
        %2964 = vmatprep.subr.mxu0 0.0
        %2965 = vmatpush1.msra.mxu0 0.0
        %2966 = vmatprep.subr.mxu0 0.0
        %2967 = vmatpush1.msra.mxu0 0.0
        %2968 = vmatprep.subr.mxu0 0.0
        %2969 = vmatpush1.msra.mxu0 0.0
        %2970 = vmatprep.subr.mxu0 0.0
        %2971 = vmatpush1.msra.mxu0 0.0
        %2972 = vmatprep.subr.mxu0 0.0
        %2973 = vmatpush1.msra.mxu0 0.0
        %2974 = vmatprep.subr.mxu0 0.0
        %2975 = vmatpush1.msra.mxu0 0.0
        %2976 = vmatprep.subr.mxu0 0.0
        %2977 = vmatpush1.msra.mxu0 0.0
        %2978 = vmatprep.subr.mxu0 0.0
        %2979 = vmatpush1.msra.mxu0 0.0
        %2980 = vmatprep.subr.mxu0 0.0
        %2981 = vmatpush1.msra.mxu0 0.0
        %2982 = vmatprep.subr.mxu0 0.0
        %2983 = vmatpush1.msra.mxu0 0.0
        %2984 = vmatprep.subr.mxu0 0.0
        %2985 = vmatpush1.msra.mxu0 0.0
        %2986 = vmatprep.subr.mxu0 0.0
        %2987 = vmatpush1.msra.mxu0 0.0
        %2988 = vmatprep.subr.mxu0 0.0
        %2989 = vmatpush1.msra.mxu0 0.0
        %2990 = vmatprep.subr.mxu0 0.0
        %2991 = vmatpush1.msra.mxu0 0.0
        %2992 = vmatprep.subr.mxu0 0.0
        %2993 = vmatpush1.msra.mxu0 0.0
        %2994 = vmatprep.subr.mxu0 0.0
        %2995 = vmatpush1.msra.mxu0 0.0
        %2996 = vmatprep.subr.mxu0 0.0
        %2997 = vmatpush1.msra.mxu0 0.0
        %2998 = vmatprep.subr.mxu0 0.0
        %2999 = vmatpush1.msra.mxu0 0.0
        %3000 = vmatprep.subr.mxu0 0.0
        %3001 = vmatpush1.msra.mxu0 0.0
        %3002 = vmatprep.subr.mxu0 0.0
        %3003 = vmatpush1.msra.mxu0 0.0
        %3004 = vmatprep.subr.mxu0 0.0
        %3005 = vmatpush1.msra.mxu0 0.0
        %3006 = vmatprep.subr.mxu0 0.0
        %3007 = vmatpush1.msra.mxu0 0.0
        %3008 = vmatprep.subr.mxu0 0.0
        %3009 = vmatpush1.msra.mxu0 0.0
        %3010 = vmatprep.subr.mxu0 0.0
        %3011 = vmatpush1.msra.mxu0 0.0
        %3012 = vmatprep.subr.mxu0 0.0
        %3013 = vmatpush1.msra.mxu0 0.0
        %3014 = vmatprep.subr.mxu0 0.0
        %3015 = vmatpush1.msra.mxu0 0.0
        %3016 = vmatprep.subr.mxu0 0.0
        %3017 = vmatpush1.msra.mxu0 0.0
        %3018 = vmatprep.subr.mxu0 0.0
        %3019 = vmatpush1.msra.mxu0 0.0
        %3020 = vmatprep.mubr.f32.mxu0 0.0
        %3021 = vmatmul.mubr.f32.gmra.mrb[0].mxu0 %v2951
        %v3022 = vpop.f32.mrb[0].mxu0
        %v3023 = vadd.f32 0.0, %v3022
        %v3024 = vpop.f32.mrb[0].mxu0
        %3025 = vmatprep.mubr.f32.mxu0 0.0
        %3026 = vmatmul.mubr.f32.gmra.mrb[0].mxu0 %v2954
        %v3027 = vpop.f32.mrb[0].mxu0
        %v3028 = vadd.f32 0.0, %v3027
        %v3029 = vpop.f32.mrb[0].mxu0
        %3030 = vdwg.mxu0
        %v3032 = vsel %vm2773, %v2936, 0
        %v3035 = vsel %vm2773, %v2937, 0
        %3037 = vmatprep.subr.mxu0 0.0
        %3038 = vmatpush1.msra.mxu0 %v1677
        %3039 = vmatprep.subr.mxu0 0.0
        %3040 = vmatpush1.msra.mxu0 0.0
        %3041 = vmatprep.subr.mxu0 0.0
        %3042 = vmatpush1.msra.mxu0 0.0
        %3043 = vmatprep.subr.mxu0 0.0
        %3044 = vmatpush1.msra.mxu0 0.0
        %3045 = vmatprep.subr.mxu0 0.0
        %3046 = vmatpush1.msra.mxu0 0.0
        %3047 = vmatprep.subr.mxu0 0.0
        %3048 = vmatpush1.msra.mxu0 0.0
        %3049 = vmatprep.subr.mxu0 0.0
        %3050 = vmatpush1.msra.mxu0 0.0
        %3051 = vmatprep.subr.mxu0 0.0
        %3052 = vmatpush1.msra.mxu0 0.0
        %3053 = vmatprep.subr.mxu0 0.0
        %3054 = vmatpush1.msra.mxu0 0.0
        %3055 = vmatprep.subr.mxu0 0.0
        %3056 = vmatpush1.msra.mxu0 0.0
        %3057 = vmatprep.subr.mxu0 0.0
        %3058 = vmatpush1.msra.mxu0 0.0
        %3059 = vmatprep.subr.mxu0 0.0
        %3060 = vmatpush1.msra.mxu0 0.0
        %3061 = vmatprep.subr.mxu0 0.0
        %3062 = vmatpush1.msra.mxu0 0.0
        %3063 = vmatprep.subr.mxu0 0.0
        %3064 = vmatpush1.msra.mxu0 0.0
        %3065 = vmatprep.subr.mxu0 0.0
        %3066 = vmatpush1.msra.mxu0 0.0
        %3067 = vmatprep.subr.mxu0 0.0
        %3068 = vmatpush1.msra.mxu0 0.0
        %3069 = vmatprep.subr.mxu0 0.0
        %3070 = vmatpush1.msra.mxu0 0.0
        %3071 = vmatprep.subr.mxu0 0.0
        %3072 = vmatpush1.msra.mxu0 0.0
        %3073 = vmatprep.subr.mxu0 0.0
        %3074 = vmatpush1.msra.mxu0 0.0
        %3075 = vmatprep.subr.mxu0 0.0
        %3076 = vmatpush1.msra.mxu0 0.0
        %3077 = vmatprep.subr.mxu0 0.0
        %3078 = vmatpush1.msra.mxu0 0.0
        %3079 = vmatprep.subr.mxu0 0.0
        %3080 = vmatpush1.msra.mxu0 0.0
        %3081 = vmatprep.subr.mxu0 0.0
        %3082 = vmatpush1.msra.mxu0 0.0
        %3083 = vmatprep.subr.mxu0 0.0
        %3084 = vmatpush1.msra.mxu0 0.0
        %3085 = vmatprep.subr.mxu0 0.0
        %3086 = vmatpush1.msra.mxu0 0.0
        %3087 = vmatprep.subr.mxu0 0.0
        %3088 = vmatpush1.msra.mxu0 0.0
        %3089 = vmatprep.subr.mxu0 0.0
        %3090 = vmatpush1.msra.mxu0 0.0
        %3091 = vmatprep.subr.mxu0 0.0
        %3092 = vmatpush1.msra.mxu0 0.0
        %3093 = vmatprep.subr.mxu0 0.0
        %3094 = vmatpush1.msra.mxu0 0.0
        %3095 = vmatprep.subr.mxu0 0.0
        %3096 = vmatpush1.msra.mxu0 0.0
        %3097 = vmatprep.subr.mxu0 0.0
        %3098 = vmatpush1.msra.mxu0 0.0
        %3099 = vmatprep.subr.mxu0 0.0
        %3100 = vmatpush1.msra.mxu0 0.0
        %3101 = vmatprep.mubr.f32.mxu0 0.0
        %3102 = vmatmul.mubr.f32.gmra.mrb[0].mxu0 %v3032
        %v3103 = vpop.f32.mrb[0].mxu0
        %v3104 = vadd.f32 0.0, %v3103
        %v3105 = vpop.f32.mrb[0].mxu0
        %3106 = vmatprep.mubr.f32.mxu0 0.0
        %3107 = vmatmul.mubr.f32.gmra.mrb[0].mxu0 %v3035
        %v3108 = vpop.f32.mrb[0].mxu0
        %v3109 = vadd.f32 0.0, %v3108
        %v3110 = vpop.f32.mrb[0].mxu0
        %3111 = vdwg.mxu0
        %v3113 = vsel %vm2773, %v2938, 0
        %v3116 = vsel %vm2773, %v2939, 0
        %3118 = vmatprep.subr.mxu0 0.0
        %3119 = vmatpush1.msra.mxu0 %v1747
        %3120 = vmatprep.subr.mxu0 0.0
        %3121 = vmatpush1.msra.mxu0 0.0
        %3122 = vmatprep.subr.mxu0 0.0
        %3123 = vmatpush1.msra.mxu0 0.0
        %3124 = vmatprep.subr.mxu0 0.0
        %3125 = vmatpush1.msra.mxu0 0.0
        %3126 = vmatprep.subr.mxu0 0.0
        %3127 = vmatpush1.msra.mxu0 0.0
        %3128 = vmatprep.subr.mxu0 0.0
        %3129 = vmatpush1.msra.mxu0 0.0
        %3130 = vmatprep.subr.mxu0 0.0
        %3131 = vmatpush1.msra.mxu0 0.0
        %3132 = vmatprep.subr.mxu0 0.0
        %3133 = vmatpush1.msra.mxu0 0.0
        %3134 = vmatprep.subr.mxu0 0.0
        %3135 = vmatpush1.msra.mxu0 0.0
        %3136 = vmatprep.subr.mxu0 0.0
        %3137 = vmatpush1.msra.mxu0 0.0
        %3138 = vmatprep.subr.mxu0 0.0
        %3139 = vmatpush1.msra.mxu0 0.0
        %3140 = vmatprep.subr.mxu0 0.0
        %3141 = vmatpush1.msra.mxu0 0.0
        %3142 = vmatprep.subr.mxu0 0.0
        %3143 = vmatpush1.msra.mxu0 0.0
        %3144 = vmatprep.subr.mxu0 0.0
        %3145 = vmatpush1.msra.mxu0 0.0
        %3146 = vmatprep.subr.mxu0 0.0
        %3147 = vmatpush1.msra.mxu0 0.0
        %3148 = vmatprep.subr.mxu0 0.0
        %3149 = vmatpush1.msra.mxu0 0.0
        %3150 = vmatprep.subr.mxu0 0.0
        %3151 = vmatpush1.msra.mxu0 0.0
        %3152 = vmatprep.subr.mxu0 0.0
        %3153 = vmatpush1.msra.mxu0 0.0
        %3154 = vmatprep.subr.mxu0 0.0
        %3155 = vmatpush1.msra.mxu0 0.0
        %3156 = vmatprep.subr.mxu0 0.0
        %3157 = vmatpush1.msra.mxu0 0.0
        %3158 = vmatprep.subr.mxu0 0.0
        %3159 = vmatpush1.msra.mxu0 0.0
        %3160 = vmatprep.subr.mxu0 0.0
        %3161 = vmatpush1.msra.mxu0 0.0
        %3162 = vmatprep.subr.mxu0 0.0
        %3163 = vmatpush1.msra.mxu0 0.0
        %3164 = vmatprep.subr.mxu0 0.0
        %3165 = vmatpush1.msra.mxu0 0.0
        %3166 = vmatprep.subr.mxu0 0.0
        %3167 = vmatpush1.msra.mxu0 0.0
        %3168 = vmatprep.subr.mxu0 0.0
        %3169 = vmatpush1.msra.mxu0 0.0
        %3170 = vmatprep.subr.mxu0 0.0
        %3171 = vmatpush1.msra.mxu0 0.0
        %3172 = vmatprep.subr.mxu0 0.0
        %3173 = vmatpush1.msra.mxu0 0.0
        %3174 = vmatprep.subr.mxu0 0.0
        %3175 = vmatpush1.msra.mxu0 0.0
        %3176 = vmatprep.subr.mxu0 0.0
        %3177 = vmatpush1.msra.mxu0 0.0
        %3178 = vmatprep.subr.mxu0 0.0
        %3179 = vmatpush1.msra.mxu0 0.0
        %3180 = vmatprep.subr.mxu0 0.0
        %3181 = vmatpush1.msra.mxu0 0.0
        %3182 = vmatprep.mubr.f32.mxu0 0.0
        %3183 = vmatmul.mubr.f32.gmra.mrb[0].mxu0 %v3113
        %v3184 = vpop.f32.mrb[0].mxu0
        %v3185 = vadd.f32 0.0, %v3184
        %v3186 = vpop.f32.mrb[0].mxu0
        %3187 = vmatprep.mubr.f32.mxu0 0.0
        %3188 = vmatmul.mubr.f32.gmra.mrb[0].mxu0 %v3116
        %v3189 = vpop.f32.mrb[0].mxu0
        %v3190 = vadd.f32 0.0, %v3189
        %v3191 = vpop.f32.mrb[0].mxu0
        %3192 = vdwg.mxu0
        %v3194 = vsel %vm2773, %v2940, 0
        %v3197 = vsel %vm2773, %v2941, 0
        %3199 = vmatprep.subr.mxu0 0.0
        %3200 = vmatpush1.msra.mxu0 %v1817
        %3201 = vmatprep.subr.mxu0 0.0
        %3202 = vmatpush1.msra.mxu0 0.0
        %3203 = vmatprep.subr.mxu0 0.0
        %3204 = vmatpush1.msra.mxu0 0.0
        %3205 = vmatprep.subr.mxu0 0.0
        %3206 = vmatpush1.msra.mxu0 0.0
        %3207 = vmatprep.subr.mxu0 0.0
        %3208 = vmatpush1.msra.mxu0 0.0
        %3209 = vmatprep.subr.mxu0 0.0
        %3210 = vmatpush1.msra.mxu0 0.0
        %3211 = vmatprep.subr.mxu0 0.0
        %3212 = vmatpush1.msra.mxu0 0.0
        %3213 = vmatprep.subr.mxu0 0.0
        %3214 = vmatpush1.msra.mxu0 0.0
        %3215 = vmatprep.subr.mxu0 0.0
        %3216 = vmatpush1.msra.mxu0 0.0
        %3217 = vmatprep.subr.mxu0 0.0
        %3218 = vmatpush1.msra.mxu0 0.0
        %3219 = vmatprep.subr.mxu0 0.0
        %3220 = vmatpush1.msra.mxu0 0.0
        %3221 = vmatprep.subr.mxu0 0.0
        %3222 = vmatpush1.msra.mxu0 0.0
        %3223 = vmatprep.subr.mxu0 0.0
        %3224 = vmatpush1.msra.mxu0 0.0
        %3225 = vmatprep.subr.mxu0 0.0
        %3226 = vmatpush1.msra.mxu0 0.0
        %3227 = vmatprep.subr.mxu0 0.0
        %3228 = vmatpush1.msra.mxu0 0.0
        %3229 = vmatprep.subr.mxu0 0.0
        %3230 = vmatpush1.msra.mxu0 0.0
        %3231 = vmatprep.subr.mxu0 0.0
        %3232 = vmatpush1.msra.mxu0 0.0
        %3233 = vmatprep.subr.mxu0 0.0
        %3234 = vmatpush1.msra.mxu0 0.0
        %3235 = vmatprep.subr.mxu0 0.0
        %3236 = vmatpush1.msra.mxu0 0.0
        %3237 = vmatprep.subr.mxu0 0.0
        %3238 = vmatpush1.msra.mxu0 0.0
        %3239 = vmatprep.subr.mxu0 0.0
        %3240 = vmatpush1.msra.mxu0 0.0
        %3241 = vmatprep.subr.mxu0 0.0
        %3242 = vmatpush1.msra.mxu0 0.0
        %3243 = vmatprep.subr.mxu0 0.0
        %3244 = vmatpush1.msra.mxu0 0.0
        %3245 = vmatprep.subr.mxu0 0.0
        %3246 = vmatpush1.msra.mxu0 0.0
        %3247 = vmatprep.subr.mxu0 0.0
        %3248 = vmatpush1.msra.mxu0 0.0
        %3249 = vmatprep.subr.mxu0 0.0
        %3250 = vmatpush1.msra.mxu0 0.0
        %3251 = vmatprep.subr.mxu0 0.0
        %3252 = vmatpush1.msra.mxu0 0.0
        %3253 = vmatprep.subr.mxu0 0.0
        %3254 = vmatpush1.msra.mxu0 0.0
        %3255 = vmatprep.subr.mxu0 0.0
        %3256 = vmatpush1.msra.mxu0 0.0
        %3257 = vmatprep.subr.mxu0 0.0
        %3258 = vmatpush1.msra.mxu0 0.0
        %3259 = vmatprep.subr.mxu0 0.0
        %3260 = vmatpush1.msra.mxu0 0.0
        %3261 = vmatprep.subr.mxu0 0.0
        %3262 = vmatpush1.msra.mxu0 0.0
        %3263 = vmatprep.mubr.f32.mxu0 0.0
        %3264 = vmatmul.mubr.f32.gmra.mrb[0].mxu0 %v3194
        %v3265 = vpop.f32.mrb[0].mxu0
        %v3266 = vadd.f32 0.0, %v3265
        %v3267 = vpop.f32.mrb[0].mxu0
        %3268 = vmatprep.mubr.f32.mxu0 0.0
        %3269 = vmatmul.mubr.f32.gmra.mrb[0].mxu0 %v3197
        %v3270 = vpop.f32.mrb[0].mxu0
        %v3271 = vadd.f32 0.0, %v3270
        %v3272 = vpop.f32.mrb[0].mxu0
        %3273 = vdwg.mxu0
        %v3275 = vsel %vm2773, %v2942, 0
        %v3278 = vsel %vm2773, %v2943, 0
        %3280 = vmatprep.subr.mxu0 0.0
        %3281 = vmatpush1.msra.mxu0 %v1887
        %3282 = vmatprep.subr.mxu0 0.0
        %3283 = vmatpush1.msra.mxu0 0.0
        %3284 = vmatprep.subr.mxu0 0.0
        %3285 = vmatpush1.msra.mxu0 0.0
        %3286 = vmatprep.subr.mxu0 0.0
        %3287 = vmatpush1.msra.mxu0 0.0
        %3288 = vmatprep.subr.mxu0 0.0
        %3289 = vmatpush1.msra.mxu0 0.0
        %3290 = vmatprep.subr.mxu0 0.0
        %3291 = vmatpush1.msra.mxu0 0.0
        %3292 = vmatprep.subr.mxu0 0.0
        %3293 = vmatpush1.msra.mxu0 0.0
        %3294 = vmatprep.subr.mxu0 0.0
        %3295 = vmatpush1.msra.mxu0 0.0
        %3296 = vmatprep.subr.mxu0 0.0
        %3297 = vmatpush1.msra.mxu0 0.0
        %3298 = vmatprep.subr.mxu0 0.0
        %3299 = vmatpush1.msra.mxu0 0.0
        %3300 = vmatprep.subr.mxu0 0.0
        %3301 = vmatpush1.msra.mxu0 0.0
        %3302 = vmatprep.subr.mxu0 0.0
        %3303 = vmatpush1.msra.mxu0 0.0
        %3304 = vmatprep.subr.mxu0 0.0
        %3305 = vmatpush1.msra.mxu0 0.0
        %3306 = vmatprep.subr.mxu0 0.0
        %3307 = vmatpush1.msra.mxu0 0.0
        %3308 = vmatprep.subr.mxu0 0.0
        %3309 = vmatpush1.msra.mxu0 0.0
        %3310 = vmatprep.subr.mxu0 0.0
        %3311 = vmatpush1.msra.mxu0 0.0
        %3312 = vmatprep.subr.mxu0 0.0
        %3313 = vmatpush1.msra.mxu0 0.0
        %3314 = vmatprep.subr.mxu0 0.0
        %3315 = vmatpush1.msra.mxu0 0.0
        %3316 = vmatprep.subr.mxu0 0.0
        %3317 = vmatpush1.msra.mxu0 0.0
        %3318 = vmatprep.subr.mxu0 0.0
        %3319 = vmatpush1.msra.mxu0 0.0
        %3320 = vmatprep.subr.mxu0 0.0
        %3321 = vmatpush1.msra.mxu0 0.0
        %3322 = vmatprep.subr.mxu0 0.0
        %3323 = vmatpush1.msra.mxu0 0.0
        %3324 = vmatprep.subr.mxu0 0.0
        %3325 = vmatpush1.msra.mxu0 0.0
        %3326 = vmatprep.subr.mxu0 0.0
        %3327 = vmatpush1.msra.mxu0 0.0
        %3328 = vmatprep.subr.mxu0 0.0
        %3329 = vmatpush1.msra.mxu0 0.0
        %3330 = vmatprep.subr.mxu0 0.0
        %3331 = vmatpush1.msra.mxu0 0.0
        %3332 = vmatprep.subr.mxu0 0.0
        %3333 = vmatpush1.msra.mxu0 0.0
        %3334 = vmatprep.subr.mxu0 0.0
        %3335 = vmatpush1.msra.mxu0 0.0
        %3336 = vmatprep.subr.mxu0 0.0
        %3337 = vmatpush1.msra.mxu0 0.0
        %3338 = vmatprep.subr.mxu0 0.0
        %3339 = vmatpush1.msra.mxu0 0.0
        %3340 = vmatprep.subr.mxu0 0.0
        %3341 = vmatpush1.msra.mxu0 0.0
        %3342 = vmatprep.subr.mxu0 0.0
        %3343 = vmatpush1.msra.mxu0 0.0
        %3344 = vmatprep.mubr.f32.mxu0 0.0
        %3345 = vmatmul.mubr.f32.gmra.mrb[0].mxu0 %v3275
        %v3346 = vpop.f32.mrb[0].mxu0
        %v3347 = vadd.f32 0.0, %v3346
        %v3348 = vpop.f32.mrb[0].mxu0
        %3349 = vmatprep.mubr.f32.mxu0 0.0
        %3350 = vmatmul.mubr.f32.gmra.mrb[0].mxu0 %v3278
        %v3351 = vpop.f32.mrb[0].mxu0
        %v3352 = vadd.f32 0.0, %v3351
        %v3353 = vpop.f32.mrb[0].mxu0
        %3354 = vdwg.mxu0
        %v3356 = vsel %vm2773, %v2944, 0
        %v3359 = vsel %vm2773, %v2945, 0
        %3361 = vmatprep.subr.mxu0 0.0
        %3362 = vmatpush1.msra.mxu0 %v1957
        %3363 = vmatprep.subr.mxu0 0.0
        %3364 = vmatpush1.msra.mxu0 0.0
        %3365 = vmatprep.subr.mxu0 0.0
        %3366 = vmatpush1.msra.mxu0 0.0
        %3367 = vmatprep.subr.mxu0 0.0
        %3368 = vmatpush1.msra.mxu0 0.0
        %3369 = vmatprep.subr.mxu0 0.0
        %3370 = vmatpush1.msra.mxu0 0.0
        %3371 = vmatprep.subr.mxu0 0.0
        %3372 = vmatpush1.msra.mxu0 0.0
        %3373 = vmatprep.subr.mxu0 0.0
        %3374 = vmatpush1.msra.mxu0 0.0
        %3375 = vmatprep.subr.mxu0 0.0
        %3376 = vmatpush1.msra.mxu0 0.0
        %3377 = vmatprep.subr.mxu0 0.0
        %3378 = vmatpush1.msra.mxu0 0.0
        %3379 = vmatprep.subr.mxu0 0.0
        %3380 = vmatpush1.msra.mxu0 0.0
        %3381 = vmatprep.subr.mxu0 0.0
        %3382 = vmatpush1.msra.mxu0 0.0
        %3383 = vmatprep.subr.mxu0 0.0
        %3384 = vmatpush1.msra.mxu0 0.0
        %3385 = vmatprep.subr.mxu0 0.0
        %3386 = vmatpush1.msra.mxu0 0.0
        %3387 = vmatprep.subr.mxu0 0.0
        %3388 = vmatpush1.msra.mxu0 0.0
        %3389 = vmatprep.subr.mxu0 0.0
        %3390 = vmatpush1.msra.mxu0 0.0
        %3391 = vmatprep.subr.mxu0 0.0
        %3392 = vmatpush1.msra.mxu0 0.0
        %3393 = vmatprep.subr.mxu0 0.0
        %3394 = vmatpush1.msra.mxu0 0.0
        %3395 = vmatprep.subr.mxu0 0.0
        %3396 = vmatpush1.msra.mxu0 0.0
        %3397 = vmatprep.subr.mxu0 0.0
        %3398 = vmatpush1.msra.mxu0 0.0
        %3399 = vmatprep.subr.mxu0 0.0
        %3400 = vmatpush1.msra.mxu0 0.0
        %3401 = vmatprep.subr.mxu0 0.0
        %3402 = vmatpush1.msra.mxu0 0.0
        %3403 = vmatprep.subr.mxu0 0.0
        %3404 = vmatpush1.msra.mxu0 0.0
        %3405 = vmatprep.subr.mxu0 0.0
        %3406 = vmatpush1.msra.mxu0 0.0
        %3407 = vmatprep.subr.mxu0 0.0
        %3408 = vmatpush1.msra.mxu0 0.0
        %3409 = vmatprep.subr.mxu0 0.0
        %3410 = vmatpush1.msra.mxu0 0.0
        %3411 = vmatprep.subr.mxu0 0.0
        %3412 = vmatpush1.msra.mxu0 0.0
        %3413 = vmatprep.subr.mxu0 0.0
        %3414 = vmatpush1.msra.mxu0 0.0
        %3415 = vmatprep.subr.mxu0 0.0
        %3416 = vmatpush1.msra.mxu0 0.0
        %3417 = vmatprep.subr.mxu0 0.0
        %3418 = vmatpush1.msra.mxu0 0.0
        %3419 = vmatprep.subr.mxu0 0.0
        %3420 = vmatpush1.msra.mxu0 0.0
        %3421 = vmatprep.subr.mxu0 0.0
        %3422 = vmatpush1.msra.mxu0 0.0
        %3423 = vmatprep.subr.mxu0 0.0
        %3424 = vmatpush1.msra.mxu0 0.0
        %3425 = vmatprep.mubr.f32.mxu0 0.0
        %3426 = vmatmul.mubr.f32.gmra.mrb[0].mxu0 %v3356
        %v3427 = vpop.f32.mrb[0].mxu0
        %v3428 = vadd.f32 0.0, %v3427
        %v3429 = vpop.f32.mrb[0].mxu0
        %3430 = vmatprep.mubr.f32.mxu0 0.0
        %3431 = vmatmul.mubr.f32.gmra.mrb[0].mxu0 %v3359
        %v3432 = vpop.f32.mrb[0].mxu0
        %v3433 = vadd.f32 0.0, %v3432
        %v3434 = vpop.f32.mrb[0].mxu0
        %3435 = vdwg.mxu0
        %v3437 = vsel %vm2773, %v2946, 0
        %v3440 = vsel %vm2773, %v2947, 0
        %3442 = vmatprep.subr.mxu0 0.0
        %3443 = vmatpush1.msra.mxu0 %v2027
        %3444 = vmatprep.subr.mxu0 0.0
        %3445 = vmatpush1.msra.mxu0 0.0
        %3446 = vmatprep.subr.mxu0 0.0
        %3447 = vmatpush1.msra.mxu0 0.0
        %3448 = vmatprep.subr.mxu0 0.0
        %3449 = vmatpush1.msra.mxu0 0.0
        %3450 = vmatprep.subr.mxu0 0.0
        %3451 = vmatpush1.msra.mxu0 0.0
        %3452 = vmatprep.subr.mxu0 0.0
        %3453 = vmatpush1.msra.mxu0 0.0
        %3454 = vmatprep.subr.mxu0 0.0
        %3455 = vmatpush1.msra.mxu0 0.0
        %3456 = vmatprep.subr.mxu0 0.0
        %3457 = vmatpush1.msra.mxu0 0.0
        %3458 = vmatprep.subr.mxu0 0.0
        %3459 = vmatpush1.msra.mxu0 0.0
        %3460 = vmatprep.subr.mxu0 0.0
        %3461 = vmatpush1.msra.mxu0 0.0
        %3462 = vmatprep.subr.mxu0 0.0
        %3463 = vmatpush1.msra.mxu0 0.0
        %3464 = vmatprep.subr.mxu0 0.0
        %3465 = vmatpush1.msra.mxu0 0.0
        %3466 = vmatprep.subr.mxu0 0.0
        %3467 = vmatpush1.msra.mxu0 0.0
        %3468 = vmatprep.subr.mxu0 0.0
        %3469 = vmatpush1.msra.mxu0 0.0
        %3470 = vmatprep.subr.mxu0 0.0
        %3471 = vmatpush1.msra.mxu0 0.0
        %3472 = vmatprep.subr.mxu0 0.0
        %3473 = vmatpush1.msra.mxu0 0.0
        %3474 = vmatprep.subr.mxu0 0.0
        %3475 = vmatpush1.msra.mxu0 0.0
        %3476 = vmatprep.subr.mxu0 0.0
        %3477 = vmatpush1.msra.mxu0 0.0
        %3478 = vmatprep.subr.mxu0 0.0
        %3479 = vmatpush1.msra.mxu0 0.0
        %3480 = vmatprep.subr.mxu0 0.0
        %3481 = vmatpush1.msra.mxu0 0.0
        %3482 = vmatprep.subr.mxu0 0.0
        %3483 = vmatpush1.msra.mxu0 0.0
        %3484 = vmatprep.subr.mxu0 0.0
        %3485 = vmatpush1.msra.mxu0 0.0
        %3486 = vmatprep.subr.mxu0 0.0
        %3487 = vmatpush1.msra.mxu0 0.0
        %3488 = vmatprep.subr.mxu0 0.0
        %3489 = vmatpush1.msra.mxu0 0.0
        %3490 = vmatprep.subr.mxu0 0.0
        %3491 = vmatpush1.msra.mxu0 0.0
        %3492 = vmatprep.subr.mxu0 0.0
        %3493 = vmatpush1.msra.mxu0 0.0
        %3494 = vmatprep.subr.mxu0 0.0
        %3495 = vmatpush1.msra.mxu0 0.0
        %3496 = vmatprep.subr.mxu0 0.0
        %3497 = vmatpush1.msra.mxu0 0.0
        %3498 = vmatprep.subr.mxu0 0.0
        %3499 = vmatpush1.msra.mxu0 0.0
        %3500 = vmatprep.subr.mxu0 0.0
        %3501 = vmatpush1.msra.mxu0 0.0
        %3502 = vmatprep.subr.mxu0 0.0
        %3503 = vmatpush1.msra.mxu0 0.0
        %3504 = vmatprep.subr.mxu0 0.0
        %3505 = vmatpush1.msra.mxu0 0.0
        %3506 = vmatprep.mubr.f32.mxu0 0.0
        %3507 = vmatmul.mubr.f32.gmra.mrb[0].mxu0 %v3437
        %v3508 = vpop.f32.mrb[0].mxu0
        %v3509 = vadd.f32 0.0, %v3508
        %v3510 = vpop.f32.mrb[0].mxu0
        %3511 = vmatprep.mubr.f32.mxu0 0.0
        %3512 = vmatmul.mubr.f32.gmra.mrb[0].mxu0 %v3440
        %v3513 = vpop.f32.mrb[0].mxu0
        %v3514 = vadd.f32 0.0, %v3513
        %v3515 = vpop.f32.mrb[0].mxu0
        %3516 = vdwg.mxu0
        %v3518 = vsel %vm2773, %v2948, 0
        %v3521 = vsel %vm2773, %v2949, 0
        %3523 = vmatprep.subr.mxu0 0.0
        %3524 = vmatpush1.msra.mxu0 %v2097
        %3525 = vmatprep.subr.mxu0 0.0
        %3526 = vmatpush1.msra.mxu0 0.0
        %3527 = vmatprep.subr.mxu0 0.0
        %3528 = vmatpush1.msra.mxu0 0.0
        %3529 = vmatprep.subr.mxu0 0.0
        %3530 = vmatpush1.msra.mxu0 0.0
        %3531 = vmatprep.subr.mxu0 0.0
        %3532 = vmatpush1.msra.mxu0 0.0
        %3533 = vmatprep.subr.mxu0 0.0
        %3534 = vmatpush1.msra.mxu0 0.0
        %3535 = vmatprep.subr.mxu0 0.0
        %3536 = vmatpush1.msra.mxu0 0.0
        %3537 = vmatprep.subr.mxu0 0.0
        %3538 = vmatpush1.msra.mxu0 0.0
        %3539 = vmatprep.subr.mxu0 0.0
        %3540 = vmatpush1.msra.mxu0 0.0
        %3541 = vmatprep.subr.mxu0 0.0
        %3542 = vmatpush1.msra.mxu0 0.0
        %3543 = vmatprep.subr.mxu0 0.0
        %3544 = vmatpush1.msra.mxu0 0.0
        %3545 = vmatprep.subr.mxu0 0.0
        %3546 = vmatpush1.msra.mxu0 0.0
        %3547 = vmatprep.subr.mxu0 0.0
        %3548 = vmatpush1.msra.mxu0 0.0
        %3549 = vmatprep.subr.mxu0 0.0
        %3550 = vmatpush1.msra.mxu0 0.0
        %3551 = vmatprep.subr.mxu0 0.0
        %3552 = vmatpush1.msra.mxu0 0.0
        %3553 = vmatprep.subr.mxu0 0.0
        %3554 = vmatpush1.msra.mxu0 0.0
        %3555 = vmatprep.subr.mxu0 0.0
        %3556 = vmatpush1.msra.mxu0 0.0
        %3557 = vmatprep.subr.mxu0 0.0
        %3558 = vmatpush1.msra.mxu0 0.0
        %3559 = vmatprep.subr.mxu0 0.0
        %3560 = vmatpush1.msra.mxu0 0.0
        %3561 = vmatprep.subr.mxu0 0.0
        %3562 = vmatpush1.msra.mxu0 0.0
        %3563 = vmatprep.subr.mxu0 0.0
        %3564 = vmatpush1.msra.mxu0 0.0
        %3565 = vmatprep.subr.mxu0 0.0
        %3566 = vmatpush1.msra.mxu0 0.0
        %3567 = vmatprep.subr.mxu0 0.0
        %3568 = vmatpush1.msra.mxu0 0.0
        %3569 = vmatprep.subr.mxu0 0.0
        %3570 = vmatpush1.msra.mxu0 0.0
        %3571 = vmatprep.subr.mxu0 0.0
        %3572 = vmatpush1.msra.mxu0 0.0
        %3573 = vmatprep.subr.mxu0 0.0
        %3574 = vmatpush1.msra.mxu0 0.0
        %3575 = vmatprep.subr.mxu0 0.0
        %3576 = vmatpush1.msra.mxu0 0.0
        %3577 = vmatprep.subr.mxu0 0.0
        %3578 = vmatpush1.msra.mxu0 0.0
        %3579 = vmatprep.subr.mxu0 0.0
        %3580 = vmatpush1.msra.mxu0 0.0
        %3581 = vmatprep.subr.mxu0 0.0
        %3582 = vmatpush1.msra.mxu0 0.0
        %3583 = vmatprep.subr.mxu0 0.0
        %3584 = vmatpush1.msra.mxu0 0.0
        %3585 = vmatprep.subr.mxu0 0.0
        %3586 = vmatpush1.msra.mxu0 0.0
        %3587 = vmatprep.mubr.f32.mxu0 0.0
        %3588 = vmatmul.mubr.f32.gmra.mrb[0].mxu0 %v3518
        %v3589 = vpop.f32.mrb[0].mxu0
        %v3590 = vadd.f32 0.0, %v3589
        %v3591 = vpop.f32.mrb[0].mxu0
        %3592 = vmatprep.mubr.f32.mxu0 0.0
        %3593 = vmatmul.mubr.f32.gmra.mrb[0].mxu0 %v3521
        %v3594 = vpop.f32.mrb[0].mxu0
        %v3595 = vadd.f32 0.0, %v3594
        %v3596 = vpop.f32.mrb[0].mxu0
        %3597 = vdwg.mxu0
        %v3599 = vsel %vm2100, %v3023, 0
        %v3602 = vsel %vm2100, %v3028, 0
        %vm3604 = vcmask 1043456
        %v3606 = vsel %vm3604, %v361, 0
        %3608 = vmatprep.subr.mxu0 0.0
        %3609 = vmatpush1.msra.mxu0 %v3606
        %3610 = vmatprep.subr.mxu0 0.0
        %3611 = vmatpush1.msra.mxu0 0.0
        %3612 = vmatprep.subr.mxu0 0.0
        %3613 = vmatpush1.msra.mxu0 0.0
        %3614 = vmatprep.subr.mxu0 0.0
        %3615 = vmatpush1.msra.mxu0 0.0
        %3616 = vmatprep.subr.mxu0 0.0
        %3617 = vmatpush1.msra.mxu0 0.0
        %3618 = vmatprep.subr.mxu0 0.0
        %3619 = vmatpush1.msra.mxu0 0.0
        %3620 = vmatprep.subr.mxu0 0.0
        %3621 = vmatpush1.msra.mxu0 0.0
        %3622 = vmatprep.subr.mxu0 0.0
        %3623 = vmatpush1.msra.mxu0 0.0
        %3624 = vmatprep.subr.mxu0 0.0
        %3625 = vmatpush1.msra.mxu0 0.0
        %3626 = vmatprep.subr.mxu0 0.0
        %3627 = vmatpush1.msra.mxu0 0.0
        %3628 = vmatprep.subr.mxu0 0.0
        %3629 = vmatpush1.msra.mxu0 0.0
        %3630 = vmatprep.subr.mxu0 0.0
        %3631 = vmatpush1.msra.mxu0 0.0
        %3632 = vmatprep.subr.mxu0 0.0
        %3633 = vmatpush1.msra.mxu0 0.0
        %3634 = vmatprep.subr.mxu0 0.0
        %3635 = vmatpush1.msra.mxu0 0.0
        %3636 = vmatprep.subr.mxu0 0.0
        %3637 = vmatpush1.msra.mxu0 0.0
        %3638 = vmatprep.subr.mxu0 0.0
        %3639 = vmatpush1.msra.mxu0 0.0
        %3640 = vmatprep.subr.mxu0 0.0
        %3641 = vmatpush1.msra.mxu0 0.0
        %3642 = vmatprep.subr.mxu0 0.0
        %3643 = vmatpush1.msra.mxu0 0.0
        %3644 = vmatprep.subr.mxu0 0.0
        %3645 = vmatpush1.msra.mxu0 0.0
        %3646 = vmatprep.subr.mxu0 0.0
        %3647 = vmatpush1.msra.mxu0 0.0
        %3648 = vmatprep.subr.mxu0 0.0
        %3649 = vmatpush1.msra.mxu0 0.0
        %3650 = vmatprep.subr.mxu0 0.0
        %3651 = vmatpush1.msra.mxu0 0.0
        %3652 = vmatprep.subr.mxu0 0.0
        %3653 = vmatpush1.msra.mxu0 0.0
        %3654 = vmatprep.subr.mxu0 0.0
        %3655 = vmatpush1.msra.mxu0 0.0
        %3656 = vmatprep.subr.mxu0 0.0
        %3657 = vmatpush1.msra.mxu0 0.0
        %3658 = vmatprep.subr.mxu0 0.0
        %3659 = vmatpush1.msra.mxu0 0.0
        %3660 = vmatprep.subr.mxu0 0.0
        %3661 = vmatpush1.msra.mxu0 0.0
        %3662 = vmatprep.subr.mxu0 0.0
        %3663 = vmatpush1.msra.mxu0 0.0
        %3664 = vmatprep.subr.mxu0 0.0
        %3665 = vmatpush1.msra.mxu0 0.0
        %3666 = vmatprep.subr.mxu0 0.0
        %3667 = vmatpush1.msra.mxu0 0.0
        %3668 = vmatprep.subr.mxu0 0.0
        %3669 = vmatpush1.msra.mxu0 0.0
        %3670 = vmatprep.subr.mxu0 0.0
        %3671 = vmatpush1.msra.mxu0 0.0
        %3672 = vmatprep.mubr.f32.mxu0 0.0
        %3673 = vmatmul.mubr.f32.gmra.mrb[0].mxu0 %v3599
        %v3674 = vpop.f32.mrb[0].mxu0
        %v3675 = vadd.f32 0.0, %v3674
        %v3676 = vpop.f32.mrb[0].mxu0
        %3677 = vmatprep.mubr.f32.mxu0 0.0
        %3678 = vmatmul.mubr.f32.gmra.mrb[0].mxu0 %v3602
        %v3679 = vpop.f32.mrb[0].mxu0
        %v3680 = vadd.f32 0.0, %v3679
        %v3681 = vpop.f32.mrb[0].mxu0
        %3682 = vdwg.mxu0
        %v3684 = vsel %vm2100, %v3104, 0
        %v3687 = vsel %vm2100, %v3109, 0
        %v3690 = vsel %vm3604, %v362, 0
        %3692 = vmatprep.subr.mxu0 0.0
        %3693 = vmatpush1.msra.mxu0 %v3690
        %3694 = vmatprep.subr.mxu0 0.0
        %3695 = vmatpush1.msra.mxu0 0.0
        %3696 = vmatprep.subr.mxu0 0.0
        %3697 = vmatpush1.msra.mxu0 0.0
        %3698 = vmatprep.subr.mxu0 0.0
        %3699 = vmatpush1.msra.mxu0 0.0
        %3700 = vmatprep.subr.mxu0 0.0
        %3701 = vmatpush1.msra.mxu0 0.0
        %3702 = vmatprep.subr.mxu0 0.0
        %3703 = vmatpush1.msra.mxu0 0.0
        %3704 = vmatprep.subr.mxu0 0.0
        %3705 = vmatpush1.msra.mxu0 0.0
        %3706 = vmatprep.subr.mxu0 0.0
        %3707 = vmatpush1.msra.mxu0 0.0
        %3708 = vmatprep.subr.mxu0 0.0
        %3709 = vmatpush1.msra.mxu0 0.0
        %3710 = vmatprep.subr.mxu0 0.0
        %3711 = vmatpush1.msra.mxu0 0.0
        %3712 = vmatprep.subr.mxu0 0.0
        %3713 = vmatpush1.msra.mxu0 0.0
        %3714 = vmatprep.subr.mxu0 0.0
        %3715 = vmatpush1.msra.mxu0 0.0
        %3716 = vmatprep.subr.mxu0 0.0
        %3717 = vmatpush1.msra.mxu0 0.0
        %3718 = vmatprep.subr.mxu0 0.0
        %3719 = vmatpush1.msra.mxu0 0.0
        %3720 = vmatprep.subr.mxu0 0.0
        %3721 = vmatpush1.msra.mxu0 0.0
        %3722 = vmatprep.subr.mxu0 0.0
        %3723 = vmatpush1.msra.mxu0 0.0
        %3724 = vmatprep.subr.mxu0 0.0
        %3725 = vmatpush1.msra.mxu0 0.0
        %3726 = vmatprep.subr.mxu0 0.0
        %3727 = vmatpush1.msra.mxu0 0.0
        %3728 = vmatprep.subr.mxu0 0.0
        %3729 = vmatpush1.msra.mxu0 0.0
        %3730 = vmatprep.subr.mxu0 0.0
        %3731 = vmatpush1.msra.mxu0 0.0
        %3732 = vmatprep.subr.mxu0 0.0
        %3733 = vmatpush1.msra.mxu0 0.0
        %3734 = vmatprep.subr.mxu0 0.0
        %3735 = vmatpush1.msra.mxu0 0.0
        %3736 = vmatprep.subr.mxu0 0.0
        %3737 = vmatpush1.msra.mxu0 0.0
        %3738 = vmatprep.subr.mxu0 0.0
        %3739 = vmatpush1.msra.mxu0 0.0
        %3740 = vmatprep.subr.mxu0 0.0
        %3741 = vmatpush1.msra.mxu0 0.0
        %3742 = vmatprep.subr.mxu0 0.0
        %3743 = vmatpush1.msra.mxu0 0.0
        %3744 = vmatprep.subr.mxu0 0.0
        %3745 = vmatpush1.msra.mxu0 0.0
        %3746 = vmatprep.subr.mxu0 0.0
        %3747 = vmatpush1.msra.mxu0 0.0
        %3748 = vmatprep.subr.mxu0 0.0
        %3749 = vmatpush1.msra.mxu0 0.0
        %3750 = vmatprep.subr.mxu0 0.0
        %3751 = vmatpush1.msra.mxu0 0.0
        %3752 = vmatprep.subr.mxu0 0.0
        %3753 = vmatpush1.msra.mxu0 0.0
        %3754 = vmatprep.subr.mxu0 0.0
        %3755 = vmatpush1.msra.mxu0 0.0
        %3756 = vmatprep.mubr.f32.mxu0 0.0
        %3757 = vmatmul.mubr.f32.gmra.mrb[0].mxu0 %v3684
        %v3758 = vpop.f32.mrb[0].mxu0
        %v3759 = vadd.f32 0.0, %v3758
        %v3760 = vpop.f32.mrb[0].mxu0
        %3761 = vmatprep.mubr.f32.mxu0 0.0
        %3762 = vmatmul.mubr.f32.gmra.mrb[0].mxu0 %v3687
        %v3763 = vpop.f32.mrb[0].mxu0
        %v3764 = vadd.f32 0.0, %v3763
        %v3765 = vpop.f32.mrb[0].mxu0
        %3766 = vdwg.mxu0
        %v3768 = vsel %vm2100, %v3185, 0
        %v3771 = vsel %vm2100, %v3190, 0
        %v3774 = vsel %vm3604, %v363, 0
        %3776 = vmatprep.subr.mxu0 0.0
        %3777 = vmatpush1.msra.mxu0 %v3774
        %3778 = vmatprep.subr.mxu0 0.0
        %3779 = vmatpush1.msra.mxu0 0.0
        %3780 = vmatprep.subr.mxu0 0.0
        %3781 = vmatpush1.msra.mxu0 0.0
        %3782 = vmatprep.subr.mxu0 0.0
        %3783 = vmatpush1.msra.mxu0 0.0
        %3784 = vmatprep.subr.mxu0 0.0
        %3785 = vmatpush1.msra.mxu0 0.0
        %3786 = vmatprep.subr.mxu0 0.0
        %3787 = vmatpush1.msra.mxu0 0.0
        %3788 = vmatprep.subr.mxu0 0.0
        %3789 = vmatpush1.msra.mxu0 0.0
        %3790 = vmatprep.subr.mxu0 0.0
        %3791 = vmatpush1.msra.mxu0 0.0
        %3792 = vmatprep.subr.mxu0 0.0
        %3793 = vmatpush1.msra.mxu0 0.0
        %3794 = vmatprep.subr.mxu0 0.0
        %3795 = vmatpush1.msra.mxu0 0.0
        %3796 = vmatprep.subr.mxu0 0.0
        %3797 = vmatpush1.msra.mxu0 0.0
        %3798 = vmatprep.subr.mxu0 0.0
        %3799 = vmatpush1.msra.mxu0 0.0
        %3800 = vmatprep.subr.mxu0 0.0
        %3801 = vmatpush1.msra.mxu0 0.0
        %3802 = vmatprep.subr.mxu0 0.0
        %3803 = vmatpush1.msra.mxu0 0.0
        %3804 = vmatprep.subr.mxu0 0.0
        %3805 = vmatpush1.msra.mxu0 0.0
        %3806 = vmatprep.subr.mxu0 0.0
        %3807 = vmatpush1.msra.mxu0 0.0
        %3808 = vmatprep.subr.mxu0 0.0
        %3809 = vmatpush1.msra.mxu0 0.0
        %3810 = vmatprep.subr.mxu0 0.0
        %3811 = vmatpush1.msra.mxu0 0.0
        %3812 = vmatprep.subr.mxu0 0.0
        %3813 = vmatpush1.msra.mxu0 0.0
        %3814 = vmatprep.subr.mxu0 0.0
        %3815 = vmatpush1.msra.mxu0 0.0
        %3816 = vmatprep.subr.mxu0 0.0
        %3817 = vmatpush1.msra.mxu0 0.0
        %3818 = vmatprep.subr.mxu0 0.0
        %3819 = vmatpush1.msra.mxu0 0.0
        %3820 = vmatprep.subr.mxu0 0.0
        %3821 = vmatpush1.msra.mxu0 0.0
        %3822 = vmatprep.subr.mxu0 0.0
        %3823 = vmatpush1.msra.mxu0 0.0
        %3824 = vmatprep.subr.mxu0 0.0
        %3825 = vmatpush1.msra.mxu0 0.0
        %3826 = vmatprep.subr.mxu0 0.0
        %3827 = vmatpush1.msra.mxu0 0.0
        %3828 = vmatprep.subr.mxu0 0.0
        %3829 = vmatpush1.msra.mxu0 0.0
        %3830 = vmatprep.subr.mxu0 0.0
        %3831 = vmatpush1.msra.mxu0 0.0
        %3832 = vmatprep.subr.mxu0 0.0
        %3833 = vmatpush1.msra.mxu0 0.0
        %3834 = vmatprep.subr.mxu0 0.0
        %3835 = vmatpush1.msra.mxu0 0.0
        %3836 = vmatprep.subr.mxu0 0.0
        %3837 = vmatpush1.msra.mxu0 0.0
        %3838 = vmatprep.subr.mxu0 0.0
        %3839 = vmatpush1.msra.mxu0 0.0
        %3840 = vmatprep.mubr.f32.mxu0 0.0
        %3841 = vmatmul.mubr.f32.gmra.mrb[0].mxu0 %v3768
        %v3842 = vpop.f32.mrb[0].mxu0
        %v3843 = vadd.f32 0.0, %v3842
        %v3844 = vpop.f32.mrb[0].mxu0
        %3845 = vmatprep.mubr.f32.mxu0 0.0
        %3846 = vmatmul.mubr.f32.gmra.mrb[0].mxu0 %v3771
        %v3847 = vpop.f32.mrb[0].mxu0
        %v3848 = vadd.f32 0.0, %v3847
        %v3849 = vpop.f32.mrb[0].mxu0
        %3850 = vdwg.mxu0
        %v3852 = vsel %vm2100, %v3266, 0
        %v3855 = vsel %vm2100, %v3271, 0
        %v3858 = vsel %vm3604, %v364, 0
        %3860 = vmatprep.subr.mxu0 0.0
        %3861 = vmatpush1.msra.mxu0 %v3858
        %3862 = vmatprep.subr.mxu0 0.0
        %3863 = vmatpush1.msra.mxu0 0.0
        %3864 = vmatprep.subr.mxu0 0.0
        %3865 = vmatpush1.msra.mxu0 0.0
        %3866 = vmatprep.subr.mxu0 0.0
        %3867 = vmatpush1.msra.mxu0 0.0
        %3868 = vmatprep.subr.mxu0 0.0
        %3869 = vmatpush1.msra.mxu0 0.0
        %3870 = vmatprep.subr.mxu0 0.0
        %3871 = vmatpush1.msra.mxu0 0.0
        %3872 = vmatprep.subr.mxu0 0.0
        %3873 = vmatpush1.msra.mxu0 0.0
        %3874 = vmatprep.subr.mxu0 0.0
        %3875 = vmatpush1.msra.mxu0 0.0
        %3876 = vmatprep.subr.mxu0 0.0
        %3877 = vmatpush1.msra.mxu0 0.0
        %3878 = vmatprep.subr.mxu0 0.0
        %3879 = vmatpush1.msra.mxu0 0.0
        %3880 = vmatprep.subr.mxu0 0.0
        %3881 = vmatpush1.msra.mxu0 0.0
        %3882 = vmatprep.subr.mxu0 0.0
        %3883 = vmatpush1.msra.mxu0 0.0
        %3884 = vmatprep.subr.mxu0 0.0
        %3885 = vmatpush1.msra.mxu0 0.0
        %3886 = vmatprep.subr.mxu0 0.0
        %3887 = vmatpush1.msra.mxu0 0.0
        %3888 = vmatprep.subr.mxu0 0.0
        %3889 = vmatpush1.msra.mxu0 0.0
        %3890 = vmatprep.subr.mxu0 0.0
        %3891 = vmatpush1.msra.mxu0 0.0
        %3892 = vmatprep.subr.mxu0 0.0
        %3893 = vmatpush1.msra.mxu0 0.0
        %3894 = vmatprep.subr.mxu0 0.0
        %3895 = vmatpush1.msra.mxu0 0.0
        %3896 = vmatprep.subr.mxu0 0.0
        %3897 = vmatpush1.msra.mxu0 0.0
        %3898 = vmatprep.subr.mxu0 0.0
        %3899 = vmatpush1.msra.mxu0 0.0
        %3900 = vmatprep.subr.mxu0 0.0
        %3901 = vmatpush1.msra.mxu0 0.0
        %3902 = vmatprep.subr.mxu0 0.0
        %3903 = vmatpush1.msra.mxu0 0.0
        %3904 = vmatprep.subr.mxu0 0.0
        %3905 = vmatpush1.msra.mxu0 0.0
        %3906 = vmatprep.subr.mxu0 0.0
        %3907 = vmatpush1.msra.mxu0 0.0
        %3908 = vmatprep.subr.mxu0 0.0
        %3909 = vmatpush1.msra.mxu0 0.0
        %3910 = vmatprep.subr.mxu0 0.0
        %3911 = vmatpush1.msra.mxu0 0.0
        %3912 = vmatprep.subr.mxu0 0.0
        %3913 = vmatpush1.msra.mxu0 0.0
        %3914 = vmatprep.subr.mxu0 0.0
        %3915 = vmatpush1.msra.mxu0 0.0
        %3916 = vmatprep.subr.mxu0 0.0
        %3917 = vmatpush1.msra.mxu0 0.0
        %3918 = vmatprep.subr.mxu0 0.0
        %3919 = vmatpush1.msra.mxu0 0.0
        %3920 = vmatprep.subr.mxu0 0.0
        %3921 = vmatpush1.msra.mxu0 0.0
        %3922 = vmatprep.subr.mxu0 0.0
        %3923 = vmatpush1.msra.mxu0 0.0
        %3924 = vmatprep.mubr.f32.mxu0 0.0
        %3925 = vmatmul.mubr.f32.gmra.mrb[0].mxu0 %v3852
        %v3926 = vpop.f32.mrb[0].mxu0
        %v3927 = vadd.f32 0.0, %v3926
        %v3928 = vpop.f32.mrb[0].mxu0
        %3929 = vmatprep.mubr.f32.mxu0 0.0
        %3930 = vmatmul.mubr.f32.gmra.mrb[0].mxu0 %v3855
        %v3931 = vpop.f32.mrb[0].mxu0
        %v3932 = vadd.f32 0.0, %v3931
        %v3933 = vpop.f32.mrb[0].mxu0
        %3934 = vdwg.mxu0
        %v3936 = vsel %vm2100, %v3347, 0
        %v3939 = vsel %vm2100, %v3352, 0
        %v3942 = vsel %vm3604, %v365, 0
        %3944 = vmatprep.subr.mxu0 0.0
        %3945 = vmatpush1.msra.mxu0 %v3942
        %3946 = vmatprep.subr.mxu0 0.0
        %3947 = vmatpush1.msra.mxu0 0.0
        %3948 = vmatprep.subr.mxu0 0.0
        %3949 = vmatpush1.msra.mxu0 0.0
        %3950 = vmatprep.subr.mxu0 0.0
        %3951 = vmatpush1.msra.mxu0 0.0
        %3952 = vmatprep.subr.mxu0 0.0
        %3953 = vmatpush1.msra.mxu0 0.0
        %3954 = vmatprep.subr.mxu0 0.0
        %3955 = vmatpush1.msra.mxu0 0.0
        %3956 = vmatprep.subr.mxu0 0.0
        %3957 = vmatpush1.msra.mxu0 0.0
        %3958 = vmatprep.subr.mxu0 0.0
        %3959 = vmatpush1.msra.mxu0 0.0
        %3960 = vmatprep.subr.mxu0 0.0
        %3961 = vmatpush1.msra.mxu0 0.0
        %3962 = vmatprep.subr.mxu0 0.0
        %3963 = vmatpush1.msra.mxu0 0.0
        %3964 = vmatprep.subr.mxu0 0.0
        %3965 = vmatpush1.msra.mxu0 0.0
        %3966 = vmatprep.subr.mxu0 0.0
        %3967 = vmatpush1.msra.mxu0 0.0
        %3968 = vmatprep.subr.mxu0 0.0
        %3969 = vmatpush1.msra.mxu0 0.0
        %3970 = vmatprep.subr.mxu0 0.0
        %3971 = vmatpush1.msra.mxu0 0.0
        %3972 = vmatprep.subr.mxu0 0.0
        %3973 = vmatpush1.msra.mxu0 0.0
        %3974 = vmatprep.subr.mxu0 0.0
        %3975 = vmatpush1.msra.mxu0 0.0
        %3976 = vmatprep.subr.mxu0 0.0
        %3977 = vmatpush1.msra.mxu0 0.0
        %3978 = vmatprep.subr.mxu0 0.0
        %3979 = vmatpush1.msra.mxu0 0.0
        %3980 = vmatprep.subr.mxu0 0.0
        %3981 = vmatpush1.msra.mxu0 0.0
        %3982 = vmatprep.subr.mxu0 0.0
        %3983 = vmatpush1.msra.mxu0 0.0
        %3984 = vmatprep.subr.mxu0 0.0
        %3985 = vmatpush1.msra.mxu0 0.0
        %3986 = vmatprep.subr.mxu0 0.0
        %3987 = vmatpush1.msra.mxu0 0.0
        %3988 = vmatprep.subr.mxu0 0.0
        %3989 = vmatpush1.msra.mxu0 0.0
        %3990 = vmatprep.subr.mxu0 0.0
        %3991 = vmatpush1.msra.mxu0 0.0
        %3992 = vmatprep.subr.mxu0 0.0
        %3993 = vmatpush1.msra.mxu0 0.0
        %3994 = vmatprep.subr.mxu0 0.0
        %3995 = vmatpush1.msra.mxu0 0.0
        %3996 = vmatprep.subr.mxu0 0.0
        %3997 = vmatpush1.msra.mxu0 0.0
        %3998 = vmatprep.subr.mxu0 0.0
        %3999 = vmatpush1.msra.mxu0 0.0
        %4000 = vmatprep.subr.mxu0 0.0
        %4001 = vmatpush1.msra.mxu0 0.0
        %4002 = vmatprep.subr.mxu0 0.0
        %4003 = vmatpush1.msra.mxu0 0.0
        %4004 = vmatprep.subr.mxu0 0.0
        %4005 = vmatpush1.msra.mxu0 0.0
        %4006 = vmatprep.subr.mxu0 0.0
        %4007 = vmatpush1.msra.mxu0 0.0
        %4008 = vmatprep.mubr.f32.mxu0 0.0
        %4009 = vmatmul.mubr.f32.gmra.mrb[0].mxu0 %v3936
        %v4010 = vpop.f32.mrb[0].mxu0
        %v4011 = vadd.f32 0.0, %v4010
        %v4012 = vpop.f32.mrb[0].mxu0
        %4013 = vmatprep.mubr.f32.mxu0 0.0
        %4014 = vmatmul.mubr.f32.gmra.mrb[0].mxu0 %v3939
        %v4015 = vpop.f32.mrb[0].mxu0
        %v4016 = vadd.f32 0.0, %v4015
        %v4017 = vpop.f32.mrb[0].mxu0
        %4018 = vdwg.mxu0
        %v4020 = vsel %vm2100, %v3428, 0
        %v4023 = vsel %vm2100, %v3433, 0
        %v4026 = vsel %vm3604, %v366, 0
        %4028 = vmatprep.subr.mxu0 0.0
        %4029 = vmatpush1.msra.mxu0 %v4026
        %4030 = vmatprep.subr.mxu0 0.0
        %4031 = vmatpush1.msra.mxu0 0.0
        %4032 = vmatprep.subr.mxu0 0.0
        %4033 = vmatpush1.msra.mxu0 0.0
        %4034 = vmatprep.subr.mxu0 0.0
        %4035 = vmatpush1.msra.mxu0 0.0
        %4036 = vmatprep.subr.mxu0 0.0
        %4037 = vmatpush1.msra.mxu0 0.0
        %4038 = vmatprep.subr.mxu0 0.0
        %4039 = vmatpush1.msra.mxu0 0.0
        %4040 = vmatprep.subr.mxu0 0.0
        %4041 = vmatpush1.msra.mxu0 0.0
        %4042 = vmatprep.subr.mxu0 0.0
        %4043 = vmatpush1.msra.mxu0 0.0
        %4044 = vmatprep.subr.mxu0 0.0
        %4045 = vmatpush1.msra.mxu0 0.0
        %4046 = vmatprep.subr.mxu0 0.0
        %4047 = vmatpush1.msra.mxu0 0.0
        %4048 = vmatprep.subr.mxu0 0.0
        %4049 = vmatpush1.msra.mxu0 0.0
        %4050 = vmatprep.subr.mxu0 0.0
        %4051 = vmatpush1.msra.mxu0 0.0
        %4052 = vmatprep.subr.mxu0 0.0
        %4053 = vmatpush1.msra.mxu0 0.0
        %4054 = vmatprep.subr.mxu0 0.0
        %4055 = vmatpush1.msra.mxu0 0.0
        %4056 = vmatprep.subr.mxu0 0.0
        %4057 = vmatpush1.msra.mxu0 0.0
        %4058 = vmatprep.subr.mxu0 0.0
        %4059 = vmatpush1.msra.mxu0 0.0
        %4060 = vmatprep.subr.mxu0 0.0
        %4061 = vmatpush1.msra.mxu0 0.0
        %4062 = vmatprep.subr.mxu0 0.0
        %4063 = vmatpush1.msra.mxu0 0.0
        %4064 = vmatprep.subr.mxu0 0.0
        %4065 = vmatpush1.msra.mxu0 0.0
        %4066 = vmatprep.subr.mxu0 0.0
        %4067 = vmatpush1.msra.mxu0 0.0
        %4068 = vmatprep.subr.mxu0 0.0
        %4069 = vmatpush1.msra.mxu0 0.0
        %4070 = vmatprep.subr.mxu0 0.0
        %4071 = vmatpush1.msra.mxu0 0.0
        %4072 = vmatprep.subr.mxu0 0.0
        %4073 = vmatpush1.msra.mxu0 0.0
        %4074 = vmatprep.subr.mxu0 0.0
        %4075 = vmatpush1.msra.mxu0 0.0
        %4076 = vmatprep.subr.mxu0 0.0
        %4077 = vmatpush1.msra.mxu0 0.0
        %4078 = vmatprep.subr.mxu0 0.0
        %4079 = vmatpush1.msra.mxu0 0.0
        %4080 = vmatprep.subr.mxu0 0.0
        %4081 = vmatpush1.msra.mxu0 0.0
        %4082 = vmatprep.subr.mxu0 0.0
        %4083 = vmatpush1.msra.mxu0 0.0
        %4084 = vmatprep.subr.mxu0 0.0
        %4085 = vmatpush1.msra.mxu0 0.0
        %4086 = vmatprep.subr.mxu0 0.0
        %4087 = vmatpush1.msra.mxu0 0.0
        %4088 = vmatprep.subr.mxu0 0.0
        %4089 = vmatpush1.msra.mxu0 0.0
        %4090 = vmatprep.subr.mxu0 0.0
        %4091 = vmatpush1.msra.mxu0 0.0
        %4092 = vmatprep.mubr.f32.mxu0 0.0
        %4093 = vmatmul.mubr.f32.gmra.mrb[0].mxu0 %v4020
        %v4094 = vpop.f32.mrb[0].mxu0
        %v4095 = vadd.f32 0.0, %v4094
        %v4096 = vpop.f32.mrb[0].mxu0
        %4097 = vmatprep.mubr.f32.mxu0 0.0
        %4098 = vmatmul.mubr.f32.gmra.mrb[0].mxu0 %v4023
        %v4099 = vpop.f32.mrb[0].mxu0
        %v4100 = vadd.f32 0.0, %v4099
        %v4101 = vpop.f32.mrb[0].mxu0
        %4102 = vdwg.mxu0
        %v4104 = vsel %vm2100, %v3509, 0
        %v4107 = vsel %vm2100, %v3514, 0
        %v4110 = vsel %vm3604, %v367, 0
        %4112 = vmatprep.subr.mxu0 0.0
        %4113 = vmatpush1.msra.mxu0 %v4110
        %4114 = vmatprep.subr.mxu0 0.0
        %4115 = vmatpush1.msra.mxu0 0.0
        %4116 = vmatprep.subr.mxu0 0.0
        %4117 = vmatpush1.msra.mxu0 0.0
        %4118 = vmatprep.subr.mxu0 0.0
        %4119 = vmatpush1.msra.mxu0 0.0
        %4120 = vmatprep.subr.mxu0 0.0
        %4121 = vmatpush1.msra.mxu0 0.0
        %4122 = vmatprep.subr.mxu0 0.0
        %4123 = vmatpush1.msra.mxu0 0.0
        %4124 = vmatprep.subr.mxu0 0.0
        %4125 = vmatpush1.msra.mxu0 0.0
        %4126 = vmatprep.subr.mxu0 0.0
        %4127 = vmatpush1.msra.mxu0 0.0
        %4128 = vmatprep.subr.mxu0 0.0
        %4129 = vmatpush1.msra.mxu0 0.0
        %4130 = vmatprep.subr.mxu0 0.0
        %4131 = vmatpush1.msra.mxu0 0.0
        %4132 = vmatprep.subr.mxu0 0.0
        %4133 = vmatpush1.msra.mxu0 0.0
        %4134 = vmatprep.subr.mxu0 0.0
        %4135 = vmatpush1.msra.mxu0 0.0
        %4136 = vmatprep.subr.mxu0 0.0
        %4137 = vmatpush1.msra.mxu0 0.0
        %4138 = vmatprep.subr.mxu0 0.0
        %4139 = vmatpush1.msra.mxu0 0.0
        %4140 = vmatprep.subr.mxu0 0.0
        %4141 = vmatpush1.msra.mxu0 0.0
        %4142 = vmatprep.subr.mxu0 0.0
        %4143 = vmatpush1.msra.mxu0 0.0
        %4144 = vmatprep.subr.mxu0 0.0
        %4145 = vmatpush1.msra.mxu0 0.0
        %4146 = vmatprep.subr.mxu0 0.0
        %4147 = vmatpush1.msra.mxu0 0.0
        %4148 = vmatprep.subr.mxu0 0.0
        %4149 = vmatpush1.msra.mxu0 0.0
        %4150 = vmatprep.subr.mxu0 0.0
        %4151 = vmatpush1.msra.mxu0 0.0
        %4152 = vmatprep.subr.mxu0 0.0
        %4153 = vmatpush1.msra.mxu0 0.0
        %4154 = vmatprep.subr.mxu0 0.0
        %4155 = vmatpush1.msra.mxu0 0.0
        %4156 = vmatprep.subr.mxu0 0.0
        %4157 = vmatpush1.msra.mxu0 0.0
        %4158 = vmatprep.subr.mxu0 0.0
        %4159 = vmatpush1.msra.mxu0 0.0
        %4160 = vmatprep.subr.mxu0 0.0
        %4161 = vmatpush1.msra.mxu0 0.0
        %4162 = vmatprep.subr.mxu0 0.0
        %4163 = vmatpush1.msra.mxu0 0.0
        %4164 = vmatprep.subr.mxu0 0.0
        %4165 = vmatpush1.msra.mxu0 0.0
        %4166 = vmatprep.subr.mxu0 0.0
        %4167 = vmatpush1.msra.mxu0 0.0
        %4168 = vmatprep.subr.mxu0 0.0
        %4169 = vmatpush1.msra.mxu0 0.0
        %4170 = vmatprep.subr.mxu0 0.0
        %4171 = vmatpush1.msra.mxu0 0.0
        %4172 = vmatprep.subr.mxu0 0.0
        %4173 = vmatpush1.msra.mxu0 0.0
        %4174 = vmatprep.subr.mxu0 0.0
        %4175 = vmatpush1.msra.mxu0 0.0
        %4176 = vmatprep.mubr.f32.mxu0 0.0
        %4177 = vmatmul.mubr.f32.gmra.mrb[0].mxu0 %v4104
        %v4178 = vpop.f32.mrb[0].mxu0
        %v4179 = vadd.f32 0.0, %v4178
        %v4180 = vpop.f32.mrb[0].mxu0
        %4181 = vmatprep.mubr.f32.mxu0 0.0
        %4182 = vmatmul.mubr.f32.gmra.mrb[0].mxu0 %v4107
        %v4183 = vpop.f32.mrb[0].mxu0
        %v4184 = vadd.f32 0.0, %v4183
        %v4185 = vpop.f32.mrb[0].mxu0
        %4186 = vdwg.mxu0
        %v4188 = vsel %vm2100, %v3590, 0
        %v4191 = vsel %vm2100, %v3595, 0
        %v4194 = vsel %vm3604, %v368, 0
        %4196 = vmatprep.subr.mxu0 0.0
        %4197 = vmatpush1.msra.mxu0 %v4194
        %4198 = vmatprep.subr.mxu0 0.0
        %4199 = vmatpush1.msra.mxu0 0.0
        %4200 = vmatprep.subr.mxu0 0.0
        %4201 = vmatpush1.msra.mxu0 0.0
        %4202 = vmatprep.subr.mxu0 0.0
        %4203 = vmatpush1.msra.mxu0 0.0
        %4204 = vmatprep.subr.mxu0 0.0
        %4205 = vmatpush1.msra.mxu0 0.0
        %4206 = vmatprep.subr.mxu0 0.0
        %4207 = vmatpush1.msra.mxu0 0.0
        %4208 = vmatprep.subr.mxu0 0.0
        %4209 = vmatpush1.msra.mxu0 0.0
        %4210 = vmatprep.subr.mxu0 0.0
        %4211 = vmatpush1.msra.mxu0 0.0
        %4212 = vmatprep.subr.mxu0 0.0
        %4213 = vmatpush1.msra.mxu0 0.0
        %4214 = vmatprep.subr.mxu0 0.0
        %4215 = vmatpush1.msra.mxu0 0.0
        %4216 = vmatprep.subr.mxu0 0.0
        %4217 = vmatpush1.msra.mxu0 0.0
        %4218 = vmatprep.subr.mxu0 0.0
        %4219 = vmatpush1.msra.mxu0 0.0
        %4220 = vmatprep.subr.mxu0 0.0
        %4221 = vmatpush1.msra.mxu0 0.0
        %4222 = vmatprep.subr.mxu0 0.0
        %4223 = vmatpush1.msra.mxu0 0.0
        %4224 = vmatprep.subr.mxu0 0.0
        %4225 = vmatpush1.msra.mxu0 0.0
        %4226 = vmatprep.subr.mxu0 0.0
        %4227 = vmatpush1.msra.mxu0 0.0
        %4228 = vmatprep.subr.mxu0 0.0
        %4229 = vmatpush1.msra.mxu0 0.0
        %4230 = vmatprep.subr.mxu0 0.0
        %4231 = vmatpush1.msra.mxu0 0.0
        %4232 = vmatprep.subr.mxu0 0.0
        %4233 = vmatpush1.msra.mxu0 0.0
        %4234 = vmatprep.subr.mxu0 0.0
        %4235 = vmatpush1.msra.mxu0 0.0
        %4236 = vmatprep.subr.mxu0 0.0
        %4237 = vmatpush1.msra.mxu0 0.0
        %4238 = vmatprep.subr.mxu0 0.0
        %4239 = vmatpush1.msra.mxu0 0.0
        %4240 = vmatprep.subr.mxu0 0.0
        %4241 = vmatpush1.msra.mxu0 0.0
        %4242 = vmatprep.subr.mxu0 0.0
        %4243 = vmatpush1.msra.mxu0 0.0
        %4244 = vmatprep.subr.mxu0 0.0
        %4245 = vmatpush1.msra.mxu0 0.0
        %4246 = vmatprep.subr.mxu0 0.0
        %4247 = vmatpush1.msra.mxu0 0.0
        %4248 = vmatprep.subr.mxu0 0.0
        %4249 = vmatpush1.msra.mxu0 0.0
        %4250 = vmatprep.subr.mxu0 0.0
        %4251 = vmatpush1.msra.mxu0 0.0
        %4252 = vmatprep.subr.mxu0 0.0
        %4253 = vmatpush1.msra.mxu0 0.0
        %4254 = vmatprep.subr.mxu0 0.0
        %4255 = vmatpush1.msra.mxu0 0.0
        %4256 = vmatprep.subr.mxu0 0.0
        %4257 = vmatpush1.msra.mxu0 0.0
        %4258 = vmatprep.subr.mxu0 0.0
        %4259 = vmatpush1.msra.mxu0 0.0
        %4260 = vmatprep.mubr.f32.mxu0 0.0
        %4261 = vmatmul.mubr.f32.gmra.mrb[0].mxu0 %v4188
        %v4262 = vpop.f32.mrb[0].mxu0
        %v4263 = vadd.f32 0.0, %v4262
        %v4264 = vpop.f32.mrb[0].mxu0
        %4265 = vmatprep.mubr.f32.mxu0 0.0
        %4266 = vmatmul.mubr.f32.gmra.mrb[0].mxu0 %v4191
        %v4267 = vpop.f32.mrb[0].mxu0
        %v4268 = vadd.f32 0.0, %v4267
        %v4269 = vpop.f32.mrb[0].mxu0
        %4270 = vdwg.mxu0
        %v4271 = vsel %vm369, %v3675, 0.0
        %v4272 = vsel %vm369, %v3759, 0.0
        %v4273 = vadd.f32 %v4271, %v4272
        %v4274 = vsel %vm369, %v3843, 0.0
        %v4275 = vadd.f32 %v4273, %v4274
        %v4276 = vsel %vm369, %v3927, 0.0
        %v4277 = vadd.f32 %v4275, %v4276
        %v4278 = vsel %vm369, %v4011, 0.0
        %v4279 = vadd.f32 %v4277, %v4278
        %v4280 = vsel %vm369, %v4095, 0.0
        %v4281 = vadd.f32 %v4279, %v4280
        %v4282 = vsel %vm369, %v4179, 0.0
        %v4283 = vadd.f32 %v4281, %v4282
        %v4284 = vsel %vm369, %v4263, 0.0
        %v4285 = vadd.f32 %v4283, %v4284
        %v4286 = vsel %vm369, %v3680, 0.0
        %v4287 = vsel %vm369, %v3764, 0.0
        %v4288 = vadd.f32 %v4286, %v4287
        %v4289 = vsel %vm369, %v3848, 0.0
        %v4290 = vadd.f32 %v4288, %v4289
        %v4291 = vsel %vm369, %v3932, 0.0
        %v4292 = vadd.f32 %v4290, %v4291
        %v4293 = vsel %vm369, %v4016, 0.0
        %v4294 = vadd.f32 %v4292, %v4293
        %v4295 = vsel %vm369, %v4100, 0.0
        %v4296 = vadd.f32 %v4294, %v4295
        %v4297 = vsel %vm369, %v4184, 0.0
        %v4298 = vadd.f32 %v4296, %v4297
        %v4299 = vsel %vm369, %v4268, 0.0
        %v4300 = vadd.f32 %v4298, %v4299
        %v4301 = vld [vmem:[%s6] sm:$0x1]
        %v4303 = vlaneseq
        %v4304 = vshrl.u32 %v4303, 7
        %v4305 = vsub.s32 0, %v4304
        %v4306 = vrot.slane %v4301, %v4305
        %v4308 = vadd.f32 %v4285, %v4306
        %v4309 = vadd.f32 %v4300, %v4306
        %4310 = vst.msk [vmem:[%s284] sm:$0xff] %vm369, %v4308
        %4311 = vst.msk [vmem:[%s284 + $0x8] sm:$0xff] %vm369, %v4309
        %s4312 = sand.u32 %s186, 1
        %s4313 = scalar_lea.sflag [#allocation3], %s4312
        %s4314 = sand.u32 %s186, 1
        %s4315 = smul.addr %s4314, 16
        %s4316 = scalar_lea.vmem [#allocation2], %s4315
        // Predicated region
        $region49: #{tpu_custom_call.1} parent=47 // pred_check
          %p4317 = pneg %p196
        $region50: #{tpu_custom_call.1} parent=47 // pred_check_branch
          %4319 = sbr.rel (%p4317) target = $region52
        $region51: #{tpu_custom_call.1} parent=47 // pred_region
          %s4321 = ssub.s32 256, 256
          %4322 = vsyncadd %s4313, %s4321
          %s4323 = smul.addr %s21, 2
          %s4324 = smul.addr %s4323, 128
          %s4325 = scalar_lea.hbm %s7, %s4324
          %s4326 = sshll.u32 %s4316, 4
          %s4327 = int_to_ptr.vmem [resolvable:$true] %s4326
          %4332 = dma.vmem_to_hbm [thread:$0]  %s4327, 256, %s4325, %s4313, 128, 128, 8
        $region52: #{tpu_custom_call.1} parent=47 // pred_fallthru
          _
      $region48: #{tpu_custom_call.1} parent=5 // pred_fallthru
        _
      %p4333 = scmp.le.s32.totalorder 2, %s16
      // Predicated region
      $region53: #{tpu_custom_call.1} parent=5 // pred_check
        %p4334 = pneg %p4333
      $region54: #{tpu_custom_call.1} parent=5 // pred_check_branch
        %4336 = sbr.rel (%p4334) target = $region56
      $region55: #{tpu_custom_call.1} parent=5 // pred_region
        %s4337 = ssub.s32 %s16, 2
        // Predicated region
        $region57: #{tpu_custom_call.1} parent=55 // pred_check
          %p4338 = pneg %p202
        $region58: #{tpu_custom_call.1} parent=55 // pred_check_branch
          %4340 = sbr.rel (%p4338) target = $region60
        $region59: #{tpu_custom_call.1} parent=55 // pred_region
          %s4341 = sand.u32 %s187, 1
          %s4342 = scalar_lea.sflag [#allocation3], %s4341
          %s4343 = sand.u32 %s187, 1
          %s4344 = smul.addr %s4343, 16
          %s4345 = scalar_lea.vmem [#allocation2], %s4344
          %4346 = dma.done %s4342, 256
        $region60: #{tpu_custom_call.1} parent=55 // pred_fallthru
          _
      $region56: #{tpu_custom_call.1} parent=5 // pred_fallthru
        _
    $region6: #{tpu_custom_call.1} parent=1 // loop_footer
      %s20 = sadd.s32 1, %s16
    $region7: #{tpu_custom_call.1} parent=1 // loop_footer_branch
      %15 = sbr.rel target = $region3
    $region8: #{tpu_custom_call.1} parent=1 // loop_exit
      _
    %4347 = vsyncpa [#allocation3], 1
    %s4348 = scalar_lea.sflag [#allocation3], 1
    %4349 = vsyncpa %s4348, 1

</llo_original>
